<compile_context>
chip_gen: v7x
topology: tpu7x:2x2x1
jax: 0.10.0
libtpu: 0.0.40
codegen_flags: <defaults>
</compile_context>

<pallas_src>
import functools
import numpy as np

import jax
import jax.numpy as jnp
from jax.experimental import pallas as pl
from jax.experimental.pallas import tpu as pltpu


_VMEM_LIMIT = 32 * 1024 * 1024  # explicit scoped-VMEM limit (safe on all chips)


# ----------------------------------------------------------------------------
# Pallas kernels
# ----------------------------------------------------------------------------
def _pointwise_kernel(f_ref, c_ref, wpre_ref, gamma_ref, beta_ref, wpos_ref,
                      out_ref, *, inv_inc, cp):
    """pre_mix (Linear + LayerNorm) + pos_weight Linear + cos/sin weighting.

    Channels are zero-padded to cp (multiple of 128 lanes); LayerNorm stats
    use E[x^2]-E[x]^2 scaled by 1/inc so padded channels stay exact (padded
    gamma/beta are zero).  Output is packed lane-dense: [F*cos | F*sin].
    """
    f = f_ref[...]                                              # [tm, cp]
    h = jnp.dot(f, wpre_ref[...], preferred_element_type=jnp.float32)
    mu = jnp.sum(h, axis=-1, keepdims=True) * inv_inc
    ex2 = jnp.sum(h * h, axis=-1, keepdims=True) * inv_inc
    var = ex2 - mu * mu
    hn = (h - mu) * jax.lax.rsqrt(var + 1e-6)
    hn = hn * gamma_ref[...] + beta_ref[...]
    # pos_weight: Linear(3, inc, bias=False); K=3 -> expand by hand (no MXU).
    c = c_ref[...]                                              # [tm, 3]
    pos = (c[:, 0:1] * wpos_ref[0:1, :]
           + c[:, 1:2] * wpos_ref[1:2, :]
           + c[:, 2:3] * wpos_ref[2:3, :])                      # [tm, cp]
    # baseop == 'cos': packed as [F*cos | F*sin]; both stores 128-lane aligned.
    out_ref[:, :cp] = hn * jnp.cos(pos)
    out_ref[:, cp:] = hn * jnp.sin(pos)


def _recombine_kernel(aggc_ref, aggs_ref, invd_ref, c_ref, wpos_ref, o_ref):
    """out = (agg_cos*cos + agg_sin*sin) * inv_denom  (sin/cos recomputed)."""
    c = c_ref[...]                                              # [tm, 3]
    pos = (c[:, 0:1] * wpos_ref[0:1, :]
           + c[:, 1:2] * wpos_ref[1:2, :]
           + c[:, 2:3] * wpos_ref[2:3, :])                      # [tm, cp]
    o_ref[...] = (aggc_ref[...] * jnp.cos(pos)
                  + aggs_ref[...] * jnp.sin(pos)) * invd_ref[...]


# ----------------------------------------------------------------------------
# pallas_call wrappers (row-tiled, arbitrary N via zero-padded tail tiles)
# ----------------------------------------------------------------------------
def _choose_tile(n, tile_m):
    """Row tile: multiple of 8, no bigger than needed, capped at `tile_m`."""
    return int(min(tile_m, max(8, pl.next_power_of_2(int(n)))))


def _pad_rows(x, n_pad):
    n = x.shape[0]
    if n == n_pad:
        return x
    return jnp.pad(x, ((0, n_pad - n),) + ((0, 0),) * (x.ndim - 1))


def tselk_pointwise(feats, coords3_f, w_pre_t, ln_gamma, ln_beta, w_pos_t,
                    *, inc, cp, tile_m=512):
    N = feats.shape[0]
    tm = _choose_tile(N, tile_m)
    n_pad = pl.cdiv(N, tm) * tm
    feats_p = _pad_rows(feats, n_pad)
    coords_p = _pad_rows(coords3_f, n_pad)

    row = lambda i: (i, 0)
    full = lambda i: (0, 0)
    kernel = functools.partial(_pointwise_kernel, inv_inc=1.0 / float(inc), cp=cp)

    fcs = pl.pallas_call(
        kernel,
        grid=(n_pad // tm,),
        out_shape=jax.ShapeDtypeStruct((n_pad, 2 * cp), jnp.float32),
        in_specs=[
            pl.BlockSpec((tm, cp), row),        # features (padded channels)
            pl.BlockSpec((tm, 3), row),         # coords (x,y,z) float
            pl.BlockSpec((cp, cp), full),       # pre_mix weight^T
            pl.BlockSpec((1, cp), full),        # LN gamma
            pl.BlockSpec((1, cp), full),        # LN beta
            pl.BlockSpec((3, cp), full),        # pos_weight weight^T
        ],
        out_specs=pl.BlockSpec((tm, 2 * cp), row),
        compiler_params=pltpu.CompilerParams(
            dimension_semantics=("parallel",),
            vmem_limit_bytes=_VMEM_LIMIT),
    )(feats_p, coords_p, w_pre_t, ln_gamma, ln_beta, w_pos_t)
    return fcs[:N]


def tselk_recombine(agg_packed, inv_denom, coords3_f, w_pos_t, *, cp, tile_m=512):
    N = agg_packed.shape[0]
    tm = _choose_tile(N, tile_m)
    n_pad = pl.cdiv(N, tm) * tm
    agg_p = _pad_rows(agg_packed, n_pad)
    invd_p = _pad_rows(inv_denom, n_pad)
    coords_p = _pad_rows(coords3_f, n_pad)

    row = lambda i: (i, 0)
    row1 = lambda i: (i, 1)                     # second lane-block (sin half)
    full = lambda i: (0, 0)

    out = pl.pallas_call(
        _recombine_kernel,
        grid=(n_pad // tm,),
        out_shape=jax.ShapeDtypeStruct((n_pad, cp), jnp.float32),
        in_specs=[
            pl.BlockSpec((tm, cp), row),        # agg_cos  (lanes [0, cp))
            pl.BlockSpec((tm, cp), row1),       # agg_sin  (lanes [cp, 2cp))
            pl.BlockSpec((tm, 1), row),         # 1 / denom
            pl.BlockSpec((tm, 3), row),         # coords
            pl.BlockSpec((3, cp), full),        # pos_weight weight^T
        ],
        out_specs=pl.BlockSpec((tm, cp), row),
        compiler_params=pltpu.CompilerParams(
            dimension_semantics=("parallel",),
            vmem_limit_bytes=_VMEM_LIMIT),
    )(agg_p, agg_p, invd_p, coords_p, w_pos_t)
    return out[:N]


# ----------------------------------------------------------------------------
# Sparse-hash glue (large_to_small / small_to_large_v2 index logic), in numpy.
# Produces:
#   idx        [N]      small-voxel index per large voxel
#   nbr        [M, 27]  neighbour small-voxel indices (missing -> M, a dummy)
#   inv_denom  [N, 1]   1 / (sum of counts over valid 27-neighbourhood),
#                        gathered back per large row (denom >= 1 always).
# ----------------------------------------------------------------------------
def build_sparse_tables(coords_ts, stride):
    c = np.asarray(coords_ts, dtype=np.int64)                  # [N,4] = [x,y,z,b]
    small_all = np.concatenate([c[:, :3] // stride, c[:, 3:]], axis=1)
    small_C, idx = np.unique(small_all, axis=0, return_inverse=True)
    idx = idx.astype(np.int32)
    M = small_C.shape[0]
    counts = np.bincount(idx, minlength=M).astype(np.float32)  # F.spcount
    assert np.all(counts > 0)

    lut = {tuple(row): m for m, row in enumerate(small_C)}
    # get_kernel_offsets(kernel_size=3, stride=1, dilation=1)
    offs = [(dx, dy, dz) for dx in (-1, 0, 1) for dy in (-1, 0, 1) for dz in (-1, 0, 1)]
    nbr = np.full((M, 27), M, dtype=np.int32)                  # M == "missing"
    denom = np.zeros((M,), dtype=np.float32)
    for m in range(M):
        x, y, z, b = small_C[m]
        for k, (dx, dy, dz) in enumerate(offs):
            j = lut.get((x + dx, y + dy, z + dz, b), -1)       # sphashquery
            if j >= 0:
                nbr[m, k] = j
                denom[m] += counts[j]

    inv_denom_large = (1.0 / denom)[idx].astype(np.float32)[:, None]   # [N,1]
    return idx, nbr, inv_denom_large, M


# ----------------------------------------------------------------------------
# Full forward (host index build + Pallas hot paths + fused XLA index plumbing)
# ----------------------------------------------------------------------------
def tselk_block_forward(feats, coords_ts, params, stride, *, tile_m=512):
    coords_np = np.asarray(coords_ts)
    N, inc = feats.shape
    cp = 128 * ((inc + 127) // 128)                            # lane-dense channels

    # Host-side sparse-hash glue (sphash / unique / sphashquery / spcount).
    idx_np, nbr_np, inv_denom_np, M = build_sparse_tables(coords_np, stride)

    # Zero-pad channel axis to cp lanes (params + features).
    feats_c = jnp.pad(jnp.asarray(feats, jnp.float32), ((0, 0), (0, cp - inc)))
    w_pre = jnp.zeros((cp, cp), jnp.float32).at[:inc, :inc].set(params["w_pre_t"])
    w_pos = jnp.zeros((3, cp), jnp.float32).at[:, :inc].set(params["w_pos_t"])
    gamma = jnp.zeros((1, cp), jnp.float32).at[:, :inc].set(params["ln_gamma"])
    beta = jnp.zeros((1, cp), jnp.float32).at[:, :inc].set(params["ln_beta"])
    coords3_f = jnp.asarray(coords_np[:, :3], jnp.float32)

    @jax.jit
    def _device(feats_c, coords3_f, w_pre, gamma, beta, w_pos, idx, nbr, inv_d):
        # Hot path 1: pointwise (Pallas), packed [F*cos | F*sin].
        fcs = tselk_pointwise(feats_c, coords3_f, w_pre, gamma, beta, w_pos,
                              inc=inc, cp=cp, tile_m=tile_m)

        # TODO(synk): the data-dependent scatter-sum pooling, 27-neighbour
        # gather-sum and gather-back are pure index plumbing with no
        # rectangular-tile Pallas equivalent; they run as XLA segment_sum /
        # gather ops inside this jit (O(27*M*C) vs. the dense O(N^2*C) fold).
        p = jax.ops.segment_sum(fcs, idx, num_segments=M)       # spvoxelize*counts
        p = jnp.pad(p, ((0, 1), (0, 0)))                        # dummy row: missing
        q = jnp.take(p, nbr[:, 0], axis=0)                      # 27-neighbour sum,
        for k in range(1, 27):                                  # no (M,27,C) blowup
            q = q + jnp.take(p, nbr[:, k], axis=0)
        agg = jnp.take(q, idx, axis=0)                          # gather back by idx

        # Hot path 2: normalize + cos/sin recombination (Pallas).
        out = tselk_recombine(agg, inv_d, coords3_f, w_pos, cp=cp, tile_m=tile_m)
        return out[:, :inc]

    return _device(feats_c, coords3_f, w_pre, gamma, beta, w_pos,
                   jnp.asarray(idx_np), jnp.asarray(nbr_np),
                   jnp.asarray(inv_denom_np))


# ----------------------------------------------------------------------------
# Pure numpy reference (mirrors the PyTorch forward_ with baseop='cos'),
# using the dense fold — only viable at toy N, independent of the device path.
# ----------------------------------------------------------------------------
def reference_forward(feats, coords_ts, params, stride):
    f = np.asarray(feats, np.float32)
    N, inc = f.shape
    h = f @ np.asarray(params["w_pre_t"])
    mu = h.mean(-1, keepdims=True)
    var = ((h - mu) ** 2).mean(-1, keepdims=True)
    hn = (h - mu) / np.sqrt(var + 1e-6)
    hn = hn * np.asarray(params["ln_gamma"]) + np.asarray(params["ln_beta"])
    pos = np.asarray(coords_ts)[:, :3].astype(np.float32) @ np.asarray(params["w_pos_t"])
    s, co = np.sin(pos), np.cos(pos)
    Fw = np.concatenate([hn * co, hn * s], axis=1)

    c = np.asarray(coords_ts, dtype=np.int64)
    small_all = np.concatenate([c[:, :3] // stride, c[:, 3:]], axis=1)
    small_C, idx = np.unique(small_all, axis=0, return_inverse=True)
    M = small_C.shape[0]
    lut = {tuple(row): m for m, row in enumerate(small_C)}
    offs = [(dx, dy, dz) for dx in (-1, 0, 1) for dy in (-1, 0, 1) for dz in (-1, 0, 1)]
    A = np.zeros((M, M), np.float32)
    for m in range(M):
        x, y, z, b = small_C[m]
        for dx, dy, dz in offs:
            j = lut.get((x + dx, y + dy, z + dz, b), -1)
            if j >= 0:
                A[m, j] = 1.0
    S = np.zeros((M, N), np.float32); S[idx, np.arange(N)] = 1.0
    G = np.zeros((N, M), np.float32); G[np.arange(N), idx] = 1.0
    W = G @ A @ S
    denom = W.sum(axis=1, keepdims=True)
    agg = (W @ Fw) / denom
    return agg[:, :inc] * co + agg[:, inc:] * s


# ----------------------------------------------------------------------------
if __name__ == "__main__":
    key = jax.random.PRNGKey(0)
    N, inc, stride = 64, 32, 2
    batch_size, extent = 2, 16

    # Unique voxel coordinates: pick N cells of a (batch, x, y, z) grid.
    k_perm, k_feat, k_wpre, k_wpos, k_g, k_b = jax.random.split(key, 6)
    lin = np.asarray(jax.random.permutation(k_perm, batch_size * extent ** 3))[:N]
    b = lin // (extent ** 3)
    r = lin % (extent ** 3)
    x = r // (extent ** 2)
    y = (r // extent) % extent
    z = r % extent
    coords_ts = np.stack([x, y, z, b], axis=1).astype(np.int32)   # [N,4] = [x,y,z,batch]

    feats = jax.random.normal(k_feat, (N, inc), dtype=jnp.float32)

    # Deterministic parameter init (nn.Linear weight is [out, in]; store transposed).
    params = {
        "w_pre_t": jax.random.normal(k_wpre, (inc, inc), jnp.float32) / np.sqrt(inc),
        "w_pos_t": jax.random.normal(k_wpos, (3, inc), jnp.float32) / np.sqrt(3.0),
        "ln_gamma": (1.0 + 0.1 * jax.random.normal(k_g, (1, inc), jnp.float32)),
        "ln_beta": 0.1 * jax.random.normal(k_b, (1, inc), jnp.float32),
    }

    out = tselk_block_forward(feats, coords_ts, params, stride)
    out = jax.block_until_ready(out)

    ref = reference_forward(feats, coords_ts, params, stride)
    np.testing.assert_allclose(np.asarray(out), ref, rtol=1e-2, atol=1e-2)

    print("KERNEL_OK")
</pallas_src>

<mosaic_0001>
module attributes {stable_mosaic.version = 11 : i64} {
  func.func @_pointwise_kernel(%arg0: i32, %arg1: memref<64x128xf32, #tpu.memory_space<vmem>>, %arg2: memref<64x3xf32, #tpu.memory_space<vmem>>, %arg3: memref<128x128xf32, #tpu.memory_space<vmem>>, %arg4: memref<1x128xf32, #tpu.memory_space<vmem>>, %arg5: memref<1x128xf32, #tpu.memory_space<vmem>>, %arg6: memref<3x128xf32, #tpu.memory_space<vmem>>, %arg7: memref<64x256xf32, #tpu.memory_space<vmem>>) attributes {dimension_semantics = [#tpu.dimension_semantics<parallel>], iteration_bounds = array<i64: 1>, scalar_prefetch = 0 : i64, scratch_operands = 0 : i64, tpu.core_type = #tpu.core_type<tc>, window_params = [{transform_indices = @transform_0, window_bounds = array<i64: 64, 128>}, {transform_indices = @transform_1, window_bounds = array<i64: 64, 3>}, {pipeline_mode = #tpu.pipeline_mode<synchronous>, transform_indices = @transform_2, window_bounds = array<i64: 128, 128>}, {pipeline_mode = #tpu.pipeline_mode<synchronous>, transform_indices = @transform_3, window_bounds = array<i64: 1, 128>}, {pipeline_mode = #tpu.pipeline_mode<synchronous>, transform_indices = @transform_4, window_bounds = array<i64: 1, 128>}, {pipeline_mode = #tpu.pipeline_mode<synchronous>, transform_indices = @transform_5, window_bounds = array<i64: 3, 128>}, {transform_indices = @transform_6, window_bounds = array<i64: 64, 256>}]} {
    %c0 = arith.constant 0 : index
    %c0_0 = arith.constant 0 : index
    %0 = vector.load %arg1[%c0, %c0_0] : memref<64x128xf32, #tpu.memory_space<vmem>>, vector<64x128xf32>
    %c0_1 = arith.constant 0 : index
    %c0_2 = arith.constant 0 : index
    %1 = vector.load %arg3[%c0_1, %c0_2] : memref<128x128xf32, #tpu.memory_space<vmem>>, vector<128x128xf32>
    %cst = arith.constant dense<0.000000e+00> : vector<64x128xf32>
    %2 = tpu.matmul %0, %1, %cst {dimension_numbers = #tpu.dot_dimension_numbers<[1], [0], [0], [1], [0, 0, 1, 1], [], []>} : vector<64x128xf32>, vector<128x128xf32>, vector<64x128xf32> -> vector<64x128xf32>
    %cst_3 = arith.constant dense<0.000000e+00> : vector<64xf32>
    %3 = vector.multi_reduction <add>, %2, %cst_3 [1] : vector<64x128xf32> to vector<64xf32>
    %4 = vector.shape_cast %3 : vector<64xf32> to vector<64x1xf32>
    %cst_4 = arith.constant 3.125000e-02 : f32
    %5 = vector.broadcast %cst_4 : f32 to vector<64x1xf32>
    %6 = arith.mulf %4, %5 : vector<64x1xf32>
    %7 = arith.mulf %2, %2 : vector<64x128xf32>
    %cst_5 = arith.constant dense<0.000000e+00> : vector<64xf32>
    %8 = vector.multi_reduction <add>, %7, %cst_5 [1] : vector<64x128xf32> to vector<64xf32>
    %9 = vector.shape_cast %8 : vector<64xf32> to vector<64x1xf32>
    %cst_6 = arith.constant 3.125000e-02 : f32
    %10 = vector.broadcast %cst_6 : f32 to vector<64x1xf32>
    %11 = arith.mulf %9, %10 : vector<64x1xf32>
    %12 = arith.mulf %6, %6 : vector<64x1xf32>
    %13 = arith.subf %11, %12 : vector<64x1xf32>
    %14 = vector.broadcast %6 : vector<64x1xf32> to vector<64x128xf32>
    %15 = arith.subf %2, %14 : vector<64x128xf32>
    %cst_7 = arith.constant 9.99999997E-7 : f32
    %16 = vector.broadcast %cst_7 : f32 to vector<64x1xf32>
    %17 = arith.addf %13, %16 : vector<64x1xf32>
    %18 = math.rsqrt %17 : vector<64x1xf32>
    %19 = vector.broadcast %18 : vector<64x1xf32> to vector<64x128xf32>
    %20 = arith.mulf %15, %19 : vector<64x128xf32>
    %c0_8 = arith.constant 0 : index
    %c0_9 = arith.constant 0 : index
    %21 = vector.load %arg4[%c0_8, %c0_9] : memref<1x128xf32, #tpu.memory_space<vmem>>, vector<1x128xf32>
    %22 = vector.broadcast %21 : vector<1x128xf32> to vector<64x128xf32>
    %23 = arith.mulf %20, %22 : vector<64x128xf32>
    %c0_10 = arith.constant 0 : index
    %c0_11 = arith.constant 0 : index
    %24 = vector.load %arg5[%c0_10, %c0_11] : memref<1x128xf32, #tpu.memory_space<vmem>>, vector<1x128xf32>
    %25 = vector.broadcast %24 : vector<1x128xf32> to vector<64x128xf32>
    %26 = arith.addf %23, %25 : vector<64x128xf32>
    %c0_12 = arith.constant 0 : index
    %c0_13 = arith.constant 0 : index
    %27 = vector.load %arg2[%c0_12, %c0_13] : memref<64x3xf32, #tpu.memory_space<vmem>>, vector<64x3xf32>
    %28 = vector.extract_strided_slice %27 {offsets = [0, 0], sizes = [64, 1], strides = [1, 1]} : vector<64x3xf32> to vector<64x1xf32>
    %c0_14 = arith.constant 0 : index
    %c0_15 = arith.constant 0 : index
    %29 = vector.load %arg6[%c0_14, %c0_15] : memref<3x128xf32, #tpu.memory_space<vmem>>, vector<1x128xf32>
    %30 = vector.broadcast %28 : vector<64x1xf32> to vector<64x128xf32>
    %31 = vector.broadcast %29 : vector<1x128xf32> to vector<64x128xf32>
    %32 = arith.mulf %30, %31 : vector<64x128xf32>
    %33 = vector.extract_strided_slice %27 {offsets = [0, 1], sizes = [64, 1], strides = [1, 1]} : vector<64x3xf32> to vector<64x1xf32>
    %c1 = arith.constant 1 : index
    %c0_16 = arith.constant 0 : index
    %34 = vector.load %arg6[%c1, %c0_16] : memref<3x128xf32, #tpu.memory_space<vmem>>, vector<1x128xf32>
    %35 = vector.broadcast %33 : vector<64x1xf32> to vector<64x128xf32>
    %36 = vector.broadcast %34 : vector<1x128xf32> to vector<64x128xf32>
    %37 = arith.mulf %35, %36 : vector<64x128xf32>
    %38 = arith.addf %32, %37 : vector<64x128xf32>
    %39 = vector.extract_strided_slice %27 {offsets = [0, 2], sizes = [64, 1], strides = [1, 1]} : vector<64x3xf32> to vector<64x1xf32>
    %c2 = arith.constant 2 : index
    %c0_17 = arith.constant 0 : index
    %40 = vector.load %arg6[%c2, %c0_17] : memref<3x128xf32, #tpu.memory_space<vmem>>, vector<1x128xf32>
    %41 = vector.broadcast %39 : vector<64x1xf32> to vector<64x128xf32>
    %42 = vector.broadcast %40 : vector<1x128xf32> to vector<64x128xf32>
    %43 = arith.mulf %41, %42 : vector<64x128xf32>
    %44 = arith.addf %38, %43 : vector<64x128xf32>
    %45 = math.cos %44 : vector<64x128xf32>
    %46 = arith.mulf %26, %45 : vector<64x128xf32>
    %c0_18 = arith.constant 0 : index
    %c0_19 = arith.constant 0 : index
    %47 = vector.load %arg7[%c0_18, %c0_19] : memref<64x256xf32, #tpu.memory_space<vmem>>, vector<64x128xf32>
    tpu.vector_store %arg7[%c0_18, %c0_19], %46 {strides = array<i32>} : memref<64x256xf32, #tpu.memory_space<vmem>>, vector<64x128xf32>,
    %48 = math.sin %44 : vector<64x128xf32>
    %49 = arith.mulf %26, %48 : vector<64x128xf32>
    %c0_20 = arith.constant 0 : index
    %c128 = arith.constant 128 : index
    %50 = vector.load %arg7[%c0_20, %c128] : memref<64x256xf32, #tpu.memory_space<vmem>>, vector<64x128xf32>
    tpu.vector_store %arg7[%c0_20, %c128], %49 {strides = array<i32>} : memref<64x256xf32, #tpu.memory_space<vmem>>, vector<64x128xf32>,
    return
  }
  func.func @transform_0(%arg0: i32) -> (i32, i32) {
    %c0_i32 = arith.constant 0 : i32
    %c0_i32_0 = arith.constant 0 : i32
    return %arg0, %c0_i32 : i32, i32
  }
  func.func @transform_1(%arg0: i32) -> (i32, i32) {
    %c0_i32 = arith.constant 0 : i32
    %c0_i32_0 = arith.constant 0 : i32
    return %arg0, %c0_i32 : i32, i32
  }
  func.func @transform_2(%arg0: i32) -> (i32, i32) {
    %c0_i32 = arith.constant 0 : i32
    %c0_i32_0 = arith.constant 0 : i32
    %c0_i32_1 = arith.constant 0 : i32
    return %c0_i32, %c0_i32_0 : i32, i32
  }
  func.func @transform_3(%arg0: i32) -> (i32, i32) {
    %c0_i32 = arith.constant 0 : i32
    %c0_i32_0 = arith.constant 0 : i32
    %c0_i32_1 = arith.constant 0 : i32
    return %c0_i32, %c0_i32_0 : i32, i32
  }
  func.func @transform_4(%arg0: i32) -> (i32, i32) {
    %c0_i32 = arith.constant 0 : i32
    %c0_i32_0 = arith.constant 0 : i32
    %c0_i32_1 = arith.constant 0 : i32
    return %c0_i32, %c0_i32_0 : i32, i32
  }
  func.func @transform_5(%arg0: i32) -> (i32, i32) {
    %c0_i32 = arith.constant 0 : i32
    %c0_i32_0 = arith.constant 0 : i32
    %c0_i32_1 = arith.constant 0 : i32
    return %c0_i32, %c0_i32_0 : i32, i32
  }
  func.func @transform_6(%arg0: i32) -> (i32, i32) {
    %c0_i32 = arith.constant 0 : i32
    %c0_i32_0 = arith.constant 0 : i32
    return %arg0, %c0_i32 : i32, i32
  }
}

module attributes {stable_mosaic.version = 11 : i64} {
  func.func @_recombine_kernel(%arg0: i32, %arg1: memref<64x128xf32, #tpu.memory_space<vmem>>, %arg2: memref<64x128xf32, #tpu.memory_space<vmem>>, %arg3: memref<64x1xf32, #tpu.memory_space<vmem>>, %arg4: memref<64x3xf32, #tpu.memory_space<vmem>>, %arg5: memref<3x128xf32, #tpu.memory_space<vmem>>, %arg6: memref<64x128xf32, #tpu.memory_space<vmem>>) attributes {dimension_semantics = [#tpu.dimension_semantics<parallel>], iteration_bounds = array<i64: 1>, scalar_prefetch = 0 : i64, scratch_operands = 0 : i64, tpu.core_type = #tpu.core_type<tc>, window_params = [{transform_indices = @transform_0, window_bounds = array<i64: 64, 128>}, {transform_indices = @transform_1, window_bounds = array<i64: 64, 128>}, {transform_indices = @transform_2, window_bounds = array<i64: 64, 1>}, {transform_indices = @transform_3, window_bounds = array<i64: 64, 3>}, {pipeline_mode = #tpu.pipeline_mode<synchronous>, transform_indices = @transform_4, window_bounds = array<i64: 3, 128>}, {transform_indices = @transform_5, window_bounds = array<i64: 64, 128>}]} {
    %c0 = arith.constant 0 : index
    %c0_0 = arith.constant 0 : index
    %0 = vector.load %arg4[%c0, %c0_0] : memref<64x3xf32, #tpu.memory_space<vmem>>, vector<64x3xf32>
    %1 = vector.extract_strided_slice %0 {offsets = [0, 0], sizes = [64, 1], strides = [1, 1]} : vector<64x3xf32> to vector<64x1xf32>
    %c0_1 = arith.constant 0 : index
    %c0_2 = arith.constant 0 : index
    %2 = vector.load %arg5[%c0_1, %c0_2] : memref<3x128xf32, #tpu.memory_space<vmem>>, vector<1x128xf32>
    %3 = vector.broadcast %1 : vector<64x1xf32> to vector<64x128xf32>
    %4 = vector.broadcast %2 : vector<1x128xf32> to vector<64x128xf32>
    %5 = arith.mulf %3, %4 : vector<64x128xf32>
    %6 = vector.extract_strided_slice %0 {offsets = [0, 1], sizes = [64, 1], strides = [1, 1]} : vector<64x3xf32> to vector<64x1xf32>
    %c1 = arith.constant 1 : index
    %c0_3 = arith.constant 0 : index
    %7 = vector.load %arg5[%c1, %c0_3] : memref<3x128xf32, #tpu.memory_space<vmem>>, vector<1x128xf32>
    %8 = vector.broadcast %6 : vector<64x1xf32> to vector<64x128xf32>
    %9 = vector.broadcast %7 : vector<1x128xf32> to vector<64x128xf32>
    %10 = arith.mulf %8, %9 : vector<64x128xf32>
    %11 = arith.addf %5, %10 : vector<64x128xf32>
    %12 = vector.extract_strided_slice %0 {offsets = [0, 2], sizes = [64, 1], strides = [1, 1]} : vector<64x3xf32> to vector<64x1xf32>
    %c2 = arith.constant 2 : index
    %c0_4 = arith.constant 0 : index
    %13 = vector.load %arg5[%c2, %c0_4] : memref<3x128xf32, #tpu.memory_space<vmem>>, vector<1x128xf32>
    %14 = vector.broadcast %12 : vector<64x1xf32> to vector<64x128xf32>
    %15 = vector.broadcast %13 : vector<1x128xf32> to vector<64x128xf32>
    %16 = arith.mulf %14, %15 : vector<64x128xf32>
    %17 = arith.addf %11, %16 : vector<64x128xf32>
    %c0_5 = arith.constant 0 : index
    %c0_6 = arith.constant 0 : index
    %18 = vector.load %arg1[%c0_5, %c0_6] : memref<64x128xf32, #tpu.memory_space<vmem>>, vector<64x128xf32>
    %19 = math.cos %17 : vector<64x128xf32>
    %20 = arith.mulf %18, %19 : vector<64x128xf32>
    %c0_7 = arith.constant 0 : index
    %c0_8 = arith.constant 0 : index
    %21 = vector.load %arg2[%c0_7, %c0_8] : memref<64x128xf32, #tpu.memory_space<vmem>>, vector<64x128xf32>
    %22 = math.sin %17 : vector<64x128xf32>
    %23 = arith.mulf %21, %22 : vector<64x128xf32>
    %24 = arith.addf %20, %23 : vector<64x128xf32>
    %c0_9 = arith.constant 0 : index
    %c0_10 = arith.constant 0 : index
    %25 = vector.load %arg3[%c0_9, %c0_10] : memref<64x1xf32, #tpu.memory_space<vmem>>, vector<64x1xf32>
    %26 = vector.broadcast %25 : vector<64x1xf32> to vector<64x128xf32>
    %27 = arith.mulf %24, %26 : vector<64x128xf32>
    %c0_11 = arith.constant 0 : index
    %c0_12 = arith.constant 0 : index
    %28 = vector.load %arg6[%c0_11, %c0_12] : memref<64x128xf32, #tpu.memory_space<vmem>>, vector<64x128xf32>
    tpu.vector_store %arg6[%c0_11, %c0_12], %27 {strides = array<i32>} : memref<64x128xf32, #tpu.memory_space<vmem>>, vector<64x128xf32>,
    return
  }
  func.func @transform_0(%arg0: i32) -> (i32, i32) {
    %c0_i32 = arith.constant 0 : i32
    %c0_i32_0 = arith.constant 0 : i32
    return %arg0, %c0_i32 : i32, i32
  }
  func.func @transform_1(%arg0: i32) -> (i32, i32) {
    %c1_i32 = arith.constant 1 : i32
    %c0_i32 = arith.constant 0 : i32
    return %arg0, %c1_i32 : i32, i32
  }
  func.func @transform_2(%arg0: i32) -> (i32, i32) {
    %c0_i32 = arith.constant 0 : i32
    %c0_i32_0 = arith.constant 0 : i32
    return %arg0, %c0_i32 : i32, i32
  }
  func.func @transform_3(%arg0: i32) -> (i32, i32) {
    %c0_i32 = arith.constant 0 : i32
    %c0_i32_0 = arith.constant 0 : i32
    return %arg0, %c0_i32 : i32, i32
  }
  func.func @transform_4(%arg0: i32) -> (i32, i32) {
    %c0_i32 = arith.constant 0 : i32
    %c0_i32_0 = arith.constant 0 : i32
    %c0_i32_1 = arith.constant 0 : i32
    return %c0_i32, %c0_i32_0 : i32, i32
  }
  func.func @transform_5(%arg0: i32) -> (i32, i32) {
    %c0_i32 = arith.constant 0 : i32
    %c0_i32_0 = arith.constant 0 : i32
    return %arg0, %c0_i32 : i32, i32
  }
}

</mosaic_0001>

<llo_original>
// kernel: _device.2
$region0: #{_device.2}
  #allocation0 [shape = 'u32[]', space=smem, size = 0x4, offset = 0x4, fixed_abs, tag = 'smem constant byte address 0x4 - core index']
  #allocation1 [shape = 'u32[144,128]{1,0:T(1,128)}', space=vmem, size = 0x12000, scoped, tag = 'internal scratch']
  %s0 = inlined_call_operand.hbm [shape: f32[64,128], index: 0, kind: input, shape index: {}]
  %s1 = inlined_call_operand.vmem [shape: f32[64,3], index: 1, kind: input, shape index: {}]
  %s2 = inlined_call_operand.vmem [shape: f32[128,128], index: 2, kind: input, shape index: {}]
  %s3 = inlined_call_operand.vmem [shape: f32[1,128], index: 3, kind: input, shape index: {}]
  %s4 = inlined_call_operand.vmem [shape: f32[1,128], index: 4, kind: input, shape index: {}]
  %s5 = inlined_call_operand.vmem [shape: f32[3,128], index: 5, kind: input, shape index: {}]
  %s6 = inlined_call_operand.vmem [shape: f32[64,256], index: 6, kind: output, shape index: {}]
  %s7 = sld [smem:[#allocation0]]
  $region38: #{_device.2} parent=0
    _
  %s9 = ssub.s32 1, %s7
  %s10 = scalar_select 0, %s9, %s7
  $region1: #{_device.2} parent=0
    #allocation2 [shape = 'u8[32768]{0}', space=vmem, size = 0x8000, scoped, tag = 'input window, operand 0, single buffered']
    #allocation3 [shape = 's32[1]{0}', space=sflag, size = 0x4, scoped, tag = 'scoped memory for _device.2']
    %11 = vsyncpa [#allocation3], 0
    // Predicated region
    $region2: #{_device.2} parent=1 // pred_check
      _
    $region3: #{_device.2} parent=1 // pred_check_branch
      %13 = sbr.rel (0) target = $region5
    $region4: #{_device.2} parent=1 // pred_region
      %s15 = ssub.s32 1024, 1024
      %16 = vsyncadd [#allocation3], %s15
      %s17 = sshll.u32 [#allocation2], 4
      %s18 = int_to_ptr.vmem [resolvable:$true] %s17
      %23 = dma.hbm_to_vmem [thread:$0]  %s0, 1024, %s18, [#allocation3], 128, 128, 8
    $region5: #{_device.2} parent=1 // pred_fallthru
      _
    // Predicated region
    $region6: #{_device.2} parent=1 // pred_check
      _
    $region7: #{_device.2} parent=1 // pred_check_branch
      %25 = sbr.rel (0) target = $region9
    $region8: #{_device.2} parent=1 // pred_region
      _
    $region9: #{_device.2} parent=1 // pred_fallthru
      _
    // Predicated region
    $region10: #{_device.2} parent=1 // pred_check
      _
    $region11: #{_device.2} parent=1 // pred_check_branch
      %27 = sbr.rel (0) target = $region13
    $region12: #{_device.2} parent=1 // pred_region
      _
    $region13: #{_device.2} parent=1 // pred_fallthru
      _
    // Predicated region
    $region14: #{_device.2} parent=1 // pred_check
      _
    $region15: #{_device.2} parent=1 // pred_check_branch
      %29 = sbr.rel (0) target = $region17
    $region16: #{_device.2} parent=1 // pred_region
      _
    $region17: #{_device.2} parent=1 // pred_fallthru
      _
    // Predicated region
    $region18: #{_device.2} parent=1 // pred_check
      _
    $region19: #{_device.2} parent=1 // pred_check_branch
      %31 = sbr.rel (0) target = $region21
    $region20: #{_device.2} parent=1 // pred_region
      _
    $region21: #{_device.2} parent=1 // pred_fallthru
      _
    // Predicated region
    $region22: #{_device.2} parent=1 // pred_check
      _
    $region23: #{_device.2} parent=1 // pred_check_branch
      %33 = sbr.rel (0) target = $region25
    $region24: #{_device.2} parent=1 // pred_region
      _
    $region25: #{_device.2} parent=1 // pred_fallthru
      _
    // Predicated region
    $region26: #{_device.2} parent=1 // pred_check
      _
    $region27: #{_device.2} parent=1 // pred_check_branch
      %35 = sbr.rel (0) target = $region29
    $region28: #{_device.2} parent=1 // pred_region
      %36 = dma.done [#allocation3], 1024
    $region29: #{_device.2} parent=1 // pred_fallthru
      _
    %v37 = vld [vmem:[#allocation2] sm:$0xff]
    %v38 = vld [vmem:[#allocation2 + $0x8] sm:$0xff]
    %v39 = vld [vmem:[#allocation2 + $0x10] sm:$0xff]
    %v40 = vld [vmem:[#allocation2 + $0x18] sm:$0xff]
    %v41 = vld [vmem:[#allocation2 + $0x20] sm:$0xff]
    %v42 = vld [vmem:[#allocation2 + $0x28] sm:$0xff]
    %v43 = vld [vmem:[#allocation2 + $0x30] sm:$0xff]
    %v44 = vld [vmem:[#allocation2 + $0x38] sm:$0xff]
    %v45 = vld [vmem:[%s2] sm:$0xff]
    %v46 = vld [vmem:[%s2 + $0x8] sm:$0xff]
    %v47 = vld [vmem:[%s2 + $0x10] sm:$0xff]
    %v48 = vld [vmem:[%s2 + $0x18] sm:$0xff]
    %v49 = vld [vmem:[%s2 + $0x20] sm:$0xff]
    %v50 = vld [vmem:[%s2 + $0x28] sm:$0xff]
    %v51 = vld [vmem:[%s2 + $0x30] sm:$0xff]
    %v52 = vld [vmem:[%s2 + $0x38] sm:$0xff]
    %v53 = vld [vmem:[%s2 + $0x40] sm:$0xff]
    %v54 = vld [vmem:[%s2 + $0x48] sm:$0xff]
    %v55 = vld [vmem:[%s2 + $0x50] sm:$0xff]
    %v56 = vld [vmem:[%s2 + $0x58] sm:$0xff]
    %v57 = vld [vmem:[%s2 + $0x60] sm:$0xff]
    %v58 = vld [vmem:[%s2 + $0x68] sm:$0xff]
    %v59 = vld [vmem:[%s2 + $0x70] sm:$0xff]
    %v60 = vld [vmem:[%s2 + $0x78] sm:$0xff]
    %61 = vmatprep.subr.mxu0 0.0
    %62 = vmatpush1.msra.mxu0 %v45
    %63 = vmatprep.subr.mxu0 0.0
    %64 = vmatpush1.msra.mxu0 %v46
    %65 = vmatprep.subr.mxu0 0.0
    %66 = vmatpush1.msra.mxu0 %v47
    %67 = vmatprep.subr.mxu0 0.0
    %68 = vmatpush1.msra.mxu0 %v48
    %69 = vmatprep.subr.mxu0 0.0
    %70 = vmatpush1.msra.mxu0 %v49
    %71 = vmatprep.subr.mxu0 0.0
    %72 = vmatpush1.msra.mxu0 %v50
    %73 = vmatprep.subr.mxu0 0.0
    %74 = vmatpush1.msra.mxu0 %v51
    %75 = vmatprep.subr.mxu0 0.0
    %76 = vmatpush1.msra.mxu0 %v52
    %77 = vmatprep.subr.mxu0 0.0
    %78 = vmatpush1.msra.mxu0 %v53
    %79 = vmatprep.subr.mxu0 0.0
    %80 = vmatpush1.msra.mxu0 %v54
    %81 = vmatprep.subr.mxu0 0.0
    %82 = vmatpush1.msra.mxu0 %v55
    %83 = vmatprep.subr.mxu0 0.0
    %84 = vmatpush1.msra.mxu0 %v56
    %85 = vmatprep.subr.mxu0 0.0
    %86 = vmatpush1.msra.mxu0 %v57
    %87 = vmatprep.subr.mxu0 0.0
    %88 = vmatpush1.msra.mxu0 %v58
    %89 = vmatprep.subr.mxu0 0.0
    %90 = vmatpush1.msra.mxu0 %v59
    %91 = vmatprep.subr.mxu0 0.0
    %92 = vmatpush1.msra.mxu0 %v60
    %93 = vmatprep.subr.mxu0 0.0
    %94 = vmatpush1.msra.mxu0 0.0
    %95 = vmatprep.subr.mxu0 0.0
    %96 = vmatpush1.msra.mxu0 0.0
    %97 = vmatprep.subr.mxu0 0.0
    %98 = vmatpush1.msra.mxu0 0.0
    %99 = vmatprep.subr.mxu0 0.0
    %100 = vmatpush1.msra.mxu0 0.0
    %101 = vmatprep.subr.mxu0 0.0
    %102 = vmatpush1.msra.mxu0 0.0
    %103 = vmatprep.subr.mxu0 0.0
    %104 = vmatpush1.msra.mxu0 0.0
    %105 = vmatprep.subr.mxu0 0.0
    %106 = vmatpush1.msra.mxu0 0.0
    %107 = vmatprep.subr.mxu0 0.0
    %108 = vmatpush1.msra.mxu0 0.0
    %109 = vmatprep.subr.mxu0 0.0
    %110 = vmatpush1.msra.mxu0 0.0
    %111 = vmatprep.subr.mxu0 0.0
    %112 = vmatpush1.msra.mxu0 0.0
    %113 = vmatprep.subr.mxu0 0.0
    %114 = vmatpush1.msra.mxu0 0.0
    %115 = vmatprep.subr.mxu0 0.0
    %116 = vmatpush1.msra.mxu0 0.0
    %117 = vmatprep.subr.mxu0 0.0
    %118 = vmatpush1.msra.mxu0 0.0
    %119 = vmatprep.subr.mxu0 0.0
    %120 = vmatpush1.msra.mxu0 0.0
    %121 = vmatprep.subr.mxu0 0.0
    %122 = vmatpush1.msra.mxu0 0.0
    %123 = vmatprep.subr.mxu0 0.0
    %124 = vmatpush1.msra.mxu0 0.0
    %125 = vmatprep.mubr.f32.mxu0 0.0
    %126 = vmatmul.mubr.f32.gmra.mrb[0].mxu0 %v37
    %v127 = vpop.f32.mrb[0].mxu0
    %v128 = vadd.f32 0.0, %v127
    %v129 = vpop.f32.mrb[0].mxu0
    %130 = vmatprep.mubr.f32.mxu0 0.0
    %131 = vmatmul.mubr.f32.gmra.mrb[0].mxu0 %v38
    %v132 = vpop.f32.mrb[0].mxu0
    %v133 = vadd.f32 0.0, %v132
    %v134 = vpop.f32.mrb[0].mxu0
    %135 = vmatprep.mubr.f32.mxu0 0.0
    %136 = vmatmul.mubr.f32.gmra.mrb[0].mxu0 %v39
    %v137 = vpop.f32.mrb[0].mxu0
    %v138 = vadd.f32 0.0, %v137
    %v139 = vpop.f32.mrb[0].mxu0
    %140 = vmatprep.mubr.f32.mxu0 0.0
    %141 = vmatmul.mubr.f32.gmra.mrb[0].mxu0 %v40
    %v142 = vpop.f32.mrb[0].mxu0
    %v143 = vadd.f32 0.0, %v142
    %v144 = vpop.f32.mrb[0].mxu0
    %145 = vmatprep.mubr.f32.mxu0 0.0
    %146 = vmatmul.mubr.f32.gmra.mrb[0].mxu0 %v41
    %v147 = vpop.f32.mrb[0].mxu0
    %v148 = vadd.f32 0.0, %v147
    %v149 = vpop.f32.mrb[0].mxu0
    %150 = vmatprep.mubr.f32.mxu0 0.0
    %151 = vmatmul.mubr.f32.gmra.mrb[0].mxu0 %v42
    %v152 = vpop.f32.mrb[0].mxu0
    %v153 = vadd.f32 0.0, %v152
    %v154 = vpop.f32.mrb[0].mxu0
    %155 = vmatprep.mubr.f32.mxu0 0.0
    %156 = vmatmul.mubr.f32.gmra.mrb[0].mxu0 %v43
    %v157 = vpop.f32.mrb[0].mxu0
    %v158 = vadd.f32 0.0, %v157
    %v159 = vpop.f32.mrb[0].mxu0
    %160 = vmatprep.mubr.f32.mxu0 0.0
    %161 = vmatmul.mubr.f32.gmra.mrb[0].mxu0 %v44
    %v162 = vpop.f32.mrb[0].mxu0
    %v163 = vadd.f32 0.0, %v162
    %v164 = vpop.f32.mrb[0].mxu0
    %165 = vdwg.mxu0
    %166 = vadd.xlane.f32.xlu0 %v128
    %v167 = vpop.xlane.xlu0 %166
    %168 = vadd.xlane.f32.xlu0 %v133
    %v169 = vpop.xlane.xlu0 %168
    %170 = vadd.xlane.f32.xlu0 %v138
    %v171 = vpop.xlane.xlu0 %170
    %172 = vadd.xlane.f32.xlu0 %v143
    %v173 = vpop.xlane.xlu0 %172
    %174 = vadd.xlane.f32.xlu0 %v148
    %v175 = vpop.xlane.xlu0 %174
    %176 = vadd.xlane.f32.xlu0 %v153
    %v177 = vpop.xlane.xlu0 %176
    %178 = vadd.xlane.f32.xlu0 %v158
    %v179 = vpop.xlane.xlu0 %178
    %180 = vadd.xlane.f32.xlu0 %v163
    %v181 = vpop.xlane.xlu0 %180
    %v182 = vmul.f32 %v167, 0.03125
    %v183 = vmul.f32 %v169, 0.03125
    %v184 = vmul.f32 %v171, 0.03125
    %v185 = vmul.f32 %v173, 0.03125
    %v186 = vmul.f32 %v175, 0.03125
    %v187 = vmul.f32 %v177, 0.03125
    %v188 = vmul.f32 %v179, 0.03125
    %v189 = vmul.f32 %v181, 0.03125
    %v190 = vmul.f32 %v128, %v128
    %v191 = vmul.f32 %v133, %v133
    %v192 = vmul.f32 %v138, %v138
    %v193 = vmul.f32 %v143, %v143
    %v194 = vmul.f32 %v148, %v148
    %v195 = vmul.f32 %v153, %v153
    %v196 = vmul.f32 %v158, %v158
    %v197 = vmul.f32 %v163, %v163
    %198 = vadd.xlane.f32.xlu0 %v190
    %v199 = vpop.xlane.xlu0 %198
    %200 = vadd.xlane.f32.xlu0 %v191
    %v201 = vpop.xlane.xlu0 %200
    %202 = vadd.xlane.f32.xlu0 %v192
    %v203 = vpop.xlane.xlu0 %202
    %204 = vadd.xlane.f32.xlu0 %v193
    %v205 = vpop.xlane.xlu0 %204
    %206 = vadd.xlane.f32.xlu0 %v194
    %v207 = vpop.xlane.xlu0 %206
    %208 = vadd.xlane.f32.xlu0 %v195
    %v209 = vpop.xlane.xlu0 %208
    %210 = vadd.xlane.f32.xlu0 %v196
    %v211 = vpop.xlane.xlu0 %210
    %212 = vadd.xlane.f32.xlu0 %v197
    %v213 = vpop.xlane.xlu0 %212
    %v214 = vmul.f32 %v199, 0.03125
    %v215 = vmul.f32 %v201, 0.03125
    %v216 = vmul.f32 %v203, 0.03125
    %v217 = vmul.f32 %v205, 0.03125
    %v218 = vmul.f32 %v207, 0.03125
    %v219 = vmul.f32 %v209, 0.03125
    %v220 = vmul.f32 %v211, 0.03125
    %v221 = vmul.f32 %v213, 0.03125
    %v222 = vmul.f32 %v182, %v182
    %v223 = vmul.f32 %v183, %v183
    %v224 = vmul.f32 %v184, %v184
    %v225 = vmul.f32 %v185, %v185
    %v226 = vmul.f32 %v186, %v186
    %v227 = vmul.f32 %v187, %v187
    %v228 = vmul.f32 %v188, %v188
    %v229 = vmul.f32 %v189, %v189
    %v230 = vsub.f32 %v214, %v222
    %v231 = vsub.f32 %v215, %v223
    %v232 = vsub.f32 %v216, %v224
    %v233 = vsub.f32 %v217, %v225
    %v234 = vsub.f32 %v218, %v226
    %v235 = vsub.f32 %v219, %v227
    %v236 = vsub.f32 %v220, %v228
    %v237 = vsub.f32 %v221, %v229
    %v238 = vsub.f32 %v128, %v182
    %v239 = vsub.f32 %v133, %v183
    %v240 = vsub.f32 %v138, %v184
    %v241 = vsub.f32 %v143, %v185
    %v242 = vsub.f32 %v148, %v186
    %v243 = vsub.f32 %v153, %v187
    %v244 = vsub.f32 %v158, %v188
    %v245 = vsub.f32 %v163, %v189
    %v246 = vadd.f32 %v230, 1e-06
    %v247 = vadd.f32 %v231, 1e-06
    %v248 = vadd.f32 %v232, 1e-06
    %v249 = vadd.f32 %v233, 1e-06
    %v250 = vadd.f32 %v234, 1e-06
    %v251 = vadd.f32 %v235, 1e-06
    %v252 = vadd.f32 %v236, 1e-06
    %v253 = vadd.f32 %v237, 1e-06
    %v254 = vrsqrt.pop %v246
    %v255 = vrsqrt.pop %v247
    %v256 = vrsqrt.pop %v248
    %v257 = vrsqrt.pop %v249
    %v258 = vrsqrt.pop %v250
    %v259 = vrsqrt.pop %v251
    %v260 = vrsqrt.pop %v252
    %v261 = vrsqrt.pop %v253
    %v262 = vmul.f32 %v238, %v254
    %v263 = vmul.f32 %v239, %v255
    %v264 = vmul.f32 %v240, %v256
    %v265 = vmul.f32 %v241, %v257
    %v266 = vmul.f32 %v242, %v258
    %v267 = vmul.f32 %v243, %v259
    %v268 = vmul.f32 %v244, %v260
    %v269 = vmul.f32 %v245, %v261
    %v270 = vld [vmem:[%s3] sm:$0x1]
    %v272 = vlaneseq
    %v273 = vshrl.u32 %v272, 7
    %v274 = vsub.s32 0, %v273
    %v275 = vrot.slane %v270, %v274
    %v277 = vmul.f32 %v262, %v275
    %v278 = vmul.f32 %v263, %v275
    %v279 = vmul.f32 %v264, %v275
    %v280 = vmul.f32 %v265, %v275
    %v281 = vmul.f32 %v266, %v275
    %v282 = vmul.f32 %v267, %v275
    %v283 = vmul.f32 %v268, %v275
    %v284 = vmul.f32 %v269, %v275
    %v285 = vld [vmem:[%s4] sm:$0x1]
    %v287 = vlaneseq
    %v288 = vshrl.u32 %v287, 7
    %v289 = vsub.s32 0, %v288
    %v290 = vrot.slane %v285, %v289
    %v292 = vadd.f32 %v277, %v290
    %v293 = vadd.f32 %v278, %v290
    %v294 = vadd.f32 %v279, %v290
    %v295 = vadd.f32 %v280, %v290
    %v296 = vadd.f32 %v281, %v290
    %v297 = vadd.f32 %v282, %v290
    %v298 = vadd.f32 %v283, %v290
    %v299 = vadd.f32 %v284, %v290
    %v300 = vld [vmem:[%s1] sm:$0xff]
    %v301 = vld [vmem:[%s1 + $0x8] sm:$0xff]
    %v302 = vld [vmem:[%s1 + $0x10] sm:$0xff]
    %v303 = vld [vmem:[%s1 + $0x18] sm:$0xff]
    %v304 = vld [vmem:[%s1 + $0x20] sm:$0xff]
    %v305 = vld [vmem:[%s1 + $0x28] sm:$0xff]
    %v306 = vld [vmem:[%s1 + $0x30] sm:$0xff]
    %v307 = vld [vmem:[%s1 + $0x38] sm:$0xff]
    %v308 = vld [vmem:[%s5] sm:$0x1]
    %310 = vset.pattern.permute.xlu0 0
    %311 = vperm.xlu0 %310, %v300
    %v312 = vpop.permute.xlu0 %311
    %315 = vset.pattern.permute.xlu0 0
    %316 = vperm.xlu0 %315, %v301
    %v317 = vpop.permute.xlu0 %316
    %320 = vset.pattern.permute.xlu0 0
    %321 = vperm.xlu0 %320, %v302
    %v322 = vpop.permute.xlu0 %321
    %325 = vset.pattern.permute.xlu0 0
    %326 = vperm.xlu0 %325, %v303
    %v327 = vpop.permute.xlu0 %326
    %330 = vset.pattern.permute.xlu0 0
    %331 = vperm.xlu0 %330, %v304
    %v332 = vpop.permute.xlu0 %331
    %335 = vset.pattern.permute.xlu0 0
    %336 = vperm.xlu0 %335, %v305
    %v337 = vpop.permute.xlu0 %336
    %340 = vset.pattern.permute.xlu0 0
    %341 = vperm.xlu0 %340, %v306
    %v342 = vpop.permute.xlu0 %341
    %345 = vset.pattern.permute.xlu0 0
    %346 = vperm.xlu0 %345, %v307
    %v347 = vpop.permute.xlu0 %346
    %v349 = vlaneseq
    %v350 = vshrl.u32 %v349, 7
    %v351 = vsub.s32 0, %v350
    %v352 = vrot.slane %v308, %v351
    %v353 = vmul.f32 %v312, %v352
    %v354 = vmul.f32 %v317, %v352
    %v355 = vmul.f32 %v322, %v352
    %v356 = vmul.f32 %v327, %v352
    %v357 = vmul.f32 %v332, %v352
    %v358 = vmul.f32 %v337, %v352
    %v359 = vmul.f32 %v342, %v352
    %v360 = vmul.f32 %v347, %v352
    %v361 = vld [vmem:[%s5 + $0x1] sm:$0x1]
    %362 = vset.pattern.permute.xlu0 1
    %363 = vperm.xlu0 %362, %v300
    %v364 = vpop.permute.xlu0 %363
    %366 = vset.pattern.permute.xlu0 1
    %367 = vperm.xlu0 %366, %v301
    %v368 = vpop.permute.xlu0 %367
    %370 = vset.pattern.permute.xlu0 1
    %371 = vperm.xlu0 %370, %v302
    %v372 = vpop.permute.xlu0 %371
    %374 = vset.pattern.permute.xlu0 1
    %375 = vperm.xlu0 %374, %v303
    %v376 = vpop.permute.xlu0 %375
    %378 = vset.pattern.permute.xlu0 1
    %379 = vperm.xlu0 %378, %v304
    %v380 = vpop.permute.xlu0 %379
    %382 = vset.pattern.permute.xlu0 1
    %383 = vperm.xlu0 %382, %v305
    %v384 = vpop.permute.xlu0 %383
    %386 = vset.pattern.permute.xlu0 1
    %387 = vperm.xlu0 %386, %v306
    %v388 = vpop.permute.xlu0 %387
    %390 = vset.pattern.permute.xlu0 1
    %391 = vperm.xlu0 %390, %v307
    %v392 = vpop.permute.xlu0 %391
    %v394 = vlaneseq
    %v395 = vshrl.u32 %v394, 7
    %v396 = vsub.s32 0, %v395
    %v397 = vrot.slane %v361, %v396
    %v398 = vmul.f32 %v364, %v397
    %v399 = vmul.f32 %v368, %v397
    %v400 = vmul.f32 %v372, %v397
    %v401 = vmul.f32 %v376, %v397
    %v402 = vmul.f32 %v380, %v397
    %v403 = vmul.f32 %v384, %v397
    %v404 = vmul.f32 %v388, %v397
    %v405 = vmul.f32 %v392, %v397
    %v406 = vadd.f32 %v353, %v398
    %v407 = vadd.f32 %v354, %v399
    %v408 = vadd.f32 %v355, %v400
    %v409 = vadd.f32 %v356, %v401
    %v410 = vadd.f32 %v357, %v402
    %v411 = vadd.f32 %v358, %v403
    %v412 = vadd.f32 %v359, %v404
    %v413 = vadd.f32 %v360, %v405
    %v414 = vld [vmem:[%s5 + $0x2] sm:$0x1]
    %415 = vset.pattern.permute.xlu0 2
    %416 = vperm.xlu0 %415, %v300
    %v417 = vpop.permute.xlu0 %416
    %419 = vset.pattern.permute.xlu0 2
    %420 = vperm.xlu0 %419, %v301
    %v421 = vpop.permute.xlu0 %420
    %423 = vset.pattern.permute.xlu0 2
    %424 = vperm.xlu0 %423, %v302
    %v425 = vpop.permute.xlu0 %424
    %427 = vset.pattern.permute.xlu0 2
    %428 = vperm.xlu0 %427, %v303
    %v429 = vpop.permute.xlu0 %428
    %431 = vset.pattern.permute.xlu0 2
    %432 = vperm.xlu0 %431, %v304
    %v433 = vpop.permute.xlu0 %432
    %435 = vset.pattern.permute.xlu0 2
    %436 = vperm.xlu0 %435, %v305
    %v437 = vpop.permute.xlu0 %436
    %439 = vset.pattern.permute.xlu0 2
    %440 = vperm.xlu0 %439, %v306
    %v441 = vpop.permute.xlu0 %440
    %443 = vset.pattern.permute.xlu0 2
    %444 = vperm.xlu0 %443, %v307
    %v445 = vpop.permute.xlu0 %444
    %v447 = vlaneseq
    %v448 = vshrl.u32 %v447, 7
    %v449 = vsub.s32 0, %v448
    %v450 = vrot.slane %v414, %v449
    %v451 = vmul.f32 %v417, %v450
    %v452 = vmul.f32 %v421, %v450
    %v453 = vmul.f32 %v425, %v450
    %v454 = vmul.f32 %v429, %v450
    %v455 = vmul.f32 %v433, %v450
    %v456 = vmul.f32 %v437, %v450
    %v457 = vmul.f32 %v441, %v450
    %v458 = vmul.f32 %v445, %v450
    %v459 = vadd.f32 %v406, %v451
    %v460 = vadd.f32 %v407, %v452
    %v461 = vadd.f32 %v408, %v453
    %v462 = vadd.f32 %v409, %v454
    %v463 = vadd.f32 %v410, %v455
    %v464 = vadd.f32 %v411, %v456
    %v465 = vadd.f32 %v412, %v457
    %v466 = vadd.f32 %v413, %v458
    %v467 = vand.u32 2147483647, %v459
    %vm468 = vcmp.le.f32.partialorder %v467, 0.7853982
    %vm469 = vcmp.lt.s32.totalorder %v459, 0
    %v470 = vand.u32 %v459, 2139095040
    %v471 = vshrl.u32 %v470, 23
    %v472 = vsub.s32 %v471, 127
    %v473 = vand.u32 2147483647, %v459
    %v474 = vand.u32 %v473, 8388607
    %v475 = vor.u32 %v474, 8388608
    %v476 = vsub.s32 0, %v475
    %v477 = vadd.s32 %v472, 1
    %vm478 = vcmp.gt.s32.totalorder %v477, 0
    %v479 = vsel %vm478, %v477, 0
    %v480 = vshrl.u32 %v479, 5
    %v481 = vand.u32 %v479, 31
    %v482 = vsub.s32 32, %v481
    %v483 = vshrl.u32 683565275, %v482
    %v484 = vshll.u32 683565275, %v481
    %v485 = vshrl.u32 2475754826, %v482
    %v486 = vor.u32 %v484, %v485
    %v487 = vshll.u32 2475754826, %v481
    %v488 = vshrl.u32 2131351028, %v482
    %v489 = vor.u32 %v487, %v488
    %v490 = vshll.u32 2131351028, %v481
    %v491 = vshrl.u32 2102212464, %v482
    %v492 = vor.u32 %v490, %v491
    %v493 = vshll.u32 2102212464, %v481
    %v494 = vshrl.u32 920167782, %v482
    %v495 = vor.u32 %v493, %v494
    %v496 = vshll.u32 920167782, %v481
    %v497 = vshrl.u32 1326507024, %v482
    %v498 = vor.u32 %v496, %v497
    %vm499 = vcmp.lt.s32.totalorder %v480, 1
    %vm500 = vcmp.lt.s32.totalorder %v480, 2
    %vm501 = vcmp.lt.s32.totalorder %v480, 3
    %vm502 = vcmp.lt.s32.totalorder %v480, 4
    %v503 = vsel %vm499, %v483, %v486
    %v504 = vsel %vm502, %v492, 2102212464
    %v505 = vsel %vm501, %v489, %v504
    %v506 = vsel %vm500, %v503, %v505
    %v507 = vsel %vm499, %v486, %v489
    %v508 = vsel %vm502, %v495, 920167782
    %v509 = vsel %vm501, %v492, %v508
    %v510 = vsel %vm500, %v507, %v509
    %v511 = vsel %vm499, %v489, %v492
    %v512 = vsel %vm502, %v498, 1326507024
    %v513 = vsel %vm501, %v495, %v512
    %v514 = vsel %vm500, %v511, %v513
    %v515 = vshll.u32 %v475, 8
    %v516 = vmul.u32.u64.compose %v515, %v514
    %v517 = vextract.low.u32 %v516
    %v518 = vextract.high.u32 %v516
    %v519 = vmul.u32.u64.compose %v515, %v510
    %v520 = vextract.low.u32 %v519
    %v521 = vextract.high.u32 %v519
    %v522 = vmul.u32 %v515, %v506
    %v523 = vadd.s32 %v518, %v520
    %vm524 = vc.u32 %v518, %v520
    %v525 = vadd.s32 %v521, 1
    %v526 = vsel %vm524, %v525, %v521
    %v527 = vadd.s32 %v522, %v526
    %v528 = vadd.s32 %v527, 536870912
    %v529 = vshrl.u32 %v528, 30
    %v530 = vshll.u32 %v529, 30
    %v531 = vsub.s32 %v527, %v530
    %vm532 = vcmp.lt.s32.totalorder %v531, 0
    %v533 = vsub.s32 0, %v531
    %v534 = vsel %vm532, %v533, %v531
    %v535 = vclz %v534
    %v536 = vsub.s32 %v535, 2
    %vm537 = vcmp.gt.s32.totalorder 0, %v536
    %v538 = vsel %vm537, 0, %v536
    %v539 = vsub.s32 32, %v538
    %v540 = vshll.u32 %v531, %v538
    %v541 = vshrl.u32 %v523, %v539
    %v542 = vor.u32 %v540, %v541
    %v543 = vsub.s32 4294967266, %v538
    %v544 = vadd.s32 %v543, 127
    %v545 = vshll.u32 %v544, 23
    %v546 = vor.u32 4788187, %v545
    %v547 = vand.u32 2147483647, %v546
    %v549 = vcvt.s32.f32 %v542
    %v550 = vmul.f32 %v549, %v547
    %v551 = vxor.u32 %v550, 2147483648
    %v552 = vsel %vm469, %v551, %v550
    %v553 = vsub.s32 4, %v529
    %v554 = vsel %vm469, %v553, %v529
    %v555 = vsel %vm468, %v459, %v552
    %v556 = vsel %vm468, 0, %v554
    %v557 = vcosq.f32.pop %v555
    %v558 = vsinq.f32.pop %v555
    %vm559 = vweird.f32 %v459
    %v560 = vand.u32 %v556, 3
    %vm561 = vcmp.lt.s32.totalorder %v560, 2
    %vm562 = vcmp.eq.s32.totalorder %v560, 0
    %v563 = vxor.u32 %v558, 2147483648
    %v564 = vsel %vm562, %v557, %v563
    %vm565 = vcmp.eq.s32.totalorder %v560, 2
    %v566 = vxor.u32 %v557, 2147483648
    %v567 = vsel %vm565, %v566, %v558
    %v568 = vsel %vm561, %v564, %v567
    %v569 = vsel %vm559, nan, %v568
    %v570 = vand.u32 2147483647, %v460
    %vm571 = vcmp.le.f32.partialorder %v570, 0.7853982
    %vm572 = vcmp.lt.s32.totalorder %v460, 0
    %v573 = vand.u32 %v460, 2139095040
    %v574 = vshrl.u32 %v573, 23
    %v575 = vsub.s32 %v574, 127
    %v576 = vand.u32 2147483647, %v460
    %v577 = vand.u32 %v576, 8388607
    %v578 = vor.u32 %v577, 8388608
    %v579 = vsub.s32 0, %v578
    %v580 = vadd.s32 %v575, 1
    %vm581 = vcmp.gt.s32.totalorder %v580, 0
    %v582 = vsel %vm581, %v580, 0
    %v583 = vshrl.u32 %v582, 5
    %v584 = vand.u32 %v582, 31
    %v585 = vsub.s32 32, %v584
    %v586 = vshrl.u32 683565275, %v585
    %v587 = vshll.u32 683565275, %v584
    %v588 = vshrl.u32 2475754826, %v585
    %v589 = vor.u32 %v587, %v588
    %v590 = vshll.u32 2475754826, %v584
    %v591 = vshrl.u32 2131351028, %v585
    %v592 = vor.u32 %v590, %v591
    %v593 = vshll.u32 2131351028, %v584
    %v594 = vshrl.u32 2102212464, %v585
    %v595 = vor.u32 %v593, %v594
    %v596 = vshll.u32 2102212464, %v584
    %v597 = vshrl.u32 920167782, %v585
    %v598 = vor.u32 %v596, %v597
    %v599 = vshll.u32 920167782, %v584
    %v600 = vshrl.u32 1326507024, %v585
    %v601 = vor.u32 %v599, %v600
    %vm602 = vcmp.lt.s32.totalorder %v583, 1
    %vm603 = vcmp.lt.s32.totalorder %v583, 2
    %vm604 = vcmp.lt.s32.totalorder %v583, 3
    %vm605 = vcmp.lt.s32.totalorder %v583, 4
    %v606 = vsel %vm602, %v586, %v589
    %v607 = vsel %vm605, %v595, 2102212464
    %v608 = vsel %vm604, %v592, %v607
    %v609 = vsel %vm603, %v606, %v608
    %v610 = vsel %vm602, %v589, %v592
    %v611 = vsel %vm605, %v598, 920167782
    %v612 = vsel %vm604, %v595, %v611
    %v613 = vsel %vm603, %v610, %v612
    %v614 = vsel %vm602, %v592, %v595
    %v615 = vsel %vm605, %v601, 1326507024
    %v616 = vsel %vm604, %v598, %v615
    %v617 = vsel %vm603, %v614, %v616
    %v618 = vshll.u32 %v578, 8
    %v619 = vmul.u32.u64.compose %v618, %v617
    %v620 = vextract.low.u32 %v619
    %v621 = vextract.high.u32 %v619
    %v622 = vmul.u32.u64.compose %v618, %v613
    %v623 = vextract.low.u32 %v622
    %v624 = vextract.high.u32 %v622
    %v625 = vmul.u32 %v618, %v609
    %v626 = vadd.s32 %v621, %v623
    %vm627 = vc.u32 %v621, %v623
    %v628 = vadd.s32 %v624, 1
    %v629 = vsel %vm627, %v628, %v624
    %v630 = vadd.s32 %v625, %v629
    %v631 = vadd.s32 %v630, 536870912
    %v632 = vshrl.u32 %v631, 30
    %v633 = vshll.u32 %v632, 30
    %v634 = vsub.s32 %v630, %v633
    %vm635 = vcmp.lt.s32.totalorder %v634, 0
    %v636 = vsub.s32 0, %v634
    %v637 = vsel %vm635, %v636, %v634
    %v638 = vclz %v637
    %v639 = vsub.s32 %v638, 2
    %vm640 = vcmp.gt.s32.totalorder 0, %v639
    %v641 = vsel %vm640, 0, %v639
    %v642 = vsub.s32 32, %v641
    %v643 = vshll.u32 %v634, %v641
    %v644 = vshrl.u32 %v626, %v642
    %v645 = vor.u32 %v643, %v644
    %v646 = vsub.s32 4294967266, %v641
    %v647 = vadd.s32 %v646, 127
    %v648 = vshll.u32 %v647, 23
    %v649 = vor.u32 4788187, %v648
    %v650 = vand.u32 2147483647, %v649
    %v652 = vcvt.s32.f32 %v645
    %v653 = vmul.f32 %v652, %v650
    %v654 = vxor.u32 %v653, 2147483648
    %v655 = vsel %vm572, %v654, %v653
    %v656 = vsub.s32 4, %v632
    %v657 = vsel %vm572, %v656, %v632
    %v658 = vsel %vm571, %v460, %v655
    %v659 = vsel %vm571, 0, %v657
    %v660 = vcosq.f32.pop %v658
    %v661 = vsinq.f32.pop %v658
    %vm662 = vweird.f32 %v460
    %v663 = vand.u32 %v659, 3
    %vm664 = vcmp.lt.s32.totalorder %v663, 2
    %vm665 = vcmp.eq.s32.totalorder %v663, 0
    %v666 = vxor.u32 %v661, 2147483648
    %v667 = vsel %vm665, %v660, %v666
    %vm668 = vcmp.eq.s32.totalorder %v663, 2
    %v669 = vxor.u32 %v660, 2147483648
    %v670 = vsel %vm668, %v669, %v661
    %v671 = vsel %vm664, %v667, %v670
    %v672 = vsel %vm662, nan, %v671
    %v673 = vand.u32 2147483647, %v461
    %vm674 = vcmp.le.f32.partialorder %v673, 0.7853982
    %vm675 = vcmp.lt.s32.totalorder %v461, 0
    %v676 = vand.u32 %v461, 2139095040
    %v677 = vshrl.u32 %v676, 23
    %v678 = vsub.s32 %v677, 127
    %v679 = vand.u32 2147483647, %v461
    %v680 = vand.u32 %v679, 8388607
    %v681 = vor.u32 %v680, 8388608
    %v682 = vsub.s32 0, %v681
    %v683 = vadd.s32 %v678, 1
    %vm684 = vcmp.gt.s32.totalorder %v683, 0
    %v685 = vsel %vm684, %v683, 0
    %v686 = vshrl.u32 %v685, 5
    %v687 = vand.u32 %v685, 31
    %v688 = vsub.s32 32, %v687
    %v689 = vshrl.u32 683565275, %v688
    %v690 = vshll.u32 683565275, %v687
    %v691 = vshrl.u32 2475754826, %v688
    %v692 = vor.u32 %v690, %v691
    %v693 = vshll.u32 2475754826, %v687
    %v694 = vshrl.u32 2131351028, %v688
    %v695 = vor.u32 %v693, %v694
    %v696 = vshll.u32 2131351028, %v687
    %v697 = vshrl.u32 2102212464, %v688
    %v698 = vor.u32 %v696, %v697
    %v699 = vshll.u32 2102212464, %v687
    %v700 = vshrl.u32 920167782, %v688
    %v701 = vor.u32 %v699, %v700
    %v702 = vshll.u32 920167782, %v687
    %v703 = vshrl.u32 1326507024, %v688
    %v704 = vor.u32 %v702, %v703
    %vm705 = vcmp.lt.s32.totalorder %v686, 1
    %vm706 = vcmp.lt.s32.totalorder %v686, 2
    %vm707 = vcmp.lt.s32.totalorder %v686, 3
    %vm708 = vcmp.lt.s32.totalorder %v686, 4
    %v709 = vsel %vm705, %v689, %v692
    %v710 = vsel %vm708, %v698, 2102212464
    %v711 = vsel %vm707, %v695, %v710
    %v712 = vsel %vm706, %v709, %v711
    %v713 = vsel %vm705, %v692, %v695
    %v714 = vsel %vm708, %v701, 920167782
    %v715 = vsel %vm707, %v698, %v714
    %v716 = vsel %vm706, %v713, %v715
    %v717 = vsel %vm705, %v695, %v698
    %v718 = vsel %vm708, %v704, 1326507024
    %v719 = vsel %vm707, %v701, %v718
    %v720 = vsel %vm706, %v717, %v719
    %v721 = vshll.u32 %v681, 8
    %v722 = vmul.u32.u64.compose %v721, %v720
    %v723 = vextract.low.u32 %v722
    %v724 = vextract.high.u32 %v722
    %v725 = vmul.u32.u64.compose %v721, %v716
    %v726 = vextract.low.u32 %v725
    %v727 = vextract.high.u32 %v725
    %v728 = vmul.u32 %v721, %v712
    %v729 = vadd.s32 %v724, %v726
    %vm730 = vc.u32 %v724, %v726
    %v731 = vadd.s32 %v727, 1
    %v732 = vsel %vm730, %v731, %v727
    %v733 = vadd.s32 %v728, %v732
    %v734 = vadd.s32 %v733, 536870912
    %v735 = vshrl.u32 %v734, 30
    %v736 = vshll.u32 %v735, 30
    %v737 = vsub.s32 %v733, %v736
    %vm738 = vcmp.lt.s32.totalorder %v737, 0
    %v739 = vsub.s32 0, %v737
    %v740 = vsel %vm738, %v739, %v737
    %v741 = vclz %v740
    %v742 = vsub.s32 %v741, 2
    %vm743 = vcmp.gt.s32.totalorder 0, %v742
    %v744 = vsel %vm743, 0, %v742
    %v745 = vsub.s32 32, %v744
    %v746 = vshll.u32 %v737, %v744
    %v747 = vshrl.u32 %v729, %v745
    %v748 = vor.u32 %v746, %v747
    %v749 = vsub.s32 4294967266, %v744
    %v750 = vadd.s32 %v749, 127
    %v751 = vshll.u32 %v750, 23
    %v752 = vor.u32 4788187, %v751
    %v753 = vand.u32 2147483647, %v752
    %v755 = vcvt.s32.f32 %v748
    %v756 = vmul.f32 %v755, %v753
    %v757 = vxor.u32 %v756, 2147483648
    %v758 = vsel %vm675, %v757, %v756
    %v759 = vsub.s32 4, %v735
    %v760 = vsel %vm675, %v759, %v735
    %v761 = vsel %vm674, %v461, %v758
    %v762 = vsel %vm674, 0, %v760
    %v763 = vcosq.f32.pop %v761
    %v764 = vsinq.f32.pop %v761
    %vm765 = vweird.f32 %v461
    %v766 = vand.u32 %v762, 3
    %vm767 = vcmp.lt.s32.totalorder %v766, 2
    %vm768 = vcmp.eq.s32.totalorder %v766, 0
    %v769 = vxor.u32 %v764, 2147483648
    %v770 = vsel %vm768, %v763, %v769
    %vm771 = vcmp.eq.s32.totalorder %v766, 2
    %v772 = vxor.u32 %v763, 2147483648
    %v773 = vsel %vm771, %v772, %v764
    %v774 = vsel %vm767, %v770, %v773
    %v775 = vsel %vm765, nan, %v774
    %v776 = vand.u32 2147483647, %v462
    %vm777 = vcmp.le.f32.partialorder %v776, 0.7853982
    %vm778 = vcmp.lt.s32.totalorder %v462, 0
    %v779 = vand.u32 %v462, 2139095040
    %v780 = vshrl.u32 %v779, 23
    %v781 = vsub.s32 %v780, 127
    %v782 = vand.u32 2147483647, %v462
    %v783 = vand.u32 %v782, 8388607
    %v784 = vor.u32 %v783, 8388608
    %v785 = vsub.s32 0, %v784
    %v786 = vadd.s32 %v781, 1
    %vm787 = vcmp.gt.s32.totalorder %v786, 0
    %v788 = vsel %vm787, %v786, 0
    %v789 = vshrl.u32 %v788, 5
    %v790 = vand.u32 %v788, 31
    %v791 = vsub.s32 32, %v790
    %v792 = vshrl.u32 683565275, %v791
    %v793 = vshll.u32 683565275, %v790
    %v794 = vshrl.u32 2475754826, %v791
    %v795 = vor.u32 %v793, %v794
    %v796 = vshll.u32 2475754826, %v790
    %v797 = vshrl.u32 2131351028, %v791
    %v798 = vor.u32 %v796, %v797
    %v799 = vshll.u32 2131351028, %v790
    %v800 = vshrl.u32 2102212464, %v791
    %v801 = vor.u32 %v799, %v800
    %v802 = vshll.u32 2102212464, %v790
    %v803 = vshrl.u32 920167782, %v791
    %v804 = vor.u32 %v802, %v803
    %v805 = vshll.u32 920167782, %v790
    %v806 = vshrl.u32 1326507024, %v791
    %v807 = vor.u32 %v805, %v806
    %vm808 = vcmp.lt.s32.totalorder %v789, 1
    %vm809 = vcmp.lt.s32.totalorder %v789, 2
    %vm810 = vcmp.lt.s32.totalorder %v789, 3
    %vm811 = vcmp.lt.s32.totalorder %v789, 4
    %v812 = vsel %vm808, %v792, %v795
    %v813 = vsel %vm811, %v801, 2102212464
    %v814 = vsel %vm810, %v798, %v813
    %v815 = vsel %vm809, %v812, %v814
    %v816 = vsel %vm808, %v795, %v798
    %v817 = vsel %vm811, %v804, 920167782
    %v818 = vsel %vm810, %v801, %v817
    %v819 = vsel %vm809, %v816, %v818
    %v820 = vsel %vm808, %v798, %v801
    %v821 = vsel %vm811, %v807, 1326507024
    %v822 = vsel %vm810, %v804, %v821
    %v823 = vsel %vm809, %v820, %v822
    %v824 = vshll.u32 %v784, 8
    %v825 = vmul.u32.u64.compose %v824, %v823
    %v826 = vextract.low.u32 %v825
    %v827 = vextract.high.u32 %v825
    %v828 = vmul.u32.u64.compose %v824, %v819
    %v829 = vextract.low.u32 %v828
    %v830 = vextract.high.u32 %v828
    %v831 = vmul.u32 %v824, %v815
    %v832 = vadd.s32 %v827, %v829
    %vm833 = vc.u32 %v827, %v829
    %v834 = vadd.s32 %v830, 1
    %v835 = vsel %vm833, %v834, %v830
    %v836 = vadd.s32 %v831, %v835
    %v837 = vadd.s32 %v836, 536870912
    %v838 = vshrl.u32 %v837, 30
    %v839 = vshll.u32 %v838, 30
    %v840 = vsub.s32 %v836, %v839
    %vm841 = vcmp.lt.s32.totalorder %v840, 0
    %v842 = vsub.s32 0, %v840
    %v843 = vsel %vm841, %v842, %v840
    %v844 = vclz %v843
    %v845 = vsub.s32 %v844, 2
    %vm846 = vcmp.gt.s32.totalorder 0, %v845
    %v847 = vsel %vm846, 0, %v845
    %v848 = vsub.s32 32, %v847
    %v849 = vshll.u32 %v840, %v847
    %v850 = vshrl.u32 %v832, %v848
    %v851 = vor.u32 %v849, %v850
    %v852 = vsub.s32 4294967266, %v847
    %v853 = vadd.s32 %v852, 127
    %v854 = vshll.u32 %v853, 23
    %v855 = vor.u32 4788187, %v854
    %v856 = vand.u32 2147483647, %v855
    %v858 = vcvt.s32.f32 %v851
    %v859 = vmul.f32 %v858, %v856
    %v860 = vxor.u32 %v859, 2147483648
    %v861 = vsel %vm778, %v860, %v859
    %v862 = vsub.s32 4, %v838
    %v863 = vsel %vm778, %v862, %v838
    %v864 = vsel %vm777, %v462, %v861
    %v865 = vsel %vm777, 0, %v863
    %v866 = vcosq.f32.pop %v864
    %v867 = vsinq.f32.pop %v864
    %vm868 = vweird.f32 %v462
    %v869 = vand.u32 %v865, 3
    %vm870 = vcmp.lt.s32.totalorder %v869, 2
    %vm871 = vcmp.eq.s32.totalorder %v869, 0
    %v872 = vxor.u32 %v867, 2147483648
    %v873 = vsel %vm871, %v866, %v872
    %vm874 = vcmp.eq.s32.totalorder %v869, 2
    %v875 = vxor.u32 %v866, 2147483648
    %v876 = vsel %vm874, %v875, %v867
    %v877 = vsel %vm870, %v873, %v876
    %v878 = vsel %vm868, nan, %v877
    %v879 = vand.u32 2147483647, %v463
    %vm880 = vcmp.le.f32.partialorder %v879, 0.7853982
    %vm881 = vcmp.lt.s32.totalorder %v463, 0
    %v882 = vand.u32 %v463, 2139095040
    %v883 = vshrl.u32 %v882, 23
    %v884 = vsub.s32 %v883, 127
    %v885 = vand.u32 2147483647, %v463
    %v886 = vand.u32 %v885, 8388607
    %v887 = vor.u32 %v886, 8388608
    %v888 = vsub.s32 0, %v887
    %v889 = vadd.s32 %v884, 1
    %vm890 = vcmp.gt.s32.totalorder %v889, 0
    %v891 = vsel %vm890, %v889, 0
    %v892 = vshrl.u32 %v891, 5
    %v893 = vand.u32 %v891, 31
    %v894 = vsub.s32 32, %v893
    %v895 = vshrl.u32 683565275, %v894
    %v896 = vshll.u32 683565275, %v893
    %v897 = vshrl.u32 2475754826, %v894
    %v898 = vor.u32 %v896, %v897
    %v899 = vshll.u32 2475754826, %v893
    %v900 = vshrl.u32 2131351028, %v894
    %v901 = vor.u32 %v899, %v900
    %v902 = vshll.u32 2131351028, %v893
    %v903 = vshrl.u32 2102212464, %v894
    %v904 = vor.u32 %v902, %v903
    %v905 = vshll.u32 2102212464, %v893
    %v906 = vshrl.u32 920167782, %v894
    %v907 = vor.u32 %v905, %v906
    %v908 = vshll.u32 920167782, %v893
    %v909 = vshrl.u32 1326507024, %v894
    %v910 = vor.u32 %v908, %v909
    %vm911 = vcmp.lt.s32.totalorder %v892, 1
    %vm912 = vcmp.lt.s32.totalorder %v892, 2
    %vm913 = vcmp.lt.s32.totalorder %v892, 3
    %vm914 = vcmp.lt.s32.totalorder %v892, 4
    %v915 = vsel %vm911, %v895, %v898
    %v916 = vsel %vm914, %v904, 2102212464
    %v917 = vsel %vm913, %v901, %v916
    %v918 = vsel %vm912, %v915, %v917
    %v919 = vsel %vm911, %v898, %v901
    %v920 = vsel %vm914, %v907, 920167782
    %v921 = vsel %vm913, %v904, %v920
    %v922 = vsel %vm912, %v919, %v921
    %v923 = vsel %vm911, %v901, %v904
    %v924 = vsel %vm914, %v910, 1326507024
    %v925 = vsel %vm913, %v907, %v924
    %v926 = vsel %vm912, %v923, %v925
    %v927 = vshll.u32 %v887, 8
    %v928 = vmul.u32.u64.compose %v927, %v926
    %v929 = vextract.low.u32 %v928
    %v930 = vextract.high.u32 %v928
    %v931 = vmul.u32.u64.compose %v927, %v922
    %v932 = vextract.low.u32 %v931
    %v933 = vextract.high.u32 %v931
    %v934 = vmul.u32 %v927, %v918
    %v935 = vadd.s32 %v930, %v932
    %vm936 = vc.u32 %v930, %v932
    %v937 = vadd.s32 %v933, 1
    %v938 = vsel %vm936, %v937, %v933
    %v939 = vadd.s32 %v934, %v938
    %v940 = vadd.s32 %v939, 536870912
    %v941 = vshrl.u32 %v940, 30
    %v942 = vshll.u32 %v941, 30
    %v943 = vsub.s32 %v939, %v942
    %vm944 = vcmp.lt.s32.totalorder %v943, 0
    %v945 = vsub.s32 0, %v943
    %v946 = vsel %vm944, %v945, %v943
    %v947 = vclz %v946
    %v948 = vsub.s32 %v947, 2
    %vm949 = vcmp.gt.s32.totalorder 0, %v948
    %v950 = vsel %vm949, 0, %v948
    %v951 = vsub.s32 32, %v950
    %v952 = vshll.u32 %v943, %v950
    %v953 = vshrl.u32 %v935, %v951
    %v954 = vor.u32 %v952, %v953
    %v955 = vsub.s32 4294967266, %v950
    %v956 = vadd.s32 %v955, 127
    %v957 = vshll.u32 %v956, 23
    %v958 = vor.u32 4788187, %v957
    %v959 = vand.u32 2147483647, %v958
    %v961 = vcvt.s32.f32 %v954
    %v962 = vmul.f32 %v961, %v959
    %v963 = vxor.u32 %v962, 2147483648
    %v964 = vsel %vm881, %v963, %v962
    %v965 = vsub.s32 4, %v941
    %v966 = vsel %vm881, %v965, %v941
    %v967 = vsel %vm880, %v463, %v964
    %v968 = vsel %vm880, 0, %v966
    %v969 = vcosq.f32.pop %v967
    %v970 = vsinq.f32.pop %v967
    %vm971 = vweird.f32 %v463
    %v972 = vand.u32 %v968, 3
    %vm973 = vcmp.lt.s32.totalorder %v972, 2
    %vm974 = vcmp.eq.s32.totalorder %v972, 0
    %v975 = vxor.u32 %v970, 2147483648
    %v976 = vsel %vm974, %v969, %v975
    %vm977 = vcmp.eq.s32.totalorder %v972, 2
    %v978 = vxor.u32 %v969, 2147483648
    %v979 = vsel %vm977, %v978, %v970
    %v980 = vsel %vm973, %v976, %v979
    %v981 = vsel %vm971, nan, %v980
    %v982 = vand.u32 2147483647, %v464
    %vm983 = vcmp.le.f32.partialorder %v982, 0.7853982
    %vm984 = vcmp.lt.s32.totalorder %v464, 0
    %v985 = vand.u32 %v464, 2139095040
    %v986 = vshrl.u32 %v985, 23
    %v987 = vsub.s32 %v986, 127
    %v988 = vand.u32 2147483647, %v464
    %v989 = vand.u32 %v988, 8388607
    %v990 = vor.u32 %v989, 8388608
    %v991 = vsub.s32 0, %v990
    %v992 = vadd.s32 %v987, 1
    %vm993 = vcmp.gt.s32.totalorder %v992, 0
    %v994 = vsel %vm993, %v992, 0
    %v995 = vshrl.u32 %v994, 5
    %v996 = vand.u32 %v994, 31
    %v997 = vsub.s32 32, %v996
    %v998 = vshrl.u32 683565275, %v997
    %v999 = vshll.u32 683565275, %v996
    %v1000 = vshrl.u32 2475754826, %v997
    %v1001 = vor.u32 %v999, %v1000
    %v1002 = vshll.u32 2475754826, %v996
    %v1003 = vshrl.u32 2131351028, %v997
    %v1004 = vor.u32 %v1002, %v1003
    %v1005 = vshll.u32 2131351028, %v996
    %v1006 = vshrl.u32 2102212464, %v997
    %v1007 = vor.u32 %v1005, %v1006
    %v1008 = vshll.u32 2102212464, %v996
    %v1009 = vshrl.u32 920167782, %v997
    %v1010 = vor.u32 %v1008, %v1009
    %v1011 = vshll.u32 920167782, %v996
    %v1012 = vshrl.u32 1326507024, %v997
    %v1013 = vor.u32 %v1011, %v1012
    %vm1014 = vcmp.lt.s32.totalorder %v995, 1
    %vm1015 = vcmp.lt.s32.totalorder %v995, 2
    %vm1016 = vcmp.lt.s32.totalorder %v995, 3
    %vm1017 = vcmp.lt.s32.totalorder %v995, 4
    %v1018 = vsel %vm1014, %v998, %v1001
    %v1019 = vsel %vm1017, %v1007, 2102212464
    %v1020 = vsel %vm1016, %v1004, %v1019
    %v1021 = vsel %vm1015, %v1018, %v1020
    %v1022 = vsel %vm1014, %v1001, %v1004
    %v1023 = vsel %vm1017, %v1010, 920167782
    %v1024 = vsel %vm1016, %v1007, %v1023
    %v1025 = vsel %vm1015, %v1022, %v1024
    %v1026 = vsel %vm1014, %v1004, %v1007
    %v1027 = vsel %vm1017, %v1013, 1326507024
    %v1028 = vsel %vm1016, %v1010, %v1027
    %v1029 = vsel %vm1015, %v1026, %v1028
    %v1030 = vshll.u32 %v990, 8
    %v1031 = vmul.u32.u64.compose %v1030, %v1029
    %v1032 = vextract.low.u32 %v1031
    %v1033 = vextract.high.u32 %v1031
    %v1034 = vmul.u32.u64.compose %v1030, %v1025
    %v1035 = vextract.low.u32 %v1034
    %v1036 = vextract.high.u32 %v1034
    %v1037 = vmul.u32 %v1030, %v1021
    %v1038 = vadd.s32 %v1033, %v1035
    %vm1039 = vc.u32 %v1033, %v1035
    %v1040 = vadd.s32 %v1036, 1
    %v1041 = vsel %vm1039, %v1040, %v1036
    %v1042 = vadd.s32 %v1037, %v1041
    %v1043 = vadd.s32 %v1042, 536870912
    %v1044 = vshrl.u32 %v1043, 30
    %v1045 = vshll.u32 %v1044, 30
    %v1046 = vsub.s32 %v1042, %v1045
    %vm1047 = vcmp.lt.s32.totalorder %v1046, 0
    %v1048 = vsub.s32 0, %v1046
    %v1049 = vsel %vm1047, %v1048, %v1046
    %v1050 = vclz %v1049
    %v1051 = vsub.s32 %v1050, 2
    %vm1052 = vcmp.gt.s32.totalorder 0, %v1051
    %v1053 = vsel %vm1052, 0, %v1051
    %v1054 = vsub.s32 32, %v1053
    %v1055 = vshll.u32 %v1046, %v1053
    %v1056 = vshrl.u32 %v1038, %v1054
    %v1057 = vor.u32 %v1055, %v1056
    %v1058 = vsub.s32 4294967266, %v1053
    %v1059 = vadd.s32 %v1058, 127
    %v1060 = vshll.u32 %v1059, 23
    %v1061 = vor.u32 4788187, %v1060
    %v1062 = vand.u32 2147483647, %v1061
    %v1064 = vcvt.s32.f32 %v1057
    %v1065 = vmul.f32 %v1064, %v1062
    %v1066 = vxor.u32 %v1065, 2147483648
    %v1067 = vsel %vm984, %v1066, %v1065
    %v1068 = vsub.s32 4, %v1044
    %v1069 = vsel %vm984, %v1068, %v1044
    %v1070 = vsel %vm983, %v464, %v1067
    %v1071 = vsel %vm983, 0, %v1069
    %v1072 = vcosq.f32.pop %v1070
    %v1073 = vsinq.f32.pop %v1070
    %vm1074 = vweird.f32 %v464
    %v1075 = vand.u32 %v1071, 3
    %vm1076 = vcmp.lt.s32.totalorder %v1075, 2
    %vm1077 = vcmp.eq.s32.totalorder %v1075, 0
    %v1078 = vxor.u32 %v1073, 2147483648
    %v1079 = vsel %vm1077, %v1072, %v1078
    %vm1080 = vcmp.eq.s32.totalorder %v1075, 2
    %v1081 = vxor.u32 %v1072, 2147483648
    %v1082 = vsel %vm1080, %v1081, %v1073
    %v1083 = vsel %vm1076, %v1079, %v1082
    %v1084 = vsel %vm1074, nan, %v1083
    %v1085 = vand.u32 2147483647, %v465
    %vm1086 = vcmp.le.f32.partialorder %v1085, 0.7853982
    %vm1087 = vcmp.lt.s32.totalorder %v465, 0
    %v1088 = vand.u32 %v465, 2139095040
    %v1089 = vshrl.u32 %v1088, 23
    %v1090 = vsub.s32 %v1089, 127
    %v1091 = vand.u32 2147483647, %v465
    %v1092 = vand.u32 %v1091, 8388607
    %v1093 = vor.u32 %v1092, 8388608
    %v1094 = vsub.s32 0, %v1093
    %v1095 = vadd.s32 %v1090, 1
    %vm1096 = vcmp.gt.s32.totalorder %v1095, 0
    %v1097 = vsel %vm1096, %v1095, 0
    %v1098 = vshrl.u32 %v1097, 5
    %v1099 = vand.u32 %v1097, 31
    %v1100 = vsub.s32 32, %v1099
    %v1101 = vshrl.u32 683565275, %v1100
    %v1102 = vshll.u32 683565275, %v1099
    %v1103 = vshrl.u32 2475754826, %v1100
    %v1104 = vor.u32 %v1102, %v1103
    %v1105 = vshll.u32 2475754826, %v1099
    %v1106 = vshrl.u32 2131351028, %v1100
    %v1107 = vor.u32 %v1105, %v1106
    %v1108 = vshll.u32 2131351028, %v1099
    %v1109 = vshrl.u32 2102212464, %v1100
    %v1110 = vor.u32 %v1108, %v1109
    %v1111 = vshll.u32 2102212464, %v1099
    %v1112 = vshrl.u32 920167782, %v1100
    %v1113 = vor.u32 %v1111, %v1112
    %v1114 = vshll.u32 920167782, %v1099
    %v1115 = vshrl.u32 1326507024, %v1100
    %v1116 = vor.u32 %v1114, %v1115
    %vm1117 = vcmp.lt.s32.totalorder %v1098, 1
    %vm1118 = vcmp.lt.s32.totalorder %v1098, 2
    %vm1119 = vcmp.lt.s32.totalorder %v1098, 3
    %vm1120 = vcmp.lt.s32.totalorder %v1098, 4
    %v1121 = vsel %vm1117, %v1101, %v1104
    %v1122 = vsel %vm1120, %v1110, 2102212464
    %v1123 = vsel %vm1119, %v1107, %v1122
    %v1124 = vsel %vm1118, %v1121, %v1123
    %v1125 = vsel %vm1117, %v1104, %v1107
    %v1126 = vsel %vm1120, %v1113, 920167782
    %v1127 = vsel %vm1119, %v1110, %v1126
    %v1128 = vsel %vm1118, %v1125, %v1127
    %v1129 = vsel %vm1117, %v1107, %v1110
    %v1130 = vsel %vm1120, %v1116, 1326507024
    %v1131 = vsel %vm1119, %v1113, %v1130
    %v1132 = vsel %vm1118, %v1129, %v1131
    %v1133 = vshll.u32 %v1093, 8
    %v1134 = vmul.u32.u64.compose %v1133, %v1132
    %v1135 = vextract.low.u32 %v1134
    %v1136 = vextract.high.u32 %v1134
    %v1137 = vmul.u32.u64.compose %v1133, %v1128
    %v1138 = vextract.low.u32 %v1137
    %v1139 = vextract.high.u32 %v1137
    %v1140 = vmul.u32 %v1133, %v1124
    %v1141 = vadd.s32 %v1136, %v1138
    %vm1142 = vc.u32 %v1136, %v1138
    %v1143 = vadd.s32 %v1139, 1
    %v1144 = vsel %vm1142, %v1143, %v1139
    %v1145 = vadd.s32 %v1140, %v1144
    %v1146 = vadd.s32 %v1145, 536870912
    %v1147 = vshrl.u32 %v1146, 30
    %v1148 = vshll.u32 %v1147, 30
    %v1149 = vsub.s32 %v1145, %v1148
    %vm1150 = vcmp.lt.s32.totalorder %v1149, 0
    %v1151 = vsub.s32 0, %v1149
    %v1152 = vsel %vm1150, %v1151, %v1149
    %v1153 = vclz %v1152
    %v1154 = vsub.s32 %v1153, 2
    %vm1155 = vcmp.gt.s32.totalorder 0, %v1154
    %v1156 = vsel %vm1155, 0, %v1154
    %v1157 = vsub.s32 32, %v1156
    %v1158 = vshll.u32 %v1149, %v1156
    %v1159 = vshrl.u32 %v1141, %v1157
    %v1160 = vor.u32 %v1158, %v1159
    %v1161 = vsub.s32 4294967266, %v1156
    %v1162 = vadd.s32 %v1161, 127
    %v1163 = vshll.u32 %v1162, 23
    %v1164 = vor.u32 4788187, %v1163
    %v1165 = vand.u32 2147483647, %v1164
    %v1167 = vcvt.s32.f32 %v1160
    %v1168 = vmul.f32 %v1167, %v1165
    %v1169 = vxor.u32 %v1168, 2147483648
    %v1170 = vsel %vm1087, %v1169, %v1168
    %v1171 = vsub.s32 4, %v1147
    %v1172 = vsel %vm1087, %v1171, %v1147
    %v1173 = vsel %vm1086, %v465, %v1170
    %v1174 = vsel %vm1086, 0, %v1172
    %v1175 = vcosq.f32.pop %v1173
    %v1176 = vsinq.f32.pop %v1173
    %vm1177 = vweird.f32 %v465
    %v1178 = vand.u32 %v1174, 3
    %vm1179 = vcmp.lt.s32.totalorder %v1178, 2
    %vm1180 = vcmp.eq.s32.totalorder %v1178, 0
    %v1181 = vxor.u32 %v1176, 2147483648
    %v1182 = vsel %vm1180, %v1175, %v1181
    %vm1183 = vcmp.eq.s32.totalorder %v1178, 2
    %v1184 = vxor.u32 %v1175, 2147483648
    %v1185 = vsel %vm1183, %v1184, %v1176
    %v1186 = vsel %vm1179, %v1182, %v1185
    %v1187 = vsel %vm1177, nan, %v1186
    %v1188 = vand.u32 2147483647, %v466
    %vm1189 = vcmp.le.f32.partialorder %v1188, 0.7853982
    %vm1190 = vcmp.lt.s32.totalorder %v466, 0
    %v1191 = vand.u32 %v466, 2139095040
    %v1192 = vshrl.u32 %v1191, 23
    %v1193 = vsub.s32 %v1192, 127
    %v1194 = vand.u32 2147483647, %v466
    %v1195 = vand.u32 %v1194, 8388607
    %v1196 = vor.u32 %v1195, 8388608
    %v1197 = vsub.s32 0, %v1196
    %v1198 = vadd.s32 %v1193, 1
    %vm1199 = vcmp.gt.s32.totalorder %v1198, 0
    %v1200 = vsel %vm1199, %v1198, 0
    %v1201 = vshrl.u32 %v1200, 5
    %v1202 = vand.u32 %v1200, 31
    %v1203 = vsub.s32 32, %v1202
    %v1204 = vshrl.u32 683565275, %v1203
    %v1205 = vshll.u32 683565275, %v1202
    %v1206 = vshrl.u32 2475754826, %v1203
    %v1207 = vor.u32 %v1205, %v1206
    %v1208 = vshll.u32 2475754826, %v1202
    %v1209 = vshrl.u32 2131351028, %v1203
    %v1210 = vor.u32 %v1208, %v1209
    %v1211 = vshll.u32 2131351028, %v1202
    %v1212 = vshrl.u32 2102212464, %v1203
    %v1213 = vor.u32 %v1211, %v1212
    %v1214 = vshll.u32 2102212464, %v1202
    %v1215 = vshrl.u32 920167782, %v1203
    %v1216 = vor.u32 %v1214, %v1215
    %v1217 = vshll.u32 920167782, %v1202
    %v1218 = vshrl.u32 1326507024, %v1203
    %v1219 = vor.u32 %v1217, %v1218
    %vm1220 = vcmp.lt.s32.totalorder %v1201, 1
    %vm1221 = vcmp.lt.s32.totalorder %v1201, 2
    %vm1222 = vcmp.lt.s32.totalorder %v1201, 3
    %vm1223 = vcmp.lt.s32.totalorder %v1201, 4
    %v1224 = vsel %vm1220, %v1204, %v1207
    %v1225 = vsel %vm1223, %v1213, 2102212464
    %v1226 = vsel %vm1222, %v1210, %v1225
    %v1227 = vsel %vm1221, %v1224, %v1226
    %v1228 = vsel %vm1220, %v1207, %v1210
    %v1229 = vsel %vm1223, %v1216, 920167782
    %v1230 = vsel %vm1222, %v1213, %v1229
    %v1231 = vsel %vm1221, %v1228, %v1230
    %v1232 = vsel %vm1220, %v1210, %v1213
    %v1233 = vsel %vm1223, %v1219, 1326507024
    %v1234 = vsel %vm1222, %v1216, %v1233
    %v1235 = vsel %vm1221, %v1232, %v1234
    %v1236 = vshll.u32 %v1196, 8
    %v1237 = vmul.u32.u64.compose %v1236, %v1235
    %v1238 = vextract.low.u32 %v1237
    %v1239 = vextract.high.u32 %v1237
    %v1240 = vmul.u32.u64.compose %v1236, %v1231
    %v1241 = vextract.low.u32 %v1240
    %v1242 = vextract.high.u32 %v1240
    %v1243 = vmul.u32 %v1236, %v1227
    %v1244 = vadd.s32 %v1239, %v1241
    %vm1245 = vc.u32 %v1239, %v1241
    %v1246 = vadd.s32 %v1242, 1
    %v1247 = vsel %vm1245, %v1246, %v1242
    %v1248 = vadd.s32 %v1243, %v1247
    %v1249 = vadd.s32 %v1248, 536870912
    %v1250 = vshrl.u32 %v1249, 30
    %v1251 = vshll.u32 %v1250, 30
    %v1252 = vsub.s32 %v1248, %v1251
    %vm1253 = vcmp.lt.s32.totalorder %v1252, 0
    %v1254 = vsub.s32 0, %v1252
    %v1255 = vsel %vm1253, %v1254, %v1252
    %v1256 = vclz %v1255
    %v1257 = vsub.s32 %v1256, 2
    %vm1258 = vcmp.gt.s32.totalorder 0, %v1257
    %v1259 = vsel %vm1258, 0, %v1257
    %v1260 = vsub.s32 32, %v1259
    %v1261 = vshll.u32 %v1252, %v1259
    %v1262 = vshrl.u32 %v1244, %v1260
    %v1263 = vor.u32 %v1261, %v1262
    %v1264 = vsub.s32 4294967266, %v1259
    %v1265 = vadd.s32 %v1264, 127
    %v1266 = vshll.u32 %v1265, 23
    %v1267 = vor.u32 4788187, %v1266
    %v1268 = vand.u32 2147483647, %v1267
    %v1270 = vcvt.s32.f32 %v1263
    %v1271 = vmul.f32 %v1270, %v1268
    %v1272 = vxor.u32 %v1271, 2147483648
    %v1273 = vsel %vm1190, %v1272, %v1271
    %v1274 = vsub.s32 4, %v1250
    %v1275 = vsel %vm1190, %v1274, %v1250
    %v1276 = vsel %vm1189, %v466, %v1273
    %v1277 = vsel %vm1189, 0, %v1275
    %v1278 = vcosq.f32.pop %v1276
    %v1279 = vsinq.f32.pop %v1276
    %vm1280 = vweird.f32 %v466
    %v1281 = vand.u32 %v1277, 3
    %vm1282 = vcmp.lt.s32.totalorder %v1281, 2
    %vm1283 = vcmp.eq.s32.totalorder %v1281, 0
    %v1284 = vxor.u32 %v1279, 2147483648
    %v1285 = vsel %vm1283, %v1278, %v1284
    %vm1286 = vcmp.eq.s32.totalorder %v1281, 2
    %v1287 = vxor.u32 %v1278, 2147483648
    %v1288 = vsel %vm1286, %v1287, %v1279
    %v1289 = vsel %vm1282, %v1285, %v1288
    %v1290 = vsel %vm1280, nan, %v1289
    %v1291 = vmul.f32 %v292, %v569
    %v1292 = vmul.f32 %v293, %v672
    %v1293 = vmul.f32 %v294, %v775
    %v1294 = vmul.f32 %v295, %v878
    %v1295 = vmul.f32 %v296, %v981
    %v1296 = vmul.f32 %v297, %v1084
    %v1297 = vmul.f32 %v298, %v1187
    %v1298 = vmul.f32 %v299, %v1290
    %1299 = vst [vmem:[%s6] sm:$0xff] %v1291
    %1300 = vst [vmem:[%s6 + $0x10] sm:$0xff] %v1292
    %1301 = vst [vmem:[%s6 + $0x20] sm:$0xff] %v1293
    %1302 = vst [vmem:[%s6 + $0x30] sm:$0xff] %v1294
    %1303 = vst [vmem:[%s6 + $0x40] sm:$0xff] %v1295
    %1304 = vst [vmem:[%s6 + $0x50] sm:$0xff] %v1296
    %1305 = vst [vmem:[%s6 + $0x60] sm:$0xff] %v1297
    %1306 = vst [vmem:[%s6 + $0x70] sm:$0xff] %v1298
    %v1307 = vand.u32 2147483647, %v459
    %vm1308 = vcmp.le.f32.partialorder %v1307, 0.7853982
    %vm1309 = vcmp.lt.s32.totalorder %v459, 0
    %v1310 = vand.u32 %v459, 2139095040
    %v1311 = vshrl.u32 %v1310, 23
    %v1312 = vsub.s32 %v1311, 127
    %v1313 = vand.u32 2147483647, %v459
    %v1314 = vand.u32 %v1313, 8388607
    %v1315 = vor.u32 %v1314, 8388608
    %v1316 = vsub.s32 0, %v1315
    %v1317 = vadd.s32 %v1312, 1
    %vm1318 = vcmp.gt.s32.totalorder %v1317, 0
    %v1319 = vsel %vm1318, %v1317, 0
    %v1320 = vshrl.u32 %v1319, 5
    %v1321 = vand.u32 %v1319, 31
    %v1322 = vsub.s32 32, %v1321
    %v1323 = vshrl.u32 683565275, %v1322
    %v1324 = vshll.u32 683565275, %v1321
    %v1325 = vshrl.u32 2475754826, %v1322
    %v1326 = vor.u32 %v1324, %v1325
    %v1327 = vshll.u32 2475754826, %v1321
    %v1328 = vshrl.u32 2131351028, %v1322
    %v1329 = vor.u32 %v1327, %v1328
    %v1330 = vshll.u32 2131351028, %v1321
    %v1331 = vshrl.u32 2102212464, %v1322
    %v1332 = vor.u32 %v1330, %v1331
    %v1333 = vshll.u32 2102212464, %v1321
    %v1334 = vshrl.u32 920167782, %v1322
    %v1335 = vor.u32 %v1333, %v1334
    %v1336 = vshll.u32 920167782, %v1321
    %v1337 = vshrl.u32 1326507024, %v1322
    %v1338 = vor.u32 %v1336, %v1337
    %vm1339 = vcmp.lt.s32.totalorder %v1320, 1
    %vm1340 = vcmp.lt.s32.totalorder %v1320, 2
    %vm1341 = vcmp.lt.s32.totalorder %v1320, 3
    %vm1342 = vcmp.lt.s32.totalorder %v1320, 4
    %v1343 = vsel %vm1339, %v1323, %v1326
    %v1344 = vsel %vm1342, %v1332, 2102212464
    %v1345 = vsel %vm1341, %v1329, %v1344
    %v1346 = vsel %vm1340, %v1343, %v1345
    %v1347 = vsel %vm1339, %v1326, %v1329
    %v1348 = vsel %vm1342, %v1335, 920167782
    %v1349 = vsel %vm1341, %v1332, %v1348
    %v1350 = vsel %vm1340, %v1347, %v1349
    %v1351 = vsel %vm1339, %v1329, %v1332
    %v1352 = vsel %vm1342, %v1338, 1326507024
    %v1353 = vsel %vm1341, %v1335, %v1352
    %v1354 = vsel %vm1340, %v1351, %v1353
    %v1355 = vshll.u32 %v1315, 8
    %v1356 = vmul.u32.u64.compose %v1355, %v1354
    %v1357 = vextract.low.u32 %v1356
    %v1358 = vextract.high.u32 %v1356
    %v1359 = vmul.u32.u64.compose %v1355, %v1350
    %v1360 = vextract.low.u32 %v1359
    %v1361 = vextract.high.u32 %v1359
    %v1362 = vmul.u32 %v1355, %v1346
    %v1363 = vadd.s32 %v1358, %v1360
    %vm1364 = vc.u32 %v1358, %v1360
    %v1365 = vadd.s32 %v1361, 1
    %v1366 = vsel %vm1364, %v1365, %v1361
    %v1367 = vadd.s32 %v1362, %v1366
    %v1368 = vadd.s32 %v1367, 536870912
    %v1369 = vshrl.u32 %v1368, 30
    %v1370 = vshll.u32 %v1369, 30
    %v1371 = vsub.s32 %v1367, %v1370
    %vm1372 = vcmp.lt.s32.totalorder %v1371, 0
    %v1373 = vsub.s32 0, %v1371
    %v1374 = vsel %vm1372, %v1373, %v1371
    %v1375 = vclz %v1374
    %v1376 = vsub.s32 %v1375, 2
    %vm1377 = vcmp.gt.s32.totalorder 0, %v1376
    %v1378 = vsel %vm1377, 0, %v1376
    %v1379 = vsub.s32 32, %v1378
    %v1380 = vshll.u32 %v1371, %v1378
    %v1381 = vshrl.u32 %v1363, %v1379
    %v1382 = vor.u32 %v1380, %v1381
    %v1383 = vsub.s32 4294967266, %v1378
    %v1384 = vadd.s32 %v1383, 127
    %v1385 = vshll.u32 %v1384, 23
    %v1386 = vor.u32 4788187, %v1385
    %v1387 = vand.u32 2147483647, %v1386
    %v1389 = vcvt.s32.f32 %v1382
    %v1390 = vmul.f32 %v1389, %v1387
    %v1391 = vxor.u32 %v1390, 2147483648
    %v1392 = vsel %vm1309, %v1391, %v1390
    %v1393 = vsub.s32 4, %v1369
    %v1394 = vsel %vm1309, %v1393, %v1369
    %v1395 = vsel %vm1308, %v459, %v1392
    %v1396 = vsel %vm1308, 0, %v1394
    %v1397 = vcosq.f32.pop %v1395
    %v1398 = vsinq.f32.pop %v1395
    %vm1399 = vweird.f32 %v459
    %v1400 = vadd.s32 %v1396, 3
    %v1401 = vand.u32 %v1400, 3
    %vm1402 = vcmp.lt.s32.totalorder %v1401, 2
    %vm1403 = vcmp.eq.s32.totalorder %v1401, 0
    %v1404 = vxor.u32 %v1398, 2147483648
    %v1405 = vsel %vm1403, %v1397, %v1404
    %vm1406 = vcmp.eq.s32.totalorder %v1401, 2
    %v1407 = vxor.u32 %v1397, 2147483648
    %v1408 = vsel %vm1406, %v1407, %v1398
    %v1409 = vsel %vm1402, %v1405, %v1408
    %v1410 = vsel %vm1399, nan, %v1409
    %v1411 = vand.u32 2147483647, %v460
    %vm1412 = vcmp.le.f32.partialorder %v1411, 0.7853982
    %vm1413 = vcmp.lt.s32.totalorder %v460, 0
    %v1414 = vand.u32 %v460, 2139095040
    %v1415 = vshrl.u32 %v1414, 23
    %v1416 = vsub.s32 %v1415, 127
    %v1417 = vand.u32 2147483647, %v460
    %v1418 = vand.u32 %v1417, 8388607
    %v1419 = vor.u32 %v1418, 8388608
    %v1420 = vsub.s32 0, %v1419
    %v1421 = vadd.s32 %v1416, 1
    %vm1422 = vcmp.gt.s32.totalorder %v1421, 0
    %v1423 = vsel %vm1422, %v1421, 0
    %v1424 = vshrl.u32 %v1423, 5
    %v1425 = vand.u32 %v1423, 31
    %v1426 = vsub.s32 32, %v1425
    %v1427 = vshrl.u32 683565275, %v1426
    %v1428 = vshll.u32 683565275, %v1425
    %v1429 = vshrl.u32 2475754826, %v1426
    %v1430 = vor.u32 %v1428, %v1429
    %v1431 = vshll.u32 2475754826, %v1425
    %v1432 = vshrl.u32 2131351028, %v1426
    %v1433 = vor.u32 %v1431, %v1432
    %v1434 = vshll.u32 2131351028, %v1425
    %v1435 = vshrl.u32 2102212464, %v1426
    %v1436 = vor.u32 %v1434, %v1435
    %v1437 = vshll.u32 2102212464, %v1425
    %v1438 = vshrl.u32 920167782, %v1426
    %v1439 = vor.u32 %v1437, %v1438
    %v1440 = vshll.u32 920167782, %v1425
    %v1441 = vshrl.u32 1326507024, %v1426
    %v1442 = vor.u32 %v1440, %v1441
    %vm1443 = vcmp.lt.s32.totalorder %v1424, 1
    %vm1444 = vcmp.lt.s32.totalorder %v1424, 2
    %vm1445 = vcmp.lt.s32.totalorder %v1424, 3
    %vm1446 = vcmp.lt.s32.totalorder %v1424, 4
    %v1447 = vsel %vm1443, %v1427, %v1430
    %v1448 = vsel %vm1446, %v1436, 2102212464
    %v1449 = vsel %vm1445, %v1433, %v1448
    %v1450 = vsel %vm1444, %v1447, %v1449
    %v1451 = vsel %vm1443, %v1430, %v1433
    %v1452 = vsel %vm1446, %v1439, 920167782
    %v1453 = vsel %vm1445, %v1436, %v1452
    %v1454 = vsel %vm1444, %v1451, %v1453
    %v1455 = vsel %vm1443, %v1433, %v1436
    %v1456 = vsel %vm1446, %v1442, 1326507024
    %v1457 = vsel %vm1445, %v1439, %v1456
    %v1458 = vsel %vm1444, %v1455, %v1457
    %v1459 = vshll.u32 %v1419, 8
    %v1460 = vmul.u32.u64.compose %v1459, %v1458
    %v1461 = vextract.low.u32 %v1460
    %v1462 = vextract.high.u32 %v1460
    %v1463 = vmul.u32.u64.compose %v1459, %v1454
    %v1464 = vextract.low.u32 %v1463
    %v1465 = vextract.high.u32 %v1463
    %v1466 = vmul.u32 %v1459, %v1450
    %v1467 = vadd.s32 %v1462, %v1464
    %vm1468 = vc.u32 %v1462, %v1464
    %v1469 = vadd.s32 %v1465, 1
    %v1470 = vsel %vm1468, %v1469, %v1465
    %v1471 = vadd.s32 %v1466, %v1470
    %v1472 = vadd.s32 %v1471, 536870912
    %v1473 = vshrl.u32 %v1472, 30
    %v1474 = vshll.u32 %v1473, 30
    %v1475 = vsub.s32 %v1471, %v1474
    %vm1476 = vcmp.lt.s32.totalorder %v1475, 0
    %v1477 = vsub.s32 0, %v1475
    %v1478 = vsel %vm1476, %v1477, %v1475
    %v1479 = vclz %v1478
    %v1480 = vsub.s32 %v1479, 2
    %vm1481 = vcmp.gt.s32.totalorder 0, %v1480
    %v1482 = vsel %vm1481, 0, %v1480
    %v1483 = vsub.s32 32, %v1482
    %v1484 = vshll.u32 %v1475, %v1482
    %v1485 = vshrl.u32 %v1467, %v1483
    %v1486 = vor.u32 %v1484, %v1485
    %v1487 = vsub.s32 4294967266, %v1482
    %v1488 = vadd.s32 %v1487, 127
    %v1489 = vshll.u32 %v1488, 23
    %v1490 = vor.u32 4788187, %v1489
    %v1491 = vand.u32 2147483647, %v1490
    %v1493 = vcvt.s32.f32 %v1486
    %v1494 = vmul.f32 %v1493, %v1491
    %v1495 = vxor.u32 %v1494, 2147483648
    %v1496 = vsel %vm1413, %v1495, %v1494
    %v1497 = vsub.s32 4, %v1473
    %v1498 = vsel %vm1413, %v1497, %v1473
    %v1499 = vsel %vm1412, %v460, %v1496
    %v1500 = vsel %vm1412, 0, %v1498
    %v1501 = vcosq.f32.pop %v1499
    %v1502 = vsinq.f32.pop %v1499
    %vm1503 = vweird.f32 %v460
    %v1504 = vadd.s32 %v1500, 3
    %v1505 = vand.u32 %v1504, 3
    %vm1506 = vcmp.lt.s32.totalorder %v1505, 2
    %vm1507 = vcmp.eq.s32.totalorder %v1505, 0
    %v1508 = vxor.u32 %v1502, 2147483648
    %v1509 = vsel %vm1507, %v1501, %v1508
    %vm1510 = vcmp.eq.s32.totalorder %v1505, 2
    %v1511 = vxor.u32 %v1501, 2147483648
    %v1512 = vsel %vm1510, %v1511, %v1502
    %v1513 = vsel %vm1506, %v1509, %v1512
    %v1514 = vsel %vm1503, nan, %v1513
    %v1515 = vand.u32 2147483647, %v461
    %vm1516 = vcmp.le.f32.partialorder %v1515, 0.7853982
    %vm1517 = vcmp.lt.s32.totalorder %v461, 0
    %v1518 = vand.u32 %v461, 2139095040
    %v1519 = vshrl.u32 %v1518, 23
    %v1520 = vsub.s32 %v1519, 127
    %v1521 = vand.u32 2147483647, %v461
    %v1522 = vand.u32 %v1521, 8388607
    %v1523 = vor.u32 %v1522, 8388608
    %v1524 = vsub.s32 0, %v1523
    %v1525 = vadd.s32 %v1520, 1
    %vm1526 = vcmp.gt.s32.totalorder %v1525, 0
    %v1527 = vsel %vm1526, %v1525, 0
    %v1528 = vshrl.u32 %v1527, 5
    %v1529 = vand.u32 %v1527, 31
    %v1530 = vsub.s32 32, %v1529
    %v1531 = vshrl.u32 683565275, %v1530
    %v1532 = vshll.u32 683565275, %v1529
    %v1533 = vshrl.u32 2475754826, %v1530
    %v1534 = vor.u32 %v1532, %v1533
    %v1535 = vshll.u32 2475754826, %v1529
    %v1536 = vshrl.u32 2131351028, %v1530
    %v1537 = vor.u32 %v1535, %v1536
    %v1538 = vshll.u32 2131351028, %v1529
    %v1539 = vshrl.u32 2102212464, %v1530
    %v1540 = vor.u32 %v1538, %v1539
    %v1541 = vshll.u32 2102212464, %v1529
    %v1542 = vshrl.u32 920167782, %v1530
    %v1543 = vor.u32 %v1541, %v1542
    %v1544 = vshll.u32 920167782, %v1529
    %v1545 = vshrl.u32 1326507024, %v1530
    %v1546 = vor.u32 %v1544, %v1545
    %vm1547 = vcmp.lt.s32.totalorder %v1528, 1
    %vm1548 = vcmp.lt.s32.totalorder %v1528, 2
    %vm1549 = vcmp.lt.s32.totalorder %v1528, 3
    %vm1550 = vcmp.lt.s32.totalorder %v1528, 4
    %v1551 = vsel %vm1547, %v1531, %v1534
    %v1552 = vsel %vm1550, %v1540, 2102212464
    %v1553 = vsel %vm1549, %v1537, %v1552
    %v1554 = vsel %vm1548, %v1551, %v1553
    %v1555 = vsel %vm1547, %v1534, %v1537
    %v1556 = vsel %vm1550, %v1543, 920167782
    %v1557 = vsel %vm1549, %v1540, %v1556
    %v1558 = vsel %vm1548, %v1555, %v1557
    %v1559 = vsel %vm1547, %v1537, %v1540
    %v1560 = vsel %vm1550, %v1546, 1326507024
    %v1561 = vsel %vm1549, %v1543, %v1560
    %v1562 = vsel %vm1548, %v1559, %v1561
    %v1563 = vshll.u32 %v1523, 8
    %v1564 = vmul.u32.u64.compose %v1563, %v1562
    %v1565 = vextract.low.u32 %v1564
    %v1566 = vextract.high.u32 %v1564
    %v1567 = vmul.u32.u64.compose %v1563, %v1558
    %v1568 = vextract.low.u32 %v1567
    %v1569 = vextract.high.u32 %v1567
    %v1570 = vmul.u32 %v1563, %v1554
    %v1571 = vadd.s32 %v1566, %v1568
    %vm1572 = vc.u32 %v1566, %v1568
    %v1573 = vadd.s32 %v1569, 1
    %v1574 = vsel %vm1572, %v1573, %v1569
    %v1575 = vadd.s32 %v1570, %v1574
    %v1576 = vadd.s32 %v1575, 536870912
    %v1577 = vshrl.u32 %v1576, 30
    %v1578 = vshll.u32 %v1577, 30
    %v1579 = vsub.s32 %v1575, %v1578
    %vm1580 = vcmp.lt.s32.totalorder %v1579, 0
    %v1581 = vsub.s32 0, %v1579
    %v1582 = vsel %vm1580, %v1581, %v1579
    %v1583 = vclz %v1582
    %v1584 = vsub.s32 %v1583, 2
    %vm1585 = vcmp.gt.s32.totalorder 0, %v1584
    %v1586 = vsel %vm1585, 0, %v1584
    %v1587 = vsub.s32 32, %v1586
    %v1588 = vshll.u32 %v1579, %v1586
    %v1589 = vshrl.u32 %v1571, %v1587
    %v1590 = vor.u32 %v1588, %v1589
    %v1591 = vsub.s32 4294967266, %v1586
    %v1592 = vadd.s32 %v1591, 127
    %v1593 = vshll.u32 %v1592, 23
    %v1594 = vor.u32 4788187, %v1593
    %v1595 = vand.u32 2147483647, %v1594
    %v1597 = vcvt.s32.f32 %v1590
    %v1598 = vmul.f32 %v1597, %v1595
    %v1599 = vxor.u32 %v1598, 2147483648
    %v1600 = vsel %vm1517, %v1599, %v1598
    %v1601 = vsub.s32 4, %v1577
    %v1602 = vsel %vm1517, %v1601, %v1577
    %v1603 = vsel %vm1516, %v461, %v1600
    %v1604 = vsel %vm1516, 0, %v1602
    %v1605 = vcosq.f32.pop %v1603
    %v1606 = vsinq.f32.pop %v1603
    %vm1607 = vweird.f32 %v461
    %v1608 = vadd.s32 %v1604, 3
    %v1609 = vand.u32 %v1608, 3
    %vm1610 = vcmp.lt.s32.totalorder %v1609, 2
    %vm1611 = vcmp.eq.s32.totalorder %v1609, 0
    %v1612 = vxor.u32 %v1606, 2147483648
    %v1613 = vsel %vm1611, %v1605, %v1612
    %vm1614 = vcmp.eq.s32.totalorder %v1609, 2
    %v1615 = vxor.u32 %v1605, 2147483648
    %v1616 = vsel %vm1614, %v1615, %v1606
    %v1617 = vsel %vm1610, %v1613, %v1616
    %v1618 = vsel %vm1607, nan, %v1617
    %v1619 = vand.u32 2147483647, %v462
    %vm1620 = vcmp.le.f32.partialorder %v1619, 0.7853982
    %vm1621 = vcmp.lt.s32.totalorder %v462, 0
    %v1622 = vand.u32 %v462, 2139095040
    %v1623 = vshrl.u32 %v1622, 23
    %v1624 = vsub.s32 %v1623, 127
    %v1625 = vand.u32 2147483647, %v462
    %v1626 = vand.u32 %v1625, 8388607
    %v1627 = vor.u32 %v1626, 8388608
    %v1628 = vsub.s32 0, %v1627
    %v1629 = vadd.s32 %v1624, 1
    %vm1630 = vcmp.gt.s32.totalorder %v1629, 0
    %v1631 = vsel %vm1630, %v1629, 0
    %v1632 = vshrl.u32 %v1631, 5
    %v1633 = vand.u32 %v1631, 31
    %v1634 = vsub.s32 32, %v1633
    %v1635 = vshrl.u32 683565275, %v1634
    %v1636 = vshll.u32 683565275, %v1633
    %v1637 = vshrl.u32 2475754826, %v1634
    %v1638 = vor.u32 %v1636, %v1637
    %v1639 = vshll.u32 2475754826, %v1633
    %v1640 = vshrl.u32 2131351028, %v1634
    %v1641 = vor.u32 %v1639, %v1640
    %v1642 = vshll.u32 2131351028, %v1633
    %v1643 = vshrl.u32 2102212464, %v1634
    %v1644 = vor.u32 %v1642, %v1643
    %v1645 = vshll.u32 2102212464, %v1633
    %v1646 = vshrl.u32 920167782, %v1634
    %v1647 = vor.u32 %v1645, %v1646
    %v1648 = vshll.u32 920167782, %v1633
    %v1649 = vshrl.u32 1326507024, %v1634
    %v1650 = vor.u32 %v1648, %v1649
    %vm1651 = vcmp.lt.s32.totalorder %v1632, 1
    %vm1652 = vcmp.lt.s32.totalorder %v1632, 2
    %vm1653 = vcmp.lt.s32.totalorder %v1632, 3
    %vm1654 = vcmp.lt.s32.totalorder %v1632, 4
    %v1655 = vsel %vm1651, %v1635, %v1638
    %v1656 = vsel %vm1654, %v1644, 2102212464
    %v1657 = vsel %vm1653, %v1641, %v1656
    %v1658 = vsel %vm1652, %v1655, %v1657
    %v1659 = vsel %vm1651, %v1638, %v1641
    %v1660 = vsel %vm1654, %v1647, 920167782
    %v1661 = vsel %vm1653, %v1644, %v1660
    %v1662 = vsel %vm1652, %v1659, %v1661
    %v1663 = vsel %vm1651, %v1641, %v1644
    %v1664 = vsel %vm1654, %v1650, 1326507024
    %v1665 = vsel %vm1653, %v1647, %v1664
    %v1666 = vsel %vm1652, %v1663, %v1665
    %v1667 = vshll.u32 %v1627, 8
    %v1668 = vmul.u32.u64.compose %v1667, %v1666
    %v1669 = vextract.low.u32 %v1668
    %v1670 = vextract.high.u32 %v1668
    %v1671 = vmul.u32.u64.compose %v1667, %v1662
    %v1672 = vextract.low.u32 %v1671
    %v1673 = vextract.high.u32 %v1671
    %v1674 = vmul.u32 %v1667, %v1658
    %v1675 = vadd.s32 %v1670, %v1672
    %vm1676 = vc.u32 %v1670, %v1672
    %v1677 = vadd.s32 %v1673, 1
    %v1678 = vsel %vm1676, %v1677, %v1673
    %v1679 = vadd.s32 %v1674, %v1678
    %v1680 = vadd.s32 %v1679, 536870912
    %v1681 = vshrl.u32 %v1680, 30
    %v1682 = vshll.u32 %v1681, 30
    %v1683 = vsub.s32 %v1679, %v1682
    %vm1684 = vcmp.lt.s32.totalorder %v1683, 0
    %v1685 = vsub.s32 0, %v1683
    %v1686 = vsel %vm1684, %v1685, %v1683
    %v1687 = vclz %v1686
    %v1688 = vsub.s32 %v1687, 2
    %vm1689 = vcmp.gt.s32.totalorder 0, %v1688
    %v1690 = vsel %vm1689, 0, %v1688
    %v1691 = vsub.s32 32, %v1690
    %v1692 = vshll.u32 %v1683, %v1690
    %v1693 = vshrl.u32 %v1675, %v1691
    %v1694 = vor.u32 %v1692, %v1693
    %v1695 = vsub.s32 4294967266, %v1690
    %v1696 = vadd.s32 %v1695, 127
    %v1697 = vshll.u32 %v1696, 23
    %v1698 = vor.u32 4788187, %v1697
    %v1699 = vand.u32 2147483647, %v1698
    %v1701 = vcvt.s32.f32 %v1694
    %v1702 = vmul.f32 %v1701, %v1699
    %v1703 = vxor.u32 %v1702, 2147483648
    %v1704 = vsel %vm1621, %v1703, %v1702
    %v1705 = vsub.s32 4, %v1681
    %v1706 = vsel %vm1621, %v1705, %v1681
    %v1707 = vsel %vm1620, %v462, %v1704
    %v1708 = vsel %vm1620, 0, %v1706
    %v1709 = vcosq.f32.pop %v1707
    %v1710 = vsinq.f32.pop %v1707
    %vm1711 = vweird.f32 %v462
    %v1712 = vadd.s32 %v1708, 3
    %v1713 = vand.u32 %v1712, 3
    %vm1714 = vcmp.lt.s32.totalorder %v1713, 2
    %vm1715 = vcmp.eq.s32.totalorder %v1713, 0
    %v1716 = vxor.u32 %v1710, 2147483648
    %v1717 = vsel %vm1715, %v1709, %v1716
    %vm1718 = vcmp.eq.s32.totalorder %v1713, 2
    %v1719 = vxor.u32 %v1709, 2147483648
    %v1720 = vsel %vm1718, %v1719, %v1710
    %v1721 = vsel %vm1714, %v1717, %v1720
    %v1722 = vsel %vm1711, nan, %v1721
    %v1723 = vand.u32 2147483647, %v463
    %vm1724 = vcmp.le.f32.partialorder %v1723, 0.7853982
    %vm1725 = vcmp.lt.s32.totalorder %v463, 0
    %v1726 = vand.u32 %v463, 2139095040
    %v1727 = vshrl.u32 %v1726, 23
    %v1728 = vsub.s32 %v1727, 127
    %v1729 = vand.u32 2147483647, %v463
    %v1730 = vand.u32 %v1729, 8388607
    %v1731 = vor.u32 %v1730, 8388608
    %v1732 = vsub.s32 0, %v1731
    %v1733 = vadd.s32 %v1728, 1
    %vm1734 = vcmp.gt.s32.totalorder %v1733, 0
    %v1735 = vsel %vm1734, %v1733, 0
    %v1736 = vshrl.u32 %v1735, 5
    %v1737 = vand.u32 %v1735, 31
    %v1738 = vsub.s32 32, %v1737
    %v1739 = vshrl.u32 683565275, %v1738
    %v1740 = vshll.u32 683565275, %v1737
    %v1741 = vshrl.u32 2475754826, %v1738
    %v1742 = vor.u32 %v1740, %v1741
    %v1743 = vshll.u32 2475754826, %v1737
    %v1744 = vshrl.u32 2131351028, %v1738
    %v1745 = vor.u32 %v1743, %v1744
    %v1746 = vshll.u32 2131351028, %v1737
    %v1747 = vshrl.u32 2102212464, %v1738
    %v1748 = vor.u32 %v1746, %v1747
    %v1749 = vshll.u32 2102212464, %v1737
    %v1750 = vshrl.u32 920167782, %v1738
    %v1751 = vor.u32 %v1749, %v1750
    %v1752 = vshll.u32 920167782, %v1737
    %v1753 = vshrl.u32 1326507024, %v1738
    %v1754 = vor.u32 %v1752, %v1753
    %vm1755 = vcmp.lt.s32.totalorder %v1736, 1
    %vm1756 = vcmp.lt.s32.totalorder %v1736, 2
    %vm1757 = vcmp.lt.s32.totalorder %v1736, 3
    %vm1758 = vcmp.lt.s32.totalorder %v1736, 4
    %v1759 = vsel %vm1755, %v1739, %v1742
    %v1760 = vsel %vm1758, %v1748, 2102212464
    %v1761 = vsel %vm1757, %v1745, %v1760
    %v1762 = vsel %vm1756, %v1759, %v1761
    %v1763 = vsel %vm1755, %v1742, %v1745
    %v1764 = vsel %vm1758, %v1751, 920167782
    %v1765 = vsel %vm1757, %v1748, %v1764
    %v1766 = vsel %vm1756, %v1763, %v1765
    %v1767 = vsel %vm1755, %v1745, %v1748
    %v1768 = vsel %vm1758, %v1754, 1326507024
    %v1769 = vsel %vm1757, %v1751, %v1768
    %v1770 = vsel %vm1756, %v1767, %v1769
    %v1771 = vshll.u32 %v1731, 8
    %v1772 = vmul.u32.u64.compose %v1771, %v1770
    %v1773 = vextract.low.u32 %v1772
    %v1774 = vextract.high.u32 %v1772
    %v1775 = vmul.u32.u64.compose %v1771, %v1766
    %v1776 = vextract.low.u32 %v1775
    %v1777 = vextract.high.u32 %v1775
    %v1778 = vmul.u32 %v1771, %v1762
    %v1779 = vadd.s32 %v1774, %v1776
    %vm1780 = vc.u32 %v1774, %v1776
    %v1781 = vadd.s32 %v1777, 1
    %v1782 = vsel %vm1780, %v1781, %v1777
    %v1783 = vadd.s32 %v1778, %v1782
    %v1784 = vadd.s32 %v1783, 536870912
    %v1785 = vshrl.u32 %v1784, 30
    %v1786 = vshll.u32 %v1785, 30
    %v1787 = vsub.s32 %v1783, %v1786
    %vm1788 = vcmp.lt.s32.totalorder %v1787, 0
    %v1789 = vsub.s32 0, %v1787
    %v1790 = vsel %vm1788, %v1789, %v1787
    %v1791 = vclz %v1790
    %v1792 = vsub.s32 %v1791, 2
    %vm1793 = vcmp.gt.s32.totalorder 0, %v1792
    %v1794 = vsel %vm1793, 0, %v1792
    %v1795 = vsub.s32 32, %v1794
    %v1796 = vshll.u32 %v1787, %v1794
    %v1797 = vshrl.u32 %v1779, %v1795
    %v1798 = vor.u32 %v1796, %v1797
    %v1799 = vsub.s32 4294967266, %v1794
    %v1800 = vadd.s32 %v1799, 127
    %v1801 = vshll.u32 %v1800, 23
    %v1802 = vor.u32 4788187, %v1801
    %v1803 = vand.u32 2147483647, %v1802
    %v1805 = vcvt.s32.f32 %v1798
    %v1806 = vmul.f32 %v1805, %v1803
    %v1807 = vxor.u32 %v1806, 2147483648
    %v1808 = vsel %vm1725, %v1807, %v1806
    %v1809 = vsub.s32 4, %v1785
    %v1810 = vsel %vm1725, %v1809, %v1785
    %v1811 = vsel %vm1724, %v463, %v1808
    %v1812 = vsel %vm1724, 0, %v1810
    %v1813 = vcosq.f32.pop %v1811
    %v1814 = vsinq.f32.pop %v1811
    %vm1815 = vweird.f32 %v463
    %v1816 = vadd.s32 %v1812, 3
    %v1817 = vand.u32 %v1816, 3
    %vm1818 = vcmp.lt.s32.totalorder %v1817, 2
    %vm1819 = vcmp.eq.s32.totalorder %v1817, 0
    %v1820 = vxor.u32 %v1814, 2147483648
    %v1821 = vsel %vm1819, %v1813, %v1820
    %vm1822 = vcmp.eq.s32.totalorder %v1817, 2
    %v1823 = vxor.u32 %v1813, 2147483648
    %v1824 = vsel %vm1822, %v1823, %v1814
    %v1825 = vsel %vm1818, %v1821, %v1824
    %v1826 = vsel %vm1815, nan, %v1825
    %v1827 = vand.u32 2147483647, %v464
    %vm1828 = vcmp.le.f32.partialorder %v1827, 0.7853982
    %vm1829 = vcmp.lt.s32.totalorder %v464, 0
    %v1830 = vand.u32 %v464, 2139095040
    %v1831 = vshrl.u32 %v1830, 23
    %v1832 = vsub.s32 %v1831, 127
    %v1833 = vand.u32 2147483647, %v464
    %v1834 = vand.u32 %v1833, 8388607
    %v1835 = vor.u32 %v1834, 8388608
    %v1836 = vsub.s32 0, %v1835
    %v1837 = vadd.s32 %v1832, 1
    %vm1838 = vcmp.gt.s32.totalorder %v1837, 0
    %v1839 = vsel %vm1838, %v1837, 0
    %v1840 = vshrl.u32 %v1839, 5
    %v1841 = vand.u32 %v1839, 31
    %v1842 = vsub.s32 32, %v1841
    %v1843 = vshrl.u32 683565275, %v1842
    %v1844 = vshll.u32 683565275, %v1841
    %v1845 = vshrl.u32 2475754826, %v1842
    %v1846 = vor.u32 %v1844, %v1845
    %v1847 = vshll.u32 2475754826, %v1841
    %v1848 = vshrl.u32 2131351028, %v1842
    %v1849 = vor.u32 %v1847, %v1848
    %v1850 = vshll.u32 2131351028, %v1841
    %v1851 = vshrl.u32 2102212464, %v1842
    %v1852 = vor.u32 %v1850, %v1851
    %v1853 = vshll.u32 2102212464, %v1841
    %v1854 = vshrl.u32 920167782, %v1842
    %v1855 = vor.u32 %v1853, %v1854
    %v1856 = vshll.u32 920167782, %v1841
    %v1857 = vshrl.u32 1326507024, %v1842
    %v1858 = vor.u32 %v1856, %v1857
    %vm1859 = vcmp.lt.s32.totalorder %v1840, 1
    %vm1860 = vcmp.lt.s32.totalorder %v1840, 2
    %vm1861 = vcmp.lt.s32.totalorder %v1840, 3
    %vm1862 = vcmp.lt.s32.totalorder %v1840, 4
    %v1863 = vsel %vm1859, %v1843, %v1846
    %v1864 = vsel %vm1862, %v1852, 2102212464
    %v1865 = vsel %vm1861, %v1849, %v1864
    %v1866 = vsel %vm1860, %v1863, %v1865
    %v1867 = vsel %vm1859, %v1846, %v1849
    %v1868 = vsel %vm1862, %v1855, 920167782
    %v1869 = vsel %vm1861, %v1852, %v1868
    %v1870 = vsel %vm1860, %v1867, %v1869
    %v1871 = vsel %vm1859, %v1849, %v1852
    %v1872 = vsel %vm1862, %v1858, 1326507024
    %v1873 = vsel %vm1861, %v1855, %v1872
    %v1874 = vsel %vm1860, %v1871, %v1873
    %v1875 = vshll.u32 %v1835, 8
    %v1876 = vmul.u32.u64.compose %v1875, %v1874
    %v1877 = vextract.low.u32 %v1876
    %v1878 = vextract.high.u32 %v1876
    %v1879 = vmul.u32.u64.compose %v1875, %v1870
    %v1880 = vextract.low.u32 %v1879
    %v1881 = vextract.high.u32 %v1879
    %v1882 = vmul.u32 %v1875, %v1866
    %v1883 = vadd.s32 %v1878, %v1880
    %vm1884 = vc.u32 %v1878, %v1880
    %v1885 = vadd.s32 %v1881, 1
    %v1886 = vsel %vm1884, %v1885, %v1881
    %v1887 = vadd.s32 %v1882, %v1886
    %v1888 = vadd.s32 %v1887, 536870912
    %v1889 = vshrl.u32 %v1888, 30
    %v1890 = vshll.u32 %v1889, 30
    %v1891 = vsub.s32 %v1887, %v1890
    %vm1892 = vcmp.lt.s32.totalorder %v1891, 0
    %v1893 = vsub.s32 0, %v1891
    %v1894 = vsel %vm1892, %v1893, %v1891
    %v1895 = vclz %v1894
    %v1896 = vsub.s32 %v1895, 2
    %vm1897 = vcmp.gt.s32.totalorder 0, %v1896
    %v1898 = vsel %vm1897, 0, %v1896
    %v1899 = vsub.s32 32, %v1898
    %v1900 = vshll.u32 %v1891, %v1898
    %v1901 = vshrl.u32 %v1883, %v1899
    %v1902 = vor.u32 %v1900, %v1901
    %v1903 = vsub.s32 4294967266, %v1898
    %v1904 = vadd.s32 %v1903, 127
    %v1905 = vshll.u32 %v1904, 23
    %v1906 = vor.u32 4788187, %v1905
    %v1907 = vand.u32 2147483647, %v1906
    %v1909 = vcvt.s32.f32 %v1902
    %v1910 = vmul.f32 %v1909, %v1907
    %v1911 = vxor.u32 %v1910, 2147483648
    %v1912 = vsel %vm1829, %v1911, %v1910
    %v1913 = vsub.s32 4, %v1889
    %v1914 = vsel %vm1829, %v1913, %v1889
    %v1915 = vsel %vm1828, %v464, %v1912
    %v1916 = vsel %vm1828, 0, %v1914
    %v1917 = vcosq.f32.pop %v1915
    %v1918 = vsinq.f32.pop %v1915
    %vm1919 = vweird.f32 %v464
    %v1920 = vadd.s32 %v1916, 3
    %v1921 = vand.u32 %v1920, 3
    %vm1922 = vcmp.lt.s32.totalorder %v1921, 2
    %vm1923 = vcmp.eq.s32.totalorder %v1921, 0
    %v1924 = vxor.u32 %v1918, 2147483648
    %v1925 = vsel %vm1923, %v1917, %v1924
    %vm1926 = vcmp.eq.s32.totalorder %v1921, 2
    %v1927 = vxor.u32 %v1917, 2147483648
    %v1928 = vsel %vm1926, %v1927, %v1918
    %v1929 = vsel %vm1922, %v1925, %v1928
    %v1930 = vsel %vm1919, nan, %v1929
    %v1931 = vand.u32 2147483647, %v465
    %vm1932 = vcmp.le.f32.partialorder %v1931, 0.7853982
    %vm1933 = vcmp.lt.s32.totalorder %v465, 0
    %v1934 = vand.u32 %v465, 2139095040
    %v1935 = vshrl.u32 %v1934, 23
    %v1936 = vsub.s32 %v1935, 127
    %v1937 = vand.u32 2147483647, %v465
    %v1938 = vand.u32 %v1937, 8388607
    %v1939 = vor.u32 %v1938, 8388608
    %v1940 = vsub.s32 0, %v1939
    %v1941 = vadd.s32 %v1936, 1
    %vm1942 = vcmp.gt.s32.totalorder %v1941, 0
    %v1943 = vsel %vm1942, %v1941, 0
    %v1944 = vshrl.u32 %v1943, 5
    %v1945 = vand.u32 %v1943, 31
    %v1946 = vsub.s32 32, %v1945
    %v1947 = vshrl.u32 683565275, %v1946
    %v1948 = vshll.u32 683565275, %v1945
    %v1949 = vshrl.u32 2475754826, %v1946
    %v1950 = vor.u32 %v1948, %v1949
    %v1951 = vshll.u32 2475754826, %v1945
    %v1952 = vshrl.u32 2131351028, %v1946
    %v1953 = vor.u32 %v1951, %v1952
    %v1954 = vshll.u32 2131351028, %v1945
    %v1955 = vshrl.u32 2102212464, %v1946
    %v1956 = vor.u32 %v1954, %v1955
    %v1957 = vshll.u32 2102212464, %v1945
    %v1958 = vshrl.u32 920167782, %v1946
    %v1959 = vor.u32 %v1957, %v1958
    %v1960 = vshll.u32 920167782, %v1945
    %v1961 = vshrl.u32 1326507024, %v1946
    %v1962 = vor.u32 %v1960, %v1961
    %vm1963 = vcmp.lt.s32.totalorder %v1944, 1
    %vm1964 = vcmp.lt.s32.totalorder %v1944, 2
    %vm1965 = vcmp.lt.s32.totalorder %v1944, 3
    %vm1966 = vcmp.lt.s32.totalorder %v1944, 4
    %v1967 = vsel %vm1963, %v1947, %v1950
    %v1968 = vsel %vm1966, %v1956, 2102212464
    %v1969 = vsel %vm1965, %v1953, %v1968
    %v1970 = vsel %vm1964, %v1967, %v1969
    %v1971 = vsel %vm1963, %v1950, %v1953
    %v1972 = vsel %vm1966, %v1959, 920167782
    %v1973 = vsel %vm1965, %v1956, %v1972
    %v1974 = vsel %vm1964, %v1971, %v1973
    %v1975 = vsel %vm1963, %v1953, %v1956
    %v1976 = vsel %vm1966, %v1962, 1326507024
    %v1977 = vsel %vm1965, %v1959, %v1976
    %v1978 = vsel %vm1964, %v1975, %v1977
    %v1979 = vshll.u32 %v1939, 8
    %v1980 = vmul.u32.u64.compose %v1979, %v1978
    %v1981 = vextract.low.u32 %v1980
    %v1982 = vextract.high.u32 %v1980
    %v1983 = vmul.u32.u64.compose %v1979, %v1974
    %v1984 = vextract.low.u32 %v1983
    %v1985 = vextract.high.u32 %v1983
    %v1986 = vmul.u32 %v1979, %v1970
    %v1987 = vadd.s32 %v1982, %v1984
    %vm1988 = vc.u32 %v1982, %v1984
    %v1989 = vadd.s32 %v1985, 1
    %v1990 = vsel %vm1988, %v1989, %v1985
    %v1991 = vadd.s32 %v1986, %v1990
    %v1992 = vadd.s32 %v1991, 536870912
    %v1993 = vshrl.u32 %v1992, 30
    %v1994 = vshll.u32 %v1993, 30
    %v1995 = vsub.s32 %v1991, %v1994
    %vm1996 = vcmp.lt.s32.totalorder %v1995, 0
    %v1997 = vsub.s32 0, %v1995
    %v1998 = vsel %vm1996, %v1997, %v1995
    %v1999 = vclz %v1998
    %v2000 = vsub.s32 %v1999, 2
    %vm2001 = vcmp.gt.s32.totalorder 0, %v2000
    %v2002 = vsel %vm2001, 0, %v2000
    %v2003 = vsub.s32 32, %v2002
    %v2004 = vshll.u32 %v1995, %v2002
    %v2005 = vshrl.u32 %v1987, %v2003
    %v2006 = vor.u32 %v2004, %v2005
    %v2007 = vsub.s32 4294967266, %v2002
    %v2008 = vadd.s32 %v2007, 127
    %v2009 = vshll.u32 %v2008, 23
    %v2010 = vor.u32 4788187, %v2009
    %v2011 = vand.u32 2147483647, %v2010
    %v2013 = vcvt.s32.f32 %v2006
    %v2014 = vmul.f32 %v2013, %v2011
    %v2015 = vxor.u32 %v2014, 2147483648
    %v2016 = vsel %vm1933, %v2015, %v2014
    %v2017 = vsub.s32 4, %v1993
    %v2018 = vsel %vm1933, %v2017, %v1993
    %v2019 = vsel %vm1932, %v465, %v2016
    %v2020 = vsel %vm1932, 0, %v2018
    %v2021 = vcosq.f32.pop %v2019
    %v2022 = vsinq.f32.pop %v2019
    %vm2023 = vweird.f32 %v465
    %v2024 = vadd.s32 %v2020, 3
    %v2025 = vand.u32 %v2024, 3
    %vm2026 = vcmp.lt.s32.totalorder %v2025, 2
    %vm2027 = vcmp.eq.s32.totalorder %v2025, 0
    %v2028 = vxor.u32 %v2022, 2147483648
    %v2029 = vsel %vm2027, %v2021, %v2028
    %vm2030 = vcmp.eq.s32.totalorder %v2025, 2
    %v2031 = vxor.u32 %v2021, 2147483648
    %v2032 = vsel %vm2030, %v2031, %v2022
    %v2033 = vsel %vm2026, %v2029, %v2032
    %v2034 = vsel %vm2023, nan, %v2033
    %v2035 = vand.u32 2147483647, %v466
    %vm2036 = vcmp.le.f32.partialorder %v2035, 0.7853982
    %vm2037 = vcmp.lt.s32.totalorder %v466, 0
    %v2038 = vand.u32 %v466, 2139095040
    %v2039 = vshrl.u32 %v2038, 23
    %v2040 = vsub.s32 %v2039, 127
    %v2041 = vand.u32 2147483647, %v466
    %v2042 = vand.u32 %v2041, 8388607
    %v2043 = vor.u32 %v2042, 8388608
    %v2044 = vsub.s32 0, %v2043
    %v2045 = vadd.s32 %v2040, 1
    %vm2046 = vcmp.gt.s32.totalorder %v2045, 0
    %v2047 = vsel %vm2046, %v2045, 0
    %v2048 = vshrl.u32 %v2047, 5
    %v2049 = vand.u32 %v2047, 31
    %v2050 = vsub.s32 32, %v2049
    %v2051 = vshrl.u32 683565275, %v2050
    %v2052 = vshll.u32 683565275, %v2049
    %v2053 = vshrl.u32 2475754826, %v2050
    %v2054 = vor.u32 %v2052, %v2053
    %v2055 = vshll.u32 2475754826, %v2049
    %v2056 = vshrl.u32 2131351028, %v2050
    %v2057 = vor.u32 %v2055, %v2056
    %v2058 = vshll.u32 2131351028, %v2049
    %v2059 = vshrl.u32 2102212464, %v2050
    %v2060 = vor.u32 %v2058, %v2059
    %v2061 = vshll.u32 2102212464, %v2049
    %v2062 = vshrl.u32 920167782, %v2050
    %v2063 = vor.u32 %v2061, %v2062
    %v2064 = vshll.u32 920167782, %v2049
    %v2065 = vshrl.u32 1326507024, %v2050
    %v2066 = vor.u32 %v2064, %v2065
    %vm2067 = vcmp.lt.s32.totalorder %v2048, 1
    %vm2068 = vcmp.lt.s32.totalorder %v2048, 2
    %vm2069 = vcmp.lt.s32.totalorder %v2048, 3
    %vm2070 = vcmp.lt.s32.totalorder %v2048, 4
    %v2071 = vsel %vm2067, %v2051, %v2054
    %v2072 = vsel %vm2070, %v2060, 2102212464
    %v2073 = vsel %vm2069, %v2057, %v2072
    %v2074 = vsel %vm2068, %v2071, %v2073
    %v2075 = vsel %vm2067, %v2054, %v2057
    %v2076 = vsel %vm2070, %v2063, 920167782
    %v2077 = vsel %vm2069, %v2060, %v2076
    %v2078 = vsel %vm2068, %v2075, %v2077
    %v2079 = vsel %vm2067, %v2057, %v2060
    %v2080 = vsel %vm2070, %v2066, 1326507024
    %v2081 = vsel %vm2069, %v2063, %v2080
    %v2082 = vsel %vm2068, %v2079, %v2081
    %v2083 = vshll.u32 %v2043, 8
    %v2084 = vmul.u32.u64.compose %v2083, %v2082
    %v2085 = vextract.low.u32 %v2084
    %v2086 = vextract.high.u32 %v2084
    %v2087 = vmul.u32.u64.compose %v2083, %v2078
    %v2088 = vextract.low.u32 %v2087
    %v2089 = vextract.high.u32 %v2087
    %v2090 = vmul.u32 %v2083, %v2074
    %v2091 = vadd.s32 %v2086, %v2088
    %vm2092 = vc.u32 %v2086, %v2088
    %v2093 = vadd.s32 %v2089, 1
    %v2094 = vsel %vm2092, %v2093, %v2089
    %v2095 = vadd.s32 %v2090, %v2094
    %v2096 = vadd.s32 %v2095, 536870912
    %v2097 = vshrl.u32 %v2096, 30
    %v2098 = vshll.u32 %v2097, 30
    %v2099 = vsub.s32 %v2095, %v2098
    %vm2100 = vcmp.lt.s32.totalorder %v2099, 0
    %v2101 = vsub.s32 0, %v2099
    %v2102 = vsel %vm2100, %v2101, %v2099
    %v2103 = vclz %v2102
    %v2104 = vsub.s32 %v2103, 2
    %vm2105 = vcmp.gt.s32.totalorder 0, %v2104
    %v2106 = vsel %vm2105, 0, %v2104
    %v2107 = vsub.s32 32, %v2106
    %v2108 = vshll.u32 %v2099, %v2106
    %v2109 = vshrl.u32 %v2091, %v2107
    %v2110 = vor.u32 %v2108, %v2109
    %v2111 = vsub.s32 4294967266, %v2106
    %v2112 = vadd.s32 %v2111, 127
    %v2113 = vshll.u32 %v2112, 23
    %v2114 = vor.u32 4788187, %v2113
    %v2115 = vand.u32 2147483647, %v2114
    %v2117 = vcvt.s32.f32 %v2110
    %v2118 = vmul.f32 %v2117, %v2115
    %v2119 = vxor.u32 %v2118, 2147483648
    %v2120 = vsel %vm2037, %v2119, %v2118
    %v2121 = vsub.s32 4, %v2097
    %v2122 = vsel %vm2037, %v2121, %v2097
    %v2123 = vsel %vm2036, %v466, %v2120
    %v2124 = vsel %vm2036, 0, %v2122
    %v2125 = vcosq.f32.pop %v2123
    %v2126 = vsinq.f32.pop %v2123
    %vm2127 = vweird.f32 %v466
    %v2128 = vadd.s32 %v2124, 3
    %v2129 = vand.u32 %v2128, 3
    %vm2130 = vcmp.lt.s32.totalorder %v2129, 2
    %vm2131 = vcmp.eq.s32.totalorder %v2129, 0
    %v2132 = vxor.u32 %v2126, 2147483648
    %v2133 = vsel %vm2131, %v2125, %v2132
    %vm2134 = vcmp.eq.s32.totalorder %v2129, 2
    %v2135 = vxor.u32 %v2125, 2147483648
    %v2136 = vsel %vm2134, %v2135, %v2126
    %v2137 = vsel %vm2130, %v2133, %v2136
    %v2138 = vsel %vm2127, nan, %v2137
    %v2139 = vmul.f32 %v292, %v1410
    %v2140 = vmul.f32 %v293, %v1514
    %v2141 = vmul.f32 %v294, %v1618
    %v2142 = vmul.f32 %v295, %v1722
    %v2143 = vmul.f32 %v296, %v1826
    %v2144 = vmul.f32 %v297, %v1930
    %v2145 = vmul.f32 %v298, %v2034
    %v2146 = vmul.f32 %v299, %v2138
    %2147 = vst [vmem:[%s6 + $0x8] sm:$0xff] %v2139
    %2148 = vst [vmem:[%s6 + $0x18] sm:$0xff] %v2140
    %2149 = vst [vmem:[%s6 + $0x28] sm:$0xff] %v2141
    %2150 = vst [vmem:[%s6 + $0x38] sm:$0xff] %v2142
    %2151 = vst [vmem:[%s6 + $0x48] sm:$0xff] %v2143
    %2152 = vst [vmem:[%s6 + $0x58] sm:$0xff] %v2144
    %2153 = vst [vmem:[%s6 + $0x68] sm:$0xff] %v2145
    %2154 = vst [vmem:[%s6 + $0x78] sm:$0xff] %v2146
    // Predicated region
    $region30: #{_device.2} parent=1 // pred_check
      _
    $region31: #{_device.2} parent=1 // pred_check_branch
      %2156 = sbr.rel (0) target = $region33
    $region32: #{_device.2} parent=1 // pred_region
      _
    $region33: #{_device.2} parent=1 // pred_fallthru
      _
    // Predicated region
    $region34: #{_device.2} parent=1 // pred_check
      _
    $region35: #{_device.2} parent=1 // pred_check_branch
      %2158 = sbr.rel (0) target = $region37
    $region36: #{_device.2} parent=1 // pred_region
      _
    $region37: #{_device.2} parent=1 // pred_fallthru
      _
    %2159 = vsyncpa [#allocation3], 1

// kernel: _device.3
$region0: #{_device.3}
  #allocation0 [shape = 'u32[]', space=smem, size = 0x4, offset = 0x4, fixed_abs, tag = 'smem constant byte address 0x4 - core index']
  #allocation1 [shape = 'u32[144,128]{1,0:T(1,128)}', space=vmem, size = 0x12000, scoped, tag = 'internal scratch']
  %s0 = inlined_call_operand.vmem [shape: f32[64,256], index: 0, kind: input, shape index: {}, may-alias: {0,1}]
  %s1 = inlined_call_operand.vmem [shape: f32[64,256], index: 1, kind: input, shape index: {}, may-alias: {0,1}]
  %s2 = inlined_call_operand.vmem [shape: f32[64,1], index: 2, kind: input, shape index: {}]
  %s3 = inlined_call_operand.vmem [shape: f32[64,3], index: 3, kind: input, shape index: {}]
  %s4 = inlined_call_operand.vmem [shape: f32[3,128], index: 4, kind: input, shape index: {}]
  %s5 = inlined_call_operand.vmem [shape: f32[64,128], index: 5, kind: output, shape index: {}]
  %s6 = sld [smem:[#allocation0]]
  $region106: #{_device.3} parent=0
    _
  %s8 = ssub.s32 1, %s6
  %s9 = scalar_select 0, %s8, %s6
  $region1: #{_device.3} parent=0
    #allocation2 [shape = 'u8[32768]{0}', space=vmem, size = 0x8000, scoped, tag = 'input window, operand 0, single buffered']
    #allocation3 [shape = 'u8[32768]{0}', space=vmem, size = 0x8000, scoped, tag = 'input window, operand 1, single buffered']
    // Predicated region
    $region2: #{_device.3} parent=1 // pred_check
      _
    $region3: #{_device.3} parent=1 // pred_check_branch
      %11 = sbr.rel (0) target = $region5
    $region4: #{_device.3} parent=1 // pred_region
      // Predicated region
      $region6: #{_device.3} parent=4 // pred_check
        _
      $region7: #{_device.3} parent=4 // pred_check_branch
        %13 = sbr.rel (0) target = $region9
      $region8: #{_device.3} parent=4 // pred_region
        // Predicated region
        $region10: #{_device.3} parent=8 // pred_check
          _
        $region11: #{_device.3} parent=8 // pred_check_branch
          %15 = sbr.rel (0) target = $region13
        $region12: #{_device.3} parent=8 // pred_region
          // Predicated region
          $region25: #{_device.3} parent=12 // pred_check
            _
          $region26: #{_device.3} parent=12 // pred_check_branch
            %44 = sbr.rel (0) target = $region28
          $region27: #{_device.3} parent=12 // pred_region
            loop: start=0, step=1, limit=1
            $region29: #{_device.3} parent=27 // loop_pre_header
              _
            $region30: #{_device.3} parent=27 // loop_header
              %s46 = sphi 0, %s50
              %p47 = scmp.ge.s32.totalorder %s46, 1
              %s51 = sphi %s0, %s0
              %s52 = sphi [#allocation2], [#allocation2]
            $region31: #{_device.3} parent=27 // loop_header_branch
              %49 = sbr.rel (%p47) target = $region35
            $region32: #{_device.3} parent=27 // loop_body
              %v53 = vld [vmem:[%s51] sm:$0xff]
              %54 = vst [vmem:[%s52] sm:$0xff] %v53
              %v55 = vld [vmem:[%s51 + $0x10] sm:$0xff]
              %56 = vst [vmem:[%s52 + $0x8] sm:$0xff] %v55
              %v57 = vld [vmem:[%s51 + $0x20] sm:$0xff]
              %58 = vst [vmem:[%s52 + $0x10] sm:$0xff] %v57
              %v59 = vld [vmem:[%s51 + $0x30] sm:$0xff]
              %60 = vst [vmem:[%s52 + $0x18] sm:$0xff] %v59
              %v61 = vld [vmem:[%s51 + $0x40] sm:$0xff]
              %62 = vst [vmem:[%s52 + $0x20] sm:$0xff] %v61
              %v63 = vld [vmem:[%s51 + $0x50] sm:$0xff]
              %64 = vst [vmem:[%s52 + $0x28] sm:$0xff] %v63
              %v65 = vld [vmem:[%s51 + $0x60] sm:$0xff]
              %66 = vst [vmem:[%s52 + $0x30] sm:$0xff] %v65
              %v67 = vld [vmem:[%s51 + $0x70] sm:$0xff]
              %68 = vst [vmem:[%s52 + $0x38] sm:$0xff] %v67
            $region33: #{_device.3} parent=27 // loop_footer
              %s50 = sadd.s32 1, %s46
            $region34: #{_device.3} parent=27 // loop_footer_branch
              %45 = sbr.rel target = $region30
            $region35: #{_device.3} parent=27 // loop_exit
              _
          $region28: #{_device.3} parent=12 // pred_fallthru
            _
          // Predicated region
          $region36: #{_device.3} parent=12 // pred_check
            _
          $region37: #{_device.3} parent=12 // pred_check_branch
            %70 = sbr.rel target = $region39
          $region38: #{_device.3} parent=12 // pred_region
            _
          $region39: #{_device.3} parent=12 // pred_fallthru
            _
        $region13: #{_device.3} parent=8 // pred_fallthru
          _
        // Predicated region
        $region14: #{_device.3} parent=8 // pred_check
          _
        $region15: #{_device.3} parent=8 // pred_check_branch
          %17 = sbr.rel target = $region17
        $region16: #{_device.3} parent=8 // pred_region
          loop: start=0, step=1, limit=1
          $region18: #{_device.3} parent=16 // loop_pre_header
            _
          $region19: #{_device.3} parent=16 // loop_header
            %s20 = sphi 0, %s24
            %p21 = scmp.ge.s32.totalorder %s20, 1
            %s25 = sphi %s0, %s0
            %s26 = sphi [#allocation2], [#allocation2]
          $region20: #{_device.3} parent=16 // loop_header_branch
            %23 = sbr.rel (%p21) target = $region24
          $region21: #{_device.3} parent=16 // loop_body
            %v27 = vld [vmem:[%s25] sm:$0xff]
            %28 = vst [vmem:[%s26] sm:$0xff] %v27
            %v29 = vld [vmem:[%s25 + $0x10] sm:$0xff]
            %30 = vst [vmem:[%s26 + $0x8] sm:$0xff] %v29
            %v31 = vld [vmem:[%s25 + $0x20] sm:$0xff]
            %32 = vst [vmem:[%s26 + $0x10] sm:$0xff] %v31
            %v33 = vld [vmem:[%s25 + $0x30] sm:$0xff]
            %34 = vst [vmem:[%s26 + $0x18] sm:$0xff] %v33
            %v35 = vld [vmem:[%s25 + $0x40] sm:$0xff]
            %36 = vst [vmem:[%s26 + $0x20] sm:$0xff] %v35
            %v37 = vld [vmem:[%s25 + $0x50] sm:$0xff]
            %38 = vst [vmem:[%s26 + $0x28] sm:$0xff] %v37
            %v39 = vld [vmem:[%s25 + $0x60] sm:$0xff]
            %40 = vst [vmem:[%s26 + $0x30] sm:$0xff] %v39
            %v41 = vld [vmem:[%s25 + $0x70] sm:$0xff]
            %42 = vst [vmem:[%s26 + $0x38] sm:$0xff] %v41
          $region22: #{_device.3} parent=16 // loop_footer
            %s24 = sadd.s32 1, %s20
          $region23: #{_device.3} parent=16 // loop_footer_branch
            %19 = sbr.rel target = $region19
          $region24: #{_device.3} parent=16 // loop_exit
            _
        $region17: #{_device.3} parent=8 // pred_fallthru
          _
      $region9: #{_device.3} parent=4 // pred_fallthru
        _
      %71 = vnop
    $region5: #{_device.3} parent=1 // pred_fallthru
      _
    // Predicated region
    $region40: #{_device.3} parent=1 // pred_check
      _
    $region41: #{_device.3} parent=1 // pred_check_branch
      %73 = sbr.rel (0) target = $region43
    $region42: #{_device.3} parent=1 // pred_region
      %s74 = scalar_lea.vmem %s1, 8
      // Predicated region
      $region44: #{_device.3} parent=42 // pred_check
        _
      $region45: #{_device.3} parent=42 // pred_check_branch
        %76 = sbr.rel (0) target = $region47
      $region46: #{_device.3} parent=42 // pred_region
        // Predicated region
        $region48: #{_device.3} parent=46 // pred_check
          _
        $region49: #{_device.3} parent=46 // pred_check_branch
          %78 = sbr.rel (0) target = $region51
        $region50: #{_device.3} parent=46 // pred_region
          // Predicated region
          $region63: #{_device.3} parent=50 // pred_check
            _
          $region64: #{_device.3} parent=50 // pred_check_branch
            %107 = sbr.rel (0) target = $region66
          $region65: #{_device.3} parent=50 // pred_region
            loop: start=0, step=1, limit=1
            $region67: #{_device.3} parent=65 // loop_pre_header
              _
            $region68: #{_device.3} parent=65 // loop_header
              %s109 = sphi 0, %s113
              %p110 = scmp.ge.s32.totalorder %s109, 1
              %s114 = sphi %s74, %s74
              %s115 = sphi [#allocation3], [#allocation3]
            $region69: #{_device.3} parent=65 // loop_header_branch
              %112 = sbr.rel (%p110) target = $region73
            $region70: #{_device.3} parent=65 // loop_body
              %v116 = vld [vmem:[%s114] sm:$0xff]
              %117 = vst [vmem:[%s115] sm:$0xff] %v116
              %v118 = vld [vmem:[%s114 + $0x10] sm:$0xff]
              %119 = vst [vmem:[%s115 + $0x8] sm:$0xff] %v118
              %v120 = vld [vmem:[%s114 + $0x20] sm:$0xff]
              %121 = vst [vmem:[%s115 + $0x10] sm:$0xff] %v120
              %v122 = vld [vmem:[%s114 + $0x30] sm:$0xff]
              %123 = vst [vmem:[%s115 + $0x18] sm:$0xff] %v122
              %v124 = vld [vmem:[%s114 + $0x40] sm:$0xff]
              %125 = vst [vmem:[%s115 + $0x20] sm:$0xff] %v124
              %v126 = vld [vmem:[%s114 + $0x50] sm:$0xff]
              %127 = vst [vmem:[%s115 + $0x28] sm:$0xff] %v126
              %v128 = vld [vmem:[%s114 + $0x60] sm:$0xff]
              %129 = vst [vmem:[%s115 + $0x30] sm:$0xff] %v128
              %v130 = vld [vmem:[%s114 + $0x70] sm:$0xff]
              %131 = vst [vmem:[%s115 + $0x38] sm:$0xff] %v130
            $region71: #{_device.3} parent=65 // loop_footer
              %s113 = sadd.s32 1, %s109
            $region72: #{_device.3} parent=65 // loop_footer_branch
              %108 = sbr.rel target = $region68
            $region73: #{_device.3} parent=65 // loop_exit
              _
          $region66: #{_device.3} parent=50 // pred_fallthru
            _
          // Predicated region
          $region74: #{_device.3} parent=50 // pred_check
            _
          $region75: #{_device.3} parent=50 // pred_check_branch
            %133 = sbr.rel target = $region77
          $region76: #{_device.3} parent=50 // pred_region
            _
          $region77: #{_device.3} parent=50 // pred_fallthru
            _
        $region51: #{_device.3} parent=46 // pred_fallthru
          _
        // Predicated region
        $region52: #{_device.3} parent=46 // pred_check
          _
        $region53: #{_device.3} parent=46 // pred_check_branch
          %80 = sbr.rel target = $region55
        $region54: #{_device.3} parent=46 // pred_region
          loop: start=0, step=1, limit=1
          $region56: #{_device.3} parent=54 // loop_pre_header
            _
          $region57: #{_device.3} parent=54 // loop_header
            %s83 = sphi 0, %s87
            %p84 = scmp.ge.s32.totalorder %s83, 1
            %s88 = sphi %s74, %s74
            %s89 = sphi [#allocation3], [#allocation3]
          $region58: #{_device.3} parent=54 // loop_header_branch
            %86 = sbr.rel (%p84) target = $region62
          $region59: #{_device.3} parent=54 // loop_body
            %v90 = vld [vmem:[%s88] sm:$0xff]
            %91 = vst [vmem:[%s89] sm:$0xff] %v90
            %v92 = vld [vmem:[%s88 + $0x10] sm:$0xff]
            %93 = vst [vmem:[%s89 + $0x8] sm:$0xff] %v92
            %v94 = vld [vmem:[%s88 + $0x20] sm:$0xff]
            %95 = vst [vmem:[%s89 + $0x10] sm:$0xff] %v94
            %v96 = vld [vmem:[%s88 + $0x30] sm:$0xff]
            %97 = vst [vmem:[%s89 + $0x18] sm:$0xff] %v96
            %v98 = vld [vmem:[%s88 + $0x40] sm:$0xff]
            %99 = vst [vmem:[%s89 + $0x20] sm:$0xff] %v98
            %v100 = vld [vmem:[%s88 + $0x50] sm:$0xff]
            %101 = vst [vmem:[%s89 + $0x28] sm:$0xff] %v100
            %v102 = vld [vmem:[%s88 + $0x60] sm:$0xff]
            %103 = vst [vmem:[%s89 + $0x30] sm:$0xff] %v102
            %v104 = vld [vmem:[%s88 + $0x70] sm:$0xff]
            %105 = vst [vmem:[%s89 + $0x38] sm:$0xff] %v104
          $region60: #{_device.3} parent=54 // loop_footer
            %s87 = sadd.s32 1, %s83
          $region61: #{_device.3} parent=54 // loop_footer_branch
            %82 = sbr.rel target = $region57
          $region62: #{_device.3} parent=54 // loop_exit
            _
        $region55: #{_device.3} parent=46 // pred_fallthru
          _
      $region47: #{_device.3} parent=42 // pred_fallthru
        _
      %134 = vnop
    $region43: #{_device.3} parent=1 // pred_fallthru
      _
    // Predicated region
    $region78: #{_device.3} parent=1 // pred_check
      _
    $region79: #{_device.3} parent=1 // pred_check_branch
      %136 = sbr.rel (0) target = $region81
    $region80: #{_device.3} parent=1 // pred_region
      _
    $region81: #{_device.3} parent=1 // pred_fallthru
      _
    // Predicated region
    $region82: #{_device.3} parent=1 // pred_check
      _
    $region83: #{_device.3} parent=1 // pred_check_branch
      %138 = sbr.rel (0) target = $region85
    $region84: #{_device.3} parent=1 // pred_region
      _
    $region85: #{_device.3} parent=1 // pred_fallthru
      _
    // Predicated region
    $region86: #{_device.3} parent=1 // pred_check
      _
    $region87: #{_device.3} parent=1 // pred_check_branch
      %140 = sbr.rel (0) target = $region89
    $region88: #{_device.3} parent=1 // pred_region
      _
    $region89: #{_device.3} parent=1 // pred_fallthru
      _
    // Predicated region
    $region90: #{_device.3} parent=1 // pred_check
      _
    $region91: #{_device.3} parent=1 // pred_check_branch
      %142 = sbr.rel (0) target = $region93
    $region92: #{_device.3} parent=1 // pred_region
      _
    $region93: #{_device.3} parent=1 // pred_fallthru
      _
    // Predicated region
    $region94: #{_device.3} parent=1 // pred_check
      _
    $region95: #{_device.3} parent=1 // pred_check_branch
      %144 = sbr.rel (0) target = $region97
    $region96: #{_device.3} parent=1 // pred_region
      _
    $region97: #{_device.3} parent=1 // pred_fallthru
      _
    %v145 = vld [vmem:[%s3] sm:$0xff]
    %v146 = vld [vmem:[%s3 + $0x8] sm:$0xff]
    %v147 = vld [vmem:[%s3 + $0x10] sm:$0xff]
    %v148 = vld [vmem:[%s3 + $0x18] sm:$0xff]
    %v149 = vld [vmem:[%s3 + $0x20] sm:$0xff]
    %v150 = vld [vmem:[%s3 + $0x28] sm:$0xff]
    %v151 = vld [vmem:[%s3 + $0x30] sm:$0xff]
    %v152 = vld [vmem:[%s3 + $0x38] sm:$0xff]
    %v153 = vld [vmem:[%s4] sm:$0x1]
    %155 = vset.pattern.permute.xlu0 0
    %156 = vperm.xlu0 %155, %v145
    %v157 = vpop.permute.xlu0 %156
    %160 = vset.pattern.permute.xlu0 0
    %161 = vperm.xlu0 %160, %v146
    %v162 = vpop.permute.xlu0 %161
    %165 = vset.pattern.permute.xlu0 0
    %166 = vperm.xlu0 %165, %v147
    %v167 = vpop.permute.xlu0 %166
    %170 = vset.pattern.permute.xlu0 0
    %171 = vperm.xlu0 %170, %v148
    %v172 = vpop.permute.xlu0 %171
    %175 = vset.pattern.permute.xlu0 0
    %176 = vperm.xlu0 %175, %v149
    %v177 = vpop.permute.xlu0 %176
    %180 = vset.pattern.permute.xlu0 0
    %181 = vperm.xlu0 %180, %v150
    %v182 = vpop.permute.xlu0 %181
    %185 = vset.pattern.permute.xlu0 0
    %186 = vperm.xlu0 %185, %v151
    %v187 = vpop.permute.xlu0 %186
    %190 = vset.pattern.permute.xlu0 0
    %191 = vperm.xlu0 %190, %v152
    %v192 = vpop.permute.xlu0 %191
    %v194 = vlaneseq
    %v195 = vshrl.u32 %v194, 7
    %v196 = vsub.s32 0, %v195
    %v197 = vrot.slane %v153, %v196
    %v198 = vmul.f32 %v157, %v197
    %v199 = vmul.f32 %v162, %v197
    %v200 = vmul.f32 %v167, %v197
    %v201 = vmul.f32 %v172, %v197
    %v202 = vmul.f32 %v177, %v197
    %v203 = vmul.f32 %v182, %v197
    %v204 = vmul.f32 %v187, %v197
    %v205 = vmul.f32 %v192, %v197
    %v206 = vld [vmem:[%s4 + $0x1] sm:$0x1]
    %207 = vset.pattern.permute.xlu0 1
    %208 = vperm.xlu0 %207, %v145
    %v209 = vpop.permute.xlu0 %208
    %211 = vset.pattern.permute.xlu0 1
    %212 = vperm.xlu0 %211, %v146
    %v213 = vpop.permute.xlu0 %212
    %215 = vset.pattern.permute.xlu0 1
    %216 = vperm.xlu0 %215, %v147
    %v217 = vpop.permute.xlu0 %216
    %219 = vset.pattern.permute.xlu0 1
    %220 = vperm.xlu0 %219, %v148
    %v221 = vpop.permute.xlu0 %220
    %223 = vset.pattern.permute.xlu0 1
    %224 = vperm.xlu0 %223, %v149
    %v225 = vpop.permute.xlu0 %224
    %227 = vset.pattern.permute.xlu0 1
    %228 = vperm.xlu0 %227, %v150
    %v229 = vpop.permute.xlu0 %228
    %231 = vset.pattern.permute.xlu0 1
    %232 = vperm.xlu0 %231, %v151
    %v233 = vpop.permute.xlu0 %232
    %235 = vset.pattern.permute.xlu0 1
    %236 = vperm.xlu0 %235, %v152
    %v237 = vpop.permute.xlu0 %236
    %v239 = vlaneseq
    %v240 = vshrl.u32 %v239, 7
    %v241 = vsub.s32 0, %v240
    %v242 = vrot.slane %v206, %v241
    %v243 = vmul.f32 %v209, %v242
    %v244 = vmul.f32 %v213, %v242
    %v245 = vmul.f32 %v217, %v242
    %v246 = vmul.f32 %v221, %v242
    %v247 = vmul.f32 %v225, %v242
    %v248 = vmul.f32 %v229, %v242
    %v249 = vmul.f32 %v233, %v242
    %v250 = vmul.f32 %v237, %v242
    %v251 = vadd.f32 %v198, %v243
    %v252 = vadd.f32 %v199, %v244
    %v253 = vadd.f32 %v200, %v245
    %v254 = vadd.f32 %v201, %v246
    %v255 = vadd.f32 %v202, %v247
    %v256 = vadd.f32 %v203, %v248
    %v257 = vadd.f32 %v204, %v249
    %v258 = vadd.f32 %v205, %v250
    %v259 = vld [vmem:[%s4 + $0x2] sm:$0x1]
    %260 = vset.pattern.permute.xlu0 2
    %261 = vperm.xlu0 %260, %v145
    %v262 = vpop.permute.xlu0 %261
    %264 = vset.pattern.permute.xlu0 2
    %265 = vperm.xlu0 %264, %v146
    %v266 = vpop.permute.xlu0 %265
    %268 = vset.pattern.permute.xlu0 2
    %269 = vperm.xlu0 %268, %v147
    %v270 = vpop.permute.xlu0 %269
    %272 = vset.pattern.permute.xlu0 2
    %273 = vperm.xlu0 %272, %v148
    %v274 = vpop.permute.xlu0 %273
    %276 = vset.pattern.permute.xlu0 2
    %277 = vperm.xlu0 %276, %v149
    %v278 = vpop.permute.xlu0 %277
    %280 = vset.pattern.permute.xlu0 2
    %281 = vperm.xlu0 %280, %v150
    %v282 = vpop.permute.xlu0 %281
    %284 = vset.pattern.permute.xlu0 2
    %285 = vperm.xlu0 %284, %v151
    %v286 = vpop.permute.xlu0 %285
    %288 = vset.pattern.permute.xlu0 2
    %289 = vperm.xlu0 %288, %v152
    %v290 = vpop.permute.xlu0 %289
    %v292 = vlaneseq
    %v293 = vshrl.u32 %v292, 7
    %v294 = vsub.s32 0, %v293
    %v295 = vrot.slane %v259, %v294
    %v296 = vmul.f32 %v262, %v295
    %v297 = vmul.f32 %v266, %v295
    %v298 = vmul.f32 %v270, %v295
    %v299 = vmul.f32 %v274, %v295
    %v300 = vmul.f32 %v278, %v295
    %v301 = vmul.f32 %v282, %v295
    %v302 = vmul.f32 %v286, %v295
    %v303 = vmul.f32 %v290, %v295
    %v304 = vadd.f32 %v251, %v296
    %v305 = vadd.f32 %v252, %v297
    %v306 = vadd.f32 %v253, %v298
    %v307 = vadd.f32 %v254, %v299
    %v308 = vadd.f32 %v255, %v300
    %v309 = vadd.f32 %v256, %v301
    %v310 = vadd.f32 %v257, %v302
    %v311 = vadd.f32 %v258, %v303
    %v312 = vld [vmem:[#allocation2] sm:$0xff]
    %v313 = vld [vmem:[#allocation2 + $0x8] sm:$0xff]
    %v314 = vld [vmem:[#allocation2 + $0x10] sm:$0xff]
    %v315 = vld [vmem:[#allocation2 + $0x18] sm:$0xff]
    %v316 = vld [vmem:[#allocation2 + $0x20] sm:$0xff]
    %v317 = vld [vmem:[#allocation2 + $0x28] sm:$0xff]
    %v318 = vld [vmem:[#allocation2 + $0x30] sm:$0xff]
    %v319 = vld [vmem:[#allocation2 + $0x38] sm:$0xff]
    %v320 = vand.u32 2147483647, %v304
    %vm321 = vcmp.le.f32.partialorder %v320, 0.7853982
    %vm322 = vcmp.lt.s32.totalorder %v304, 0
    %v323 = vand.u32 %v304, 2139095040
    %v324 = vshrl.u32 %v323, 23
    %v325 = vsub.s32 %v324, 127
    %v326 = vand.u32 2147483647, %v304
    %v327 = vand.u32 %v326, 8388607
    %v328 = vor.u32 %v327, 8388608
    %v329 = vsub.s32 0, %v328
    %v330 = vadd.s32 %v325, 1
    %vm331 = vcmp.gt.s32.totalorder %v330, 0
    %v332 = vsel %vm331, %v330, 0
    %v333 = vshrl.u32 %v332, 5
    %v334 = vand.u32 %v332, 31
    %v335 = vsub.s32 32, %v334
    %v336 = vshrl.u32 683565275, %v335
    %v337 = vshll.u32 683565275, %v334
    %v338 = vshrl.u32 2475754826, %v335
    %v339 = vor.u32 %v337, %v338
    %v340 = vshll.u32 2475754826, %v334
    %v341 = vshrl.u32 2131351028, %v335
    %v342 = vor.u32 %v340, %v341
    %v343 = vshll.u32 2131351028, %v334
    %v344 = vshrl.u32 2102212464, %v335
    %v345 = vor.u32 %v343, %v344
    %v346 = vshll.u32 2102212464, %v334
    %v347 = vshrl.u32 920167782, %v335
    %v348 = vor.u32 %v346, %v347
    %v349 = vshll.u32 920167782, %v334
    %v350 = vshrl.u32 1326507024, %v335
    %v351 = vor.u32 %v349, %v350
    %vm352 = vcmp.lt.s32.totalorder %v333, 1
    %vm353 = vcmp.lt.s32.totalorder %v333, 2
    %vm354 = vcmp.lt.s32.totalorder %v333, 3
    %vm355 = vcmp.lt.s32.totalorder %v333, 4
    %v356 = vsel %vm352, %v336, %v339
    %v357 = vsel %vm355, %v345, 2102212464
    %v358 = vsel %vm354, %v342, %v357
    %v359 = vsel %vm353, %v356, %v358
    %v360 = vsel %vm352, %v339, %v342
    %v361 = vsel %vm355, %v348, 920167782
    %v362 = vsel %vm354, %v345, %v361
    %v363 = vsel %vm353, %v360, %v362
    %v364 = vsel %vm352, %v342, %v345
    %v365 = vsel %vm355, %v351, 1326507024
    %v366 = vsel %vm354, %v348, %v365
    %v367 = vsel %vm353, %v364, %v366
    %v368 = vshll.u32 %v328, 8
    %v369 = vmul.u32.u64.compose %v368, %v367
    %v370 = vextract.low.u32 %v369
    %v371 = vextract.high.u32 %v369
    %v372 = vmul.u32.u64.compose %v368, %v363
    %v373 = vextract.low.u32 %v372
    %v374 = vextract.high.u32 %v372
    %v375 = vmul.u32 %v368, %v359
    %v376 = vadd.s32 %v371, %v373
    %vm377 = vc.u32 %v371, %v373
    %v378 = vadd.s32 %v374, 1
    %v379 = vsel %vm377, %v378, %v374
    %v380 = vadd.s32 %v375, %v379
    %v381 = vadd.s32 %v380, 536870912
    %v382 = vshrl.u32 %v381, 30
    %v383 = vshll.u32 %v382, 30
    %v384 = vsub.s32 %v380, %v383
    %vm385 = vcmp.lt.s32.totalorder %v384, 0
    %v386 = vsub.s32 0, %v384
    %v387 = vsel %vm385, %v386, %v384
    %v388 = vclz %v387
    %v389 = vsub.s32 %v388, 2
    %vm390 = vcmp.gt.s32.totalorder 0, %v389
    %v391 = vsel %vm390, 0, %v389
    %v392 = vsub.s32 32, %v391
    %v393 = vshll.u32 %v384, %v391
    %v394 = vshrl.u32 %v376, %v392
    %v395 = vor.u32 %v393, %v394
    %v396 = vsub.s32 4294967266, %v391
    %v397 = vadd.s32 %v396, 127
    %v398 = vshll.u32 %v397, 23
    %v399 = vor.u32 4788187, %v398
    %v400 = vand.u32 2147483647, %v399
    %v402 = vcvt.s32.f32 %v395
    %v403 = vmul.f32 %v402, %v400
    %v404 = vxor.u32 %v403, 2147483648
    %v405 = vsel %vm322, %v404, %v403
    %v406 = vsub.s32 4, %v382
    %v407 = vsel %vm322, %v406, %v382
    %v408 = vsel %vm321, %v304, %v405
    %v409 = vsel %vm321, 0, %v407
    %v410 = vcosq.f32.pop %v408
    %v411 = vsinq.f32.pop %v408
    %vm412 = vweird.f32 %v304
    %v413 = vand.u32 %v409, 3
    %vm414 = vcmp.lt.s32.totalorder %v413, 2
    %vm415 = vcmp.eq.s32.totalorder %v413, 0
    %v416 = vxor.u32 %v411, 2147483648
    %v417 = vsel %vm415, %v410, %v416
    %vm418 = vcmp.eq.s32.totalorder %v413, 2
    %v419 = vxor.u32 %v410, 2147483648
    %v420 = vsel %vm418, %v419, %v411
    %v421 = vsel %vm414, %v417, %v420
    %v422 = vsel %vm412, nan, %v421
    %v423 = vand.u32 2147483647, %v305
    %vm424 = vcmp.le.f32.partialorder %v423, 0.7853982
    %vm425 = vcmp.lt.s32.totalorder %v305, 0
    %v426 = vand.u32 %v305, 2139095040
    %v427 = vshrl.u32 %v426, 23
    %v428 = vsub.s32 %v427, 127
    %v429 = vand.u32 2147483647, %v305
    %v430 = vand.u32 %v429, 8388607
    %v431 = vor.u32 %v430, 8388608
    %v432 = vsub.s32 0, %v431
    %v433 = vadd.s32 %v428, 1
    %vm434 = vcmp.gt.s32.totalorder %v433, 0
    %v435 = vsel %vm434, %v433, 0
    %v436 = vshrl.u32 %v435, 5
    %v437 = vand.u32 %v435, 31
    %v438 = vsub.s32 32, %v437
    %v439 = vshrl.u32 683565275, %v438
    %v440 = vshll.u32 683565275, %v437
    %v441 = vshrl.u32 2475754826, %v438
    %v442 = vor.u32 %v440, %v441
    %v443 = vshll.u32 2475754826, %v437
    %v444 = vshrl.u32 2131351028, %v438
    %v445 = vor.u32 %v443, %v444
    %v446 = vshll.u32 2131351028, %v437
    %v447 = vshrl.u32 2102212464, %v438
    %v448 = vor.u32 %v446, %v447
    %v449 = vshll.u32 2102212464, %v437
    %v450 = vshrl.u32 920167782, %v438
    %v451 = vor.u32 %v449, %v450
    %v452 = vshll.u32 920167782, %v437
    %v453 = vshrl.u32 1326507024, %v438
    %v454 = vor.u32 %v452, %v453
    %vm455 = vcmp.lt.s32.totalorder %v436, 1
    %vm456 = vcmp.lt.s32.totalorder %v436, 2
    %vm457 = vcmp.lt.s32.totalorder %v436, 3
    %vm458 = vcmp.lt.s32.totalorder %v436, 4
    %v459 = vsel %vm455, %v439, %v442
    %v460 = vsel %vm458, %v448, 2102212464
    %v461 = vsel %vm457, %v445, %v460
    %v462 = vsel %vm456, %v459, %v461
    %v463 = vsel %vm455, %v442, %v445
    %v464 = vsel %vm458, %v451, 920167782
    %v465 = vsel %vm457, %v448, %v464
    %v466 = vsel %vm456, %v463, %v465
    %v467 = vsel %vm455, %v445, %v448
    %v468 = vsel %vm458, %v454, 1326507024
    %v469 = vsel %vm457, %v451, %v468
    %v470 = vsel %vm456, %v467, %v469
    %v471 = vshll.u32 %v431, 8
    %v472 = vmul.u32.u64.compose %v471, %v470
    %v473 = vextract.low.u32 %v472
    %v474 = vextract.high.u32 %v472
    %v475 = vmul.u32.u64.compose %v471, %v466
    %v476 = vextract.low.u32 %v475
    %v477 = vextract.high.u32 %v475
    %v478 = vmul.u32 %v471, %v462
    %v479 = vadd.s32 %v474, %v476
    %vm480 = vc.u32 %v474, %v476
    %v481 = vadd.s32 %v477, 1
    %v482 = vsel %vm480, %v481, %v477
    %v483 = vadd.s32 %v478, %v482
    %v484 = vadd.s32 %v483, 536870912
    %v485 = vshrl.u32 %v484, 30
    %v486 = vshll.u32 %v485, 30
    %v487 = vsub.s32 %v483, %v486
    %vm488 = vcmp.lt.s32.totalorder %v487, 0
    %v489 = vsub.s32 0, %v487
    %v490 = vsel %vm488, %v489, %v487
    %v491 = vclz %v490
    %v492 = vsub.s32 %v491, 2
    %vm493 = vcmp.gt.s32.totalorder 0, %v492
    %v494 = vsel %vm493, 0, %v492
    %v495 = vsub.s32 32, %v494
    %v496 = vshll.u32 %v487, %v494
    %v497 = vshrl.u32 %v479, %v495
    %v498 = vor.u32 %v496, %v497
    %v499 = vsub.s32 4294967266, %v494
    %v500 = vadd.s32 %v499, 127
    %v501 = vshll.u32 %v500, 23
    %v502 = vor.u32 4788187, %v501
    %v503 = vand.u32 2147483647, %v502
    %v505 = vcvt.s32.f32 %v498
    %v506 = vmul.f32 %v505, %v503
    %v507 = vxor.u32 %v506, 2147483648
    %v508 = vsel %vm425, %v507, %v506
    %v509 = vsub.s32 4, %v485
    %v510 = vsel %vm425, %v509, %v485
    %v511 = vsel %vm424, %v305, %v508
    %v512 = vsel %vm424, 0, %v510
    %v513 = vcosq.f32.pop %v511
    %v514 = vsinq.f32.pop %v511
    %vm515 = vweird.f32 %v305
    %v516 = vand.u32 %v512, 3
    %vm517 = vcmp.lt.s32.totalorder %v516, 2
    %vm518 = vcmp.eq.s32.totalorder %v516, 0
    %v519 = vxor.u32 %v514, 2147483648
    %v520 = vsel %vm518, %v513, %v519
    %vm521 = vcmp.eq.s32.totalorder %v516, 2
    %v522 = vxor.u32 %v513, 2147483648
    %v523 = vsel %vm521, %v522, %v514
    %v524 = vsel %vm517, %v520, %v523
    %v525 = vsel %vm515, nan, %v524
    %v526 = vand.u32 2147483647, %v306
    %vm527 = vcmp.le.f32.partialorder %v526, 0.7853982
    %vm528 = vcmp.lt.s32.totalorder %v306, 0
    %v529 = vand.u32 %v306, 2139095040
    %v530 = vshrl.u32 %v529, 23
    %v531 = vsub.s32 %v530, 127
    %v532 = vand.u32 2147483647, %v306
    %v533 = vand.u32 %v532, 8388607
    %v534 = vor.u32 %v533, 8388608
    %v535 = vsub.s32 0, %v534
    %v536 = vadd.s32 %v531, 1
    %vm537 = vcmp.gt.s32.totalorder %v536, 0
    %v538 = vsel %vm537, %v536, 0
    %v539 = vshrl.u32 %v538, 5
    %v540 = vand.u32 %v538, 31
    %v541 = vsub.s32 32, %v540
    %v542 = vshrl.u32 683565275, %v541
    %v543 = vshll.u32 683565275, %v540
    %v544 = vshrl.u32 2475754826, %v541
    %v545 = vor.u32 %v543, %v544
    %v546 = vshll.u32 2475754826, %v540
    %v547 = vshrl.u32 2131351028, %v541
    %v548 = vor.u32 %v546, %v547
    %v549 = vshll.u32 2131351028, %v540
    %v550 = vshrl.u32 2102212464, %v541
    %v551 = vor.u32 %v549, %v550
    %v552 = vshll.u32 2102212464, %v540
    %v553 = vshrl.u32 920167782, %v541
    %v554 = vor.u32 %v552, %v553
    %v555 = vshll.u32 920167782, %v540
    %v556 = vshrl.u32 1326507024, %v541
    %v557 = vor.u32 %v555, %v556
    %vm558 = vcmp.lt.s32.totalorder %v539, 1
    %vm559 = vcmp.lt.s32.totalorder %v539, 2
    %vm560 = vcmp.lt.s32.totalorder %v539, 3
    %vm561 = vcmp.lt.s32.totalorder %v539, 4
    %v562 = vsel %vm558, %v542, %v545
    %v563 = vsel %vm561, %v551, 2102212464
    %v564 = vsel %vm560, %v548, %v563
    %v565 = vsel %vm559, %v562, %v564
    %v566 = vsel %vm558, %v545, %v548
    %v567 = vsel %vm561, %v554, 920167782
    %v568 = vsel %vm560, %v551, %v567
    %v569 = vsel %vm559, %v566, %v568
    %v570 = vsel %vm558, %v548, %v551
    %v571 = vsel %vm561, %v557, 1326507024
    %v572 = vsel %vm560, %v554, %v571
    %v573 = vsel %vm559, %v570, %v572
    %v574 = vshll.u32 %v534, 8
    %v575 = vmul.u32.u64.compose %v574, %v573
    %v576 = vextract.low.u32 %v575
    %v577 = vextract.high.u32 %v575
    %v578 = vmul.u32.u64.compose %v574, %v569
    %v579 = vextract.low.u32 %v578
    %v580 = vextract.high.u32 %v578
    %v581 = vmul.u32 %v574, %v565
    %v582 = vadd.s32 %v577, %v579
    %vm583 = vc.u32 %v577, %v579
    %v584 = vadd.s32 %v580, 1
    %v585 = vsel %vm583, %v584, %v580
    %v586 = vadd.s32 %v581, %v585
    %v587 = vadd.s32 %v586, 536870912
    %v588 = vshrl.u32 %v587, 30
    %v589 = vshll.u32 %v588, 30
    %v590 = vsub.s32 %v586, %v589
    %vm591 = vcmp.lt.s32.totalorder %v590, 0
    %v592 = vsub.s32 0, %v590
    %v593 = vsel %vm591, %v592, %v590
    %v594 = vclz %v593
    %v595 = vsub.s32 %v594, 2
    %vm596 = vcmp.gt.s32.totalorder 0, %v595
    %v597 = vsel %vm596, 0, %v595
    %v598 = vsub.s32 32, %v597
    %v599 = vshll.u32 %v590, %v597
    %v600 = vshrl.u32 %v582, %v598
    %v601 = vor.u32 %v599, %v600
    %v602 = vsub.s32 4294967266, %v597
    %v603 = vadd.s32 %v602, 127
    %v604 = vshll.u32 %v603, 23
    %v605 = vor.u32 4788187, %v604
    %v606 = vand.u32 2147483647, %v605
    %v608 = vcvt.s32.f32 %v601
    %v609 = vmul.f32 %v608, %v606
    %v610 = vxor.u32 %v609, 2147483648
    %v611 = vsel %vm528, %v610, %v609
    %v612 = vsub.s32 4, %v588
    %v613 = vsel %vm528, %v612, %v588
    %v614 = vsel %vm527, %v306, %v611
    %v615 = vsel %vm527, 0, %v613
    %v616 = vcosq.f32.pop %v614
    %v617 = vsinq.f32.pop %v614
    %vm618 = vweird.f32 %v306
    %v619 = vand.u32 %v615, 3
    %vm620 = vcmp.lt.s32.totalorder %v619, 2
    %vm621 = vcmp.eq.s32.totalorder %v619, 0
    %v622 = vxor.u32 %v617, 2147483648
    %v623 = vsel %vm621, %v616, %v622
    %vm624 = vcmp.eq.s32.totalorder %v619, 2
    %v625 = vxor.u32 %v616, 2147483648
    %v626 = vsel %vm624, %v625, %v617
    %v627 = vsel %vm620, %v623, %v626
    %v628 = vsel %vm618, nan, %v627
    %v629 = vand.u32 2147483647, %v307
    %vm630 = vcmp.le.f32.partialorder %v629, 0.7853982
    %vm631 = vcmp.lt.s32.totalorder %v307, 0
    %v632 = vand.u32 %v307, 2139095040
    %v633 = vshrl.u32 %v632, 23
    %v634 = vsub.s32 %v633, 127
    %v635 = vand.u32 2147483647, %v307
    %v636 = vand.u32 %v635, 8388607
    %v637 = vor.u32 %v636, 8388608
    %v638 = vsub.s32 0, %v637
    %v639 = vadd.s32 %v634, 1
    %vm640 = vcmp.gt.s32.totalorder %v639, 0
    %v641 = vsel %vm640, %v639, 0
    %v642 = vshrl.u32 %v641, 5
    %v643 = vand.u32 %v641, 31
    %v644 = vsub.s32 32, %v643
    %v645 = vshrl.u32 683565275, %v644
    %v646 = vshll.u32 683565275, %v643
    %v647 = vshrl.u32 2475754826, %v644
    %v648 = vor.u32 %v646, %v647
    %v649 = vshll.u32 2475754826, %v643
    %v650 = vshrl.u32 2131351028, %v644
    %v651 = vor.u32 %v649, %v650
    %v652 = vshll.u32 2131351028, %v643
    %v653 = vshrl.u32 2102212464, %v644
    %v654 = vor.u32 %v652, %v653
    %v655 = vshll.u32 2102212464, %v643
    %v656 = vshrl.u32 920167782, %v644
    %v657 = vor.u32 %v655, %v656
    %v658 = vshll.u32 920167782, %v643
    %v659 = vshrl.u32 1326507024, %v644
    %v660 = vor.u32 %v658, %v659
    %vm661 = vcmp.lt.s32.totalorder %v642, 1
    %vm662 = vcmp.lt.s32.totalorder %v642, 2
    %vm663 = vcmp.lt.s32.totalorder %v642, 3
    %vm664 = vcmp.lt.s32.totalorder %v642, 4
    %v665 = vsel %vm661, %v645, %v648
    %v666 = vsel %vm664, %v654, 2102212464
    %v667 = vsel %vm663, %v651, %v666
    %v668 = vsel %vm662, %v665, %v667
    %v669 = vsel %vm661, %v648, %v651
    %v670 = vsel %vm664, %v657, 920167782
    %v671 = vsel %vm663, %v654, %v670
    %v672 = vsel %vm662, %v669, %v671
    %v673 = vsel %vm661, %v651, %v654
    %v674 = vsel %vm664, %v660, 1326507024
    %v675 = vsel %vm663, %v657, %v674
    %v676 = vsel %vm662, %v673, %v675
    %v677 = vshll.u32 %v637, 8
    %v678 = vmul.u32.u64.compose %v677, %v676
    %v679 = vextract.low.u32 %v678
    %v680 = vextract.high.u32 %v678
    %v681 = vmul.u32.u64.compose %v677, %v672
    %v682 = vextract.low.u32 %v681
    %v683 = vextract.high.u32 %v681
    %v684 = vmul.u32 %v677, %v668
    %v685 = vadd.s32 %v680, %v682
    %vm686 = vc.u32 %v680, %v682
    %v687 = vadd.s32 %v683, 1
    %v688 = vsel %vm686, %v687, %v683
    %v689 = vadd.s32 %v684, %v688
    %v690 = vadd.s32 %v689, 536870912
    %v691 = vshrl.u32 %v690, 30
    %v692 = vshll.u32 %v691, 30
    %v693 = vsub.s32 %v689, %v692
    %vm694 = vcmp.lt.s32.totalorder %v693, 0
    %v695 = vsub.s32 0, %v693
    %v696 = vsel %vm694, %v695, %v693
    %v697 = vclz %v696
    %v698 = vsub.s32 %v697, 2
    %vm699 = vcmp.gt.s32.totalorder 0, %v698
    %v700 = vsel %vm699, 0, %v698
    %v701 = vsub.s32 32, %v700
    %v702 = vshll.u32 %v693, %v700
    %v703 = vshrl.u32 %v685, %v701
    %v704 = vor.u32 %v702, %v703
    %v705 = vsub.s32 4294967266, %v700
    %v706 = vadd.s32 %v705, 127
    %v707 = vshll.u32 %v706, 23
    %v708 = vor.u32 4788187, %v707
    %v709 = vand.u32 2147483647, %v708
    %v711 = vcvt.s32.f32 %v704
    %v712 = vmul.f32 %v711, %v709
    %v713 = vxor.u32 %v712, 2147483648
    %v714 = vsel %vm631, %v713, %v712
    %v715 = vsub.s32 4, %v691
    %v716 = vsel %vm631, %v715, %v691
    %v717 = vsel %vm630, %v307, %v714
    %v718 = vsel %vm630, 0, %v716
    %v719 = vcosq.f32.pop %v717
    %v720 = vsinq.f32.pop %v717
    %vm721 = vweird.f32 %v307
    %v722 = vand.u32 %v718, 3
    %vm723 = vcmp.lt.s32.totalorder %v722, 2
    %vm724 = vcmp.eq.s32.totalorder %v722, 0
    %v725 = vxor.u32 %v720, 2147483648
    %v726 = vsel %vm724, %v719, %v725
    %vm727 = vcmp.eq.s32.totalorder %v722, 2
    %v728 = vxor.u32 %v719, 2147483648
    %v729 = vsel %vm727, %v728, %v720
    %v730 = vsel %vm723, %v726, %v729
    %v731 = vsel %vm721, nan, %v730
    %v732 = vand.u32 2147483647, %v308
    %vm733 = vcmp.le.f32.partialorder %v732, 0.7853982
    %vm734 = vcmp.lt.s32.totalorder %v308, 0
    %v735 = vand.u32 %v308, 2139095040
    %v736 = vshrl.u32 %v735, 23
    %v737 = vsub.s32 %v736, 127
    %v738 = vand.u32 2147483647, %v308
    %v739 = vand.u32 %v738, 8388607
    %v740 = vor.u32 %v739, 8388608
    %v741 = vsub.s32 0, %v740
    %v742 = vadd.s32 %v737, 1
    %vm743 = vcmp.gt.s32.totalorder %v742, 0
    %v744 = vsel %vm743, %v742, 0
    %v745 = vshrl.u32 %v744, 5
    %v746 = vand.u32 %v744, 31
    %v747 = vsub.s32 32, %v746
    %v748 = vshrl.u32 683565275, %v747
    %v749 = vshll.u32 683565275, %v746
    %v750 = vshrl.u32 2475754826, %v747
    %v751 = vor.u32 %v749, %v750
    %v752 = vshll.u32 2475754826, %v746
    %v753 = vshrl.u32 2131351028, %v747
    %v754 = vor.u32 %v752, %v753
    %v755 = vshll.u32 2131351028, %v746
    %v756 = vshrl.u32 2102212464, %v747
    %v757 = vor.u32 %v755, %v756
    %v758 = vshll.u32 2102212464, %v746
    %v759 = vshrl.u32 920167782, %v747
    %v760 = vor.u32 %v758, %v759
    %v761 = vshll.u32 920167782, %v746
    %v762 = vshrl.u32 1326507024, %v747
    %v763 = vor.u32 %v761, %v762
    %vm764 = vcmp.lt.s32.totalorder %v745, 1
    %vm765 = vcmp.lt.s32.totalorder %v745, 2
    %vm766 = vcmp.lt.s32.totalorder %v745, 3
    %vm767 = vcmp.lt.s32.totalorder %v745, 4
    %v768 = vsel %vm764, %v748, %v751
    %v769 = vsel %vm767, %v757, 2102212464
    %v770 = vsel %vm766, %v754, %v769
    %v771 = vsel %vm765, %v768, %v770
    %v772 = vsel %vm764, %v751, %v754
    %v773 = vsel %vm767, %v760, 920167782
    %v774 = vsel %vm766, %v757, %v773
    %v775 = vsel %vm765, %v772, %v774
    %v776 = vsel %vm764, %v754, %v757
    %v777 = vsel %vm767, %v763, 1326507024
    %v778 = vsel %vm766, %v760, %v777
    %v779 = vsel %vm765, %v776, %v778
    %v780 = vshll.u32 %v740, 8
    %v781 = vmul.u32.u64.compose %v780, %v779
    %v782 = vextract.low.u32 %v781
    %v783 = vextract.high.u32 %v781
    %v784 = vmul.u32.u64.compose %v780, %v775
    %v785 = vextract.low.u32 %v784
    %v786 = vextract.high.u32 %v784
    %v787 = vmul.u32 %v780, %v771
    %v788 = vadd.s32 %v783, %v785
    %vm789 = vc.u32 %v783, %v785
    %v790 = vadd.s32 %v786, 1
    %v791 = vsel %vm789, %v790, %v786
    %v792 = vadd.s32 %v787, %v791
    %v793 = vadd.s32 %v792, 536870912
    %v794 = vshrl.u32 %v793, 30
    %v795 = vshll.u32 %v794, 30
    %v796 = vsub.s32 %v792, %v795
    %vm797 = vcmp.lt.s32.totalorder %v796, 0
    %v798 = vsub.s32 0, %v796
    %v799 = vsel %vm797, %v798, %v796
    %v800 = vclz %v799
    %v801 = vsub.s32 %v800, 2
    %vm802 = vcmp.gt.s32.totalorder 0, %v801
    %v803 = vsel %vm802, 0, %v801
    %v804 = vsub.s32 32, %v803
    %v805 = vshll.u32 %v796, %v803
    %v806 = vshrl.u32 %v788, %v804
    %v807 = vor.u32 %v805, %v806
    %v808 = vsub.s32 4294967266, %v803
    %v809 = vadd.s32 %v808, 127
    %v810 = vshll.u32 %v809, 23
    %v811 = vor.u32 4788187, %v810
    %v812 = vand.u32 2147483647, %v811
    %v814 = vcvt.s32.f32 %v807
    %v815 = vmul.f32 %v814, %v812
    %v816 = vxor.u32 %v815, 2147483648
    %v817 = vsel %vm734, %v816, %v815
    %v818 = vsub.s32 4, %v794
    %v819 = vsel %vm734, %v818, %v794
    %v820 = vsel %vm733, %v308, %v817
    %v821 = vsel %vm733, 0, %v819
    %v822 = vcosq.f32.pop %v820
    %v823 = vsinq.f32.pop %v820
    %vm824 = vweird.f32 %v308
    %v825 = vand.u32 %v821, 3
    %vm826 = vcmp.lt.s32.totalorder %v825, 2
    %vm827 = vcmp.eq.s32.totalorder %v825, 0
    %v828 = vxor.u32 %v823, 2147483648
    %v829 = vsel %vm827, %v822, %v828
    %vm830 = vcmp.eq.s32.totalorder %v825, 2
    %v831 = vxor.u32 %v822, 2147483648
    %v832 = vsel %vm830, %v831, %v823
    %v833 = vsel %vm826, %v829, %v832
    %v834 = vsel %vm824, nan, %v833
    %v835 = vand.u32 2147483647, %v309
    %vm836 = vcmp.le.f32.partialorder %v835, 0.7853982
    %vm837 = vcmp.lt.s32.totalorder %v309, 0
    %v838 = vand.u32 %v309, 2139095040
    %v839 = vshrl.u32 %v838, 23
    %v840 = vsub.s32 %v839, 127
    %v841 = vand.u32 2147483647, %v309
    %v842 = vand.u32 %v841, 8388607
    %v843 = vor.u32 %v842, 8388608
    %v844 = vsub.s32 0, %v843
    %v845 = vadd.s32 %v840, 1
    %vm846 = vcmp.gt.s32.totalorder %v845, 0
    %v847 = vsel %vm846, %v845, 0
    %v848 = vshrl.u32 %v847, 5
    %v849 = vand.u32 %v847, 31
    %v850 = vsub.s32 32, %v849
    %v851 = vshrl.u32 683565275, %v850
    %v852 = vshll.u32 683565275, %v849
    %v853 = vshrl.u32 2475754826, %v850
    %v854 = vor.u32 %v852, %v853
    %v855 = vshll.u32 2475754826, %v849
    %v856 = vshrl.u32 2131351028, %v850
    %v857 = vor.u32 %v855, %v856
    %v858 = vshll.u32 2131351028, %v849
    %v859 = vshrl.u32 2102212464, %v850
    %v860 = vor.u32 %v858, %v859
    %v861 = vshll.u32 2102212464, %v849
    %v862 = vshrl.u32 920167782, %v850
    %v863 = vor.u32 %v861, %v862
    %v864 = vshll.u32 920167782, %v849
    %v865 = vshrl.u32 1326507024, %v850
    %v866 = vor.u32 %v864, %v865
    %vm867 = vcmp.lt.s32.totalorder %v848, 1
    %vm868 = vcmp.lt.s32.totalorder %v848, 2
    %vm869 = vcmp.lt.s32.totalorder %v848, 3
    %vm870 = vcmp.lt.s32.totalorder %v848, 4
    %v871 = vsel %vm867, %v851, %v854
    %v872 = vsel %vm870, %v860, 2102212464
    %v873 = vsel %vm869, %v857, %v872
    %v874 = vsel %vm868, %v871, %v873
    %v875 = vsel %vm867, %v854, %v857
    %v876 = vsel %vm870, %v863, 920167782
    %v877 = vsel %vm869, %v860, %v876
    %v878 = vsel %vm868, %v875, %v877
    %v879 = vsel %vm867, %v857, %v860
    %v880 = vsel %vm870, %v866, 1326507024
    %v881 = vsel %vm869, %v863, %v880
    %v882 = vsel %vm868, %v879, %v881
    %v883 = vshll.u32 %v843, 8
    %v884 = vmul.u32.u64.compose %v883, %v882
    %v885 = vextract.low.u32 %v884
    %v886 = vextract.high.u32 %v884
    %v887 = vmul.u32.u64.compose %v883, %v878
    %v888 = vextract.low.u32 %v887
    %v889 = vextract.high.u32 %v887
    %v890 = vmul.u32 %v883, %v874
    %v891 = vadd.s32 %v886, %v888
    %vm892 = vc.u32 %v886, %v888
    %v893 = vadd.s32 %v889, 1
    %v894 = vsel %vm892, %v893, %v889
    %v895 = vadd.s32 %v890, %v894
    %v896 = vadd.s32 %v895, 536870912
    %v897 = vshrl.u32 %v896, 30
    %v898 = vshll.u32 %v897, 30
    %v899 = vsub.s32 %v895, %v898
    %vm900 = vcmp.lt.s32.totalorder %v899, 0
    %v901 = vsub.s32 0, %v899
    %v902 = vsel %vm900, %v901, %v899
    %v903 = vclz %v902
    %v904 = vsub.s32 %v903, 2
    %vm905 = vcmp.gt.s32.totalorder 0, %v904
    %v906 = vsel %vm905, 0, %v904
    %v907 = vsub.s32 32, %v906
    %v908 = vshll.u32 %v899, %v906
    %v909 = vshrl.u32 %v891, %v907
    %v910 = vor.u32 %v908, %v909
    %v911 = vsub.s32 4294967266, %v906
    %v912 = vadd.s32 %v911, 127
    %v913 = vshll.u32 %v912, 23
    %v914 = vor.u32 4788187, %v913
    %v915 = vand.u32 2147483647, %v914
    %v917 = vcvt.s32.f32 %v910
    %v918 = vmul.f32 %v917, %v915
    %v919 = vxor.u32 %v918, 2147483648
    %v920 = vsel %vm837, %v919, %v918
    %v921 = vsub.s32 4, %v897
    %v922 = vsel %vm837, %v921, %v897
    %v923 = vsel %vm836, %v309, %v920
    %v924 = vsel %vm836, 0, %v922
    %v925 = vcosq.f32.pop %v923
    %v926 = vsinq.f32.pop %v923
    %vm927 = vweird.f32 %v309
    %v928 = vand.u32 %v924, 3
    %vm929 = vcmp.lt.s32.totalorder %v928, 2
    %vm930 = vcmp.eq.s32.totalorder %v928, 0
    %v931 = vxor.u32 %v926, 2147483648
    %v932 = vsel %vm930, %v925, %v931
    %vm933 = vcmp.eq.s32.totalorder %v928, 2
    %v934 = vxor.u32 %v925, 2147483648
    %v935 = vsel %vm933, %v934, %v926
    %v936 = vsel %vm929, %v932, %v935
    %v937 = vsel %vm927, nan, %v936
    %v938 = vand.u32 2147483647, %v310
    %vm939 = vcmp.le.f32.partialorder %v938, 0.7853982
    %vm940 = vcmp.lt.s32.totalorder %v310, 0
    %v941 = vand.u32 %v310, 2139095040
    %v942 = vshrl.u32 %v941, 23
    %v943 = vsub.s32 %v942, 127
    %v944 = vand.u32 2147483647, %v310
    %v945 = vand.u32 %v944, 8388607
    %v946 = vor.u32 %v945, 8388608
    %v947 = vsub.s32 0, %v946
    %v948 = vadd.s32 %v943, 1
    %vm949 = vcmp.gt.s32.totalorder %v948, 0
    %v950 = vsel %vm949, %v948, 0
    %v951 = vshrl.u32 %v950, 5
    %v952 = vand.u32 %v950, 31
    %v953 = vsub.s32 32, %v952
    %v954 = vshrl.u32 683565275, %v953
    %v955 = vshll.u32 683565275, %v952
    %v956 = vshrl.u32 2475754826, %v953
    %v957 = vor.u32 %v955, %v956
    %v958 = vshll.u32 2475754826, %v952
    %v959 = vshrl.u32 2131351028, %v953
    %v960 = vor.u32 %v958, %v959
    %v961 = vshll.u32 2131351028, %v952
    %v962 = vshrl.u32 2102212464, %v953
    %v963 = vor.u32 %v961, %v962
    %v964 = vshll.u32 2102212464, %v952
    %v965 = vshrl.u32 920167782, %v953
    %v966 = vor.u32 %v964, %v965
    %v967 = vshll.u32 920167782, %v952
    %v968 = vshrl.u32 1326507024, %v953
    %v969 = vor.u32 %v967, %v968
    %vm970 = vcmp.lt.s32.totalorder %v951, 1
    %vm971 = vcmp.lt.s32.totalorder %v951, 2
    %vm972 = vcmp.lt.s32.totalorder %v951, 3
    %vm973 = vcmp.lt.s32.totalorder %v951, 4
    %v974 = vsel %vm970, %v954, %v957
    %v975 = vsel %vm973, %v963, 2102212464
    %v976 = vsel %vm972, %v960, %v975
    %v977 = vsel %vm971, %v974, %v976
    %v978 = vsel %vm970, %v957, %v960
    %v979 = vsel %vm973, %v966, 920167782
    %v980 = vsel %vm972, %v963, %v979
    %v981 = vsel %vm971, %v978, %v980
    %v982 = vsel %vm970, %v960, %v963
    %v983 = vsel %vm973, %v969, 1326507024
    %v984 = vsel %vm972, %v966, %v983
    %v985 = vsel %vm971, %v982, %v984
    %v986 = vshll.u32 %v946, 8
    %v987 = vmul.u32.u64.compose %v986, %v985
    %v988 = vextract.low.u32 %v987
    %v989 = vextract.high.u32 %v987
    %v990 = vmul.u32.u64.compose %v986, %v981
    %v991 = vextract.low.u32 %v990
    %v992 = vextract.high.u32 %v990
    %v993 = vmul.u32 %v986, %v977
    %v994 = vadd.s32 %v989, %v991
    %vm995 = vc.u32 %v989, %v991
    %v996 = vadd.s32 %v992, 1
    %v997 = vsel %vm995, %v996, %v992
    %v998 = vadd.s32 %v993, %v997
    %v999 = vadd.s32 %v998, 536870912
    %v1000 = vshrl.u32 %v999, 30
    %v1001 = vshll.u32 %v1000, 30
    %v1002 = vsub.s32 %v998, %v1001
    %vm1003 = vcmp.lt.s32.totalorder %v1002, 0
    %v1004 = vsub.s32 0, %v1002
    %v1005 = vsel %vm1003, %v1004, %v1002
    %v1006 = vclz %v1005
    %v1007 = vsub.s32 %v1006, 2
    %vm1008 = vcmp.gt.s32.totalorder 0, %v1007
    %v1009 = vsel %vm1008, 0, %v1007
    %v1010 = vsub.s32 32, %v1009
    %v1011 = vshll.u32 %v1002, %v1009
    %v1012 = vshrl.u32 %v994, %v1010
    %v1013 = vor.u32 %v1011, %v1012
    %v1014 = vsub.s32 4294967266, %v1009
    %v1015 = vadd.s32 %v1014, 127
    %v1016 = vshll.u32 %v1015, 23
    %v1017 = vor.u32 4788187, %v1016
    %v1018 = vand.u32 2147483647, %v1017
    %v1020 = vcvt.s32.f32 %v1013
    %v1021 = vmul.f32 %v1020, %v1018
    %v1022 = vxor.u32 %v1021, 2147483648
    %v1023 = vsel %vm940, %v1022, %v1021
    %v1024 = vsub.s32 4, %v1000
    %v1025 = vsel %vm940, %v1024, %v1000
    %v1026 = vsel %vm939, %v310, %v1023
    %v1027 = vsel %vm939, 0, %v1025
    %v1028 = vcosq.f32.pop %v1026
    %v1029 = vsinq.f32.pop %v1026
    %vm1030 = vweird.f32 %v310
    %v1031 = vand.u32 %v1027, 3
    %vm1032 = vcmp.lt.s32.totalorder %v1031, 2
    %vm1033 = vcmp.eq.s32.totalorder %v1031, 0
    %v1034 = vxor.u32 %v1029, 2147483648
    %v1035 = vsel %vm1033, %v1028, %v1034
    %vm1036 = vcmp.eq.s32.totalorder %v1031, 2
    %v1037 = vxor.u32 %v1028, 2147483648
    %v1038 = vsel %vm1036, %v1037, %v1029
    %v1039 = vsel %vm1032, %v1035, %v1038
    %v1040 = vsel %vm1030, nan, %v1039
    %v1041 = vand.u32 2147483647, %v311
    %vm1042 = vcmp.le.f32.partialorder %v1041, 0.7853982
    %vm1043 = vcmp.lt.s32.totalorder %v311, 0
    %v1044 = vand.u32 %v311, 2139095040
    %v1045 = vshrl.u32 %v1044, 23
    %v1046 = vsub.s32 %v1045, 127
    %v1047 = vand.u32 2147483647, %v311
    %v1048 = vand.u32 %v1047, 8388607
    %v1049 = vor.u32 %v1048, 8388608
    %v1050 = vsub.s32 0, %v1049
    %v1051 = vadd.s32 %v1046, 1
    %vm1052 = vcmp.gt.s32.totalorder %v1051, 0
    %v1053 = vsel %vm1052, %v1051, 0
    %v1054 = vshrl.u32 %v1053, 5
    %v1055 = vand.u32 %v1053, 31
    %v1056 = vsub.s32 32, %v1055
    %v1057 = vshrl.u32 683565275, %v1056
    %v1058 = vshll.u32 683565275, %v1055
    %v1059 = vshrl.u32 2475754826, %v1056
    %v1060 = vor.u32 %v1058, %v1059
    %v1061 = vshll.u32 2475754826, %v1055
    %v1062 = vshrl.u32 2131351028, %v1056
    %v1063 = vor.u32 %v1061, %v1062
    %v1064 = vshll.u32 2131351028, %v1055
    %v1065 = vshrl.u32 2102212464, %v1056
    %v1066 = vor.u32 %v1064, %v1065
    %v1067 = vshll.u32 2102212464, %v1055
    %v1068 = vshrl.u32 920167782, %v1056
    %v1069 = vor.u32 %v1067, %v1068
    %v1070 = vshll.u32 920167782, %v1055
    %v1071 = vshrl.u32 1326507024, %v1056
    %v1072 = vor.u32 %v1070, %v1071
    %vm1073 = vcmp.lt.s32.totalorder %v1054, 1
    %vm1074 = vcmp.lt.s32.totalorder %v1054, 2
    %vm1075 = vcmp.lt.s32.totalorder %v1054, 3
    %vm1076 = vcmp.lt.s32.totalorder %v1054, 4
    %v1077 = vsel %vm1073, %v1057, %v1060
    %v1078 = vsel %vm1076, %v1066, 2102212464
    %v1079 = vsel %vm1075, %v1063, %v1078
    %v1080 = vsel %vm1074, %v1077, %v1079
    %v1081 = vsel %vm1073, %v1060, %v1063
    %v1082 = vsel %vm1076, %v1069, 920167782
    %v1083 = vsel %vm1075, %v1066, %v1082
    %v1084 = vsel %vm1074, %v1081, %v1083
    %v1085 = vsel %vm1073, %v1063, %v1066
    %v1086 = vsel %vm1076, %v1072, 1326507024
    %v1087 = vsel %vm1075, %v1069, %v1086
    %v1088 = vsel %vm1074, %v1085, %v1087
    %v1089 = vshll.u32 %v1049, 8
    %v1090 = vmul.u32.u64.compose %v1089, %v1088
    %v1091 = vextract.low.u32 %v1090
    %v1092 = vextract.high.u32 %v1090
    %v1093 = vmul.u32.u64.compose %v1089, %v1084
    %v1094 = vextract.low.u32 %v1093
    %v1095 = vextract.high.u32 %v1093
    %v1096 = vmul.u32 %v1089, %v1080
    %v1097 = vadd.s32 %v1092, %v1094
    %vm1098 = vc.u32 %v1092, %v1094
    %v1099 = vadd.s32 %v1095, 1
    %v1100 = vsel %vm1098, %v1099, %v1095
    %v1101 = vadd.s32 %v1096, %v1100
    %v1102 = vadd.s32 %v1101, 536870912
    %v1103 = vshrl.u32 %v1102, 30
    %v1104 = vshll.u32 %v1103, 30
    %v1105 = vsub.s32 %v1101, %v1104
    %vm1106 = vcmp.lt.s32.totalorder %v1105, 0
    %v1107 = vsub.s32 0, %v1105
    %v1108 = vsel %vm1106, %v1107, %v1105
    %v1109 = vclz %v1108
    %v1110 = vsub.s32 %v1109, 2
    %vm1111 = vcmp.gt.s32.totalorder 0, %v1110
    %v1112 = vsel %vm1111, 0, %v1110
    %v1113 = vsub.s32 32, %v1112
    %v1114 = vshll.u32 %v1105, %v1112
    %v1115 = vshrl.u32 %v1097, %v1113
    %v1116 = vor.u32 %v1114, %v1115
    %v1117 = vsub.s32 4294967266, %v1112
    %v1118 = vadd.s32 %v1117, 127
    %v1119 = vshll.u32 %v1118, 23
    %v1120 = vor.u32 4788187, %v1119
    %v1121 = vand.u32 2147483647, %v1120
    %v1123 = vcvt.s32.f32 %v1116
    %v1124 = vmul.f32 %v1123, %v1121
    %v1125 = vxor.u32 %v1124, 2147483648
    %v1126 = vsel %vm1043, %v1125, %v1124
    %v1127 = vsub.s32 4, %v1103
    %v1128 = vsel %vm1043, %v1127, %v1103
    %v1129 = vsel %vm1042, %v311, %v1126
    %v1130 = vsel %vm1042, 0, %v1128
    %v1131 = vcosq.f32.pop %v1129
    %v1132 = vsinq.f32.pop %v1129
    %vm1133 = vweird.f32 %v311
    %v1134 = vand.u32 %v1130, 3
    %vm1135 = vcmp.lt.s32.totalorder %v1134, 2
    %vm1136 = vcmp.eq.s32.totalorder %v1134, 0
    %v1137 = vxor.u32 %v1132, 2147483648
    %v1138 = vsel %vm1136, %v1131, %v1137
    %vm1139 = vcmp.eq.s32.totalorder %v1134, 2
    %v1140 = vxor.u32 %v1131, 2147483648
    %v1141 = vsel %vm1139, %v1140, %v1132
    %v1142 = vsel %vm1135, %v1138, %v1141
    %v1143 = vsel %vm1133, nan, %v1142
    %v1144 = vmul.f32 %v312, %v422
    %v1145 = vmul.f32 %v313, %v525
    %v1146 = vmul.f32 %v314, %v628
    %v1147 = vmul.f32 %v315, %v731
    %v1148 = vmul.f32 %v316, %v834
    %v1149 = vmul.f32 %v317, %v937
    %v1150 = vmul.f32 %v318, %v1040
    %v1151 = vmul.f32 %v319, %v1143
    %v1152 = vld [vmem:[#allocation3] sm:$0xff]
    %v1153 = vld [vmem:[#allocation3 + $0x8] sm:$0xff]
    %v1154 = vld [vmem:[#allocation3 + $0x10] sm:$0xff]
    %v1155 = vld [vmem:[#allocation3 + $0x18] sm:$0xff]
    %v1156 = vld [vmem:[#allocation3 + $0x20] sm:$0xff]
    %v1157 = vld [vmem:[#allocation3 + $0x28] sm:$0xff]
    %v1158 = vld [vmem:[#allocation3 + $0x30] sm:$0xff]
    %v1159 = vld [vmem:[#allocation3 + $0x38] sm:$0xff]
    %v1160 = vand.u32 2147483647, %v304
    %vm1161 = vcmp.le.f32.partialorder %v1160, 0.7853982
    %vm1162 = vcmp.lt.s32.totalorder %v304, 0
    %v1163 = vand.u32 %v304, 2139095040
    %v1164 = vshrl.u32 %v1163, 23
    %v1165 = vsub.s32 %v1164, 127
    %v1166 = vand.u32 2147483647, %v304
    %v1167 = vand.u32 %v1166, 8388607
    %v1168 = vor.u32 %v1167, 8388608
    %v1169 = vsub.s32 0, %v1168
    %v1170 = vadd.s32 %v1165, 1
    %vm1171 = vcmp.gt.s32.totalorder %v1170, 0
    %v1172 = vsel %vm1171, %v1170, 0
    %v1173 = vshrl.u32 %v1172, 5
    %v1174 = vand.u32 %v1172, 31
    %v1175 = vsub.s32 32, %v1174
    %v1176 = vshrl.u32 683565275, %v1175
    %v1177 = vshll.u32 683565275, %v1174
    %v1178 = vshrl.u32 2475754826, %v1175
    %v1179 = vor.u32 %v1177, %v1178
    %v1180 = vshll.u32 2475754826, %v1174
    %v1181 = vshrl.u32 2131351028, %v1175
    %v1182 = vor.u32 %v1180, %v1181
    %v1183 = vshll.u32 2131351028, %v1174
    %v1184 = vshrl.u32 2102212464, %v1175
    %v1185 = vor.u32 %v1183, %v1184
    %v1186 = vshll.u32 2102212464, %v1174
    %v1187 = vshrl.u32 920167782, %v1175
    %v1188 = vor.u32 %v1186, %v1187
    %v1189 = vshll.u32 920167782, %v1174
    %v1190 = vshrl.u32 1326507024, %v1175
    %v1191 = vor.u32 %v1189, %v1190
    %vm1192 = vcmp.lt.s32.totalorder %v1173, 1
    %vm1193 = vcmp.lt.s32.totalorder %v1173, 2
    %vm1194 = vcmp.lt.s32.totalorder %v1173, 3
    %vm1195 = vcmp.lt.s32.totalorder %v1173, 4
    %v1196 = vsel %vm1192, %v1176, %v1179
    %v1197 = vsel %vm1195, %v1185, 2102212464
    %v1198 = vsel %vm1194, %v1182, %v1197
    %v1199 = vsel %vm1193, %v1196, %v1198
    %v1200 = vsel %vm1192, %v1179, %v1182
    %v1201 = vsel %vm1195, %v1188, 920167782
    %v1202 = vsel %vm1194, %v1185, %v1201
    %v1203 = vsel %vm1193, %v1200, %v1202
    %v1204 = vsel %vm1192, %v1182, %v1185
    %v1205 = vsel %vm1195, %v1191, 1326507024
    %v1206 = vsel %vm1194, %v1188, %v1205
    %v1207 = vsel %vm1193, %v1204, %v1206
    %v1208 = vshll.u32 %v1168, 8
    %v1209 = vmul.u32.u64.compose %v1208, %v1207
    %v1210 = vextract.low.u32 %v1209
    %v1211 = vextract.high.u32 %v1209
    %v1212 = vmul.u32.u64.compose %v1208, %v1203
    %v1213 = vextract.low.u32 %v1212
    %v1214 = vextract.high.u32 %v1212
    %v1215 = vmul.u32 %v1208, %v1199
    %v1216 = vadd.s32 %v1211, %v1213
    %vm1217 = vc.u32 %v1211, %v1213
    %v1218 = vadd.s32 %v1214, 1
    %v1219 = vsel %vm1217, %v1218, %v1214
    %v1220 = vadd.s32 %v1215, %v1219
    %v1221 = vadd.s32 %v1220, 536870912
    %v1222 = vshrl.u32 %v1221, 30
    %v1223 = vshll.u32 %v1222, 30
    %v1224 = vsub.s32 %v1220, %v1223
    %vm1225 = vcmp.lt.s32.totalorder %v1224, 0
    %v1226 = vsub.s32 0, %v1224
    %v1227 = vsel %vm1225, %v1226, %v1224
    %v1228 = vclz %v1227
    %v1229 = vsub.s32 %v1228, 2
    %vm1230 = vcmp.gt.s32.totalorder 0, %v1229
    %v1231 = vsel %vm1230, 0, %v1229
    %v1232 = vsub.s32 32, %v1231
    %v1233 = vshll.u32 %v1224, %v1231
    %v1234 = vshrl.u32 %v1216, %v1232
    %v1235 = vor.u32 %v1233, %v1234
    %v1236 = vsub.s32 4294967266, %v1231
    %v1237 = vadd.s32 %v1236, 127
    %v1238 = vshll.u32 %v1237, 23
    %v1239 = vor.u32 4788187, %v1238
    %v1240 = vand.u32 2147483647, %v1239
    %v1242 = vcvt.s32.f32 %v1235
    %v1243 = vmul.f32 %v1242, %v1240
    %v1244 = vxor.u32 %v1243, 2147483648
    %v1245 = vsel %vm1162, %v1244, %v1243
    %v1246 = vsub.s32 4, %v1222
    %v1247 = vsel %vm1162, %v1246, %v1222
    %v1248 = vsel %vm1161, %v304, %v1245
    %v1249 = vsel %vm1161, 0, %v1247
    %v1250 = vcosq.f32.pop %v1248
    %v1251 = vsinq.f32.pop %v1248
    %vm1252 = vweird.f32 %v304
    %v1253 = vadd.s32 %v1249, 3
    %v1254 = vand.u32 %v1253, 3
    %vm1255 = vcmp.lt.s32.totalorder %v1254, 2
    %vm1256 = vcmp.eq.s32.totalorder %v1254, 0
    %v1257 = vxor.u32 %v1251, 2147483648
    %v1258 = vsel %vm1256, %v1250, %v1257
    %vm1259 = vcmp.eq.s32.totalorder %v1254, 2
    %v1260 = vxor.u32 %v1250, 2147483648
    %v1261 = vsel %vm1259, %v1260, %v1251
    %v1262 = vsel %vm1255, %v1258, %v1261
    %v1263 = vsel %vm1252, nan, %v1262
    %v1264 = vand.u32 2147483647, %v305
    %vm1265 = vcmp.le.f32.partialorder %v1264, 0.7853982
    %vm1266 = vcmp.lt.s32.totalorder %v305, 0
    %v1267 = vand.u32 %v305, 2139095040
    %v1268 = vshrl.u32 %v1267, 23
    %v1269 = vsub.s32 %v1268, 127
    %v1270 = vand.u32 2147483647, %v305
    %v1271 = vand.u32 %v1270, 8388607
    %v1272 = vor.u32 %v1271, 8388608
    %v1273 = vsub.s32 0, %v1272
    %v1274 = vadd.s32 %v1269, 1
    %vm1275 = vcmp.gt.s32.totalorder %v1274, 0
    %v1276 = vsel %vm1275, %v1274, 0
    %v1277 = vshrl.u32 %v1276, 5
    %v1278 = vand.u32 %v1276, 31
    %v1279 = vsub.s32 32, %v1278
    %v1280 = vshrl.u32 683565275, %v1279
    %v1281 = vshll.u32 683565275, %v1278
    %v1282 = vshrl.u32 2475754826, %v1279
    %v1283 = vor.u32 %v1281, %v1282
    %v1284 = vshll.u32 2475754826, %v1278
    %v1285 = vshrl.u32 2131351028, %v1279
    %v1286 = vor.u32 %v1284, %v1285
    %v1287 = vshll.u32 2131351028, %v1278
    %v1288 = vshrl.u32 2102212464, %v1279
    %v1289 = vor.u32 %v1287, %v1288
    %v1290 = vshll.u32 2102212464, %v1278
    %v1291 = vshrl.u32 920167782, %v1279
    %v1292 = vor.u32 %v1290, %v1291
    %v1293 = vshll.u32 920167782, %v1278
    %v1294 = vshrl.u32 1326507024, %v1279
    %v1295 = vor.u32 %v1293, %v1294
    %vm1296 = vcmp.lt.s32.totalorder %v1277, 1
    %vm1297 = vcmp.lt.s32.totalorder %v1277, 2
    %vm1298 = vcmp.lt.s32.totalorder %v1277, 3
    %vm1299 = vcmp.lt.s32.totalorder %v1277, 4
    %v1300 = vsel %vm1296, %v1280, %v1283
    %v1301 = vsel %vm1299, %v1289, 2102212464
    %v1302 = vsel %vm1298, %v1286, %v1301
    %v1303 = vsel %vm1297, %v1300, %v1302
    %v1304 = vsel %vm1296, %v1283, %v1286
    %v1305 = vsel %vm1299, %v1292, 920167782
    %v1306 = vsel %vm1298, %v1289, %v1305
    %v1307 = vsel %vm1297, %v1304, %v1306
    %v1308 = vsel %vm1296, %v1286, %v1289
    %v1309 = vsel %vm1299, %v1295, 1326507024
    %v1310 = vsel %vm1298, %v1292, %v1309
    %v1311 = vsel %vm1297, %v1308, %v1310
    %v1312 = vshll.u32 %v1272, 8
    %v1313 = vmul.u32.u64.compose %v1312, %v1311
    %v1314 = vextract.low.u32 %v1313
    %v1315 = vextract.high.u32 %v1313
    %v1316 = vmul.u32.u64.compose %v1312, %v1307
    %v1317 = vextract.low.u32 %v1316
    %v1318 = vextract.high.u32 %v1316
    %v1319 = vmul.u32 %v1312, %v1303
    %v1320 = vadd.s32 %v1315, %v1317
    %vm1321 = vc.u32 %v1315, %v1317
    %v1322 = vadd.s32 %v1318, 1
    %v1323 = vsel %vm1321, %v1322, %v1318
    %v1324 = vadd.s32 %v1319, %v1323
    %v1325 = vadd.s32 %v1324, 536870912
    %v1326 = vshrl.u32 %v1325, 30
    %v1327 = vshll.u32 %v1326, 30
    %v1328 = vsub.s32 %v1324, %v1327
    %vm1329 = vcmp.lt.s32.totalorder %v1328, 0
    %v1330 = vsub.s32 0, %v1328
    %v1331 = vsel %vm1329, %v1330, %v1328
    %v1332 = vclz %v1331
    %v1333 = vsub.s32 %v1332, 2
    %vm1334 = vcmp.gt.s32.totalorder 0, %v1333
    %v1335 = vsel %vm1334, 0, %v1333
    %v1336 = vsub.s32 32, %v1335
    %v1337 = vshll.u32 %v1328, %v1335
    %v1338 = vshrl.u32 %v1320, %v1336
    %v1339 = vor.u32 %v1337, %v1338
    %v1340 = vsub.s32 4294967266, %v1335
    %v1341 = vadd.s32 %v1340, 127
    %v1342 = vshll.u32 %v1341, 23
    %v1343 = vor.u32 4788187, %v1342
    %v1344 = vand.u32 2147483647, %v1343
    %v1346 = vcvt.s32.f32 %v1339
    %v1347 = vmul.f32 %v1346, %v1344
    %v1348 = vxor.u32 %v1347, 2147483648
    %v1349 = vsel %vm1266, %v1348, %v1347
    %v1350 = vsub.s32 4, %v1326
    %v1351 = vsel %vm1266, %v1350, %v1326
    %v1352 = vsel %vm1265, %v305, %v1349
    %v1353 = vsel %vm1265, 0, %v1351
    %v1354 = vcosq.f32.pop %v1352
    %v1355 = vsinq.f32.pop %v1352
    %vm1356 = vweird.f32 %v305
    %v1357 = vadd.s32 %v1353, 3
    %v1358 = vand.u32 %v1357, 3
    %vm1359 = vcmp.lt.s32.totalorder %v1358, 2
    %vm1360 = vcmp.eq.s32.totalorder %v1358, 0
    %v1361 = vxor.u32 %v1355, 2147483648
    %v1362 = vsel %vm1360, %v1354, %v1361
    %vm1363 = vcmp.eq.s32.totalorder %v1358, 2
    %v1364 = vxor.u32 %v1354, 2147483648
    %v1365 = vsel %vm1363, %v1364, %v1355
    %v1366 = vsel %vm1359, %v1362, %v1365
    %v1367 = vsel %vm1356, nan, %v1366
    %v1368 = vand.u32 2147483647, %v306
    %vm1369 = vcmp.le.f32.partialorder %v1368, 0.7853982
    %vm1370 = vcmp.lt.s32.totalorder %v306, 0
    %v1371 = vand.u32 %v306, 2139095040
    %v1372 = vshrl.u32 %v1371, 23
    %v1373 = vsub.s32 %v1372, 127
    %v1374 = vand.u32 2147483647, %v306
    %v1375 = vand.u32 %v1374, 8388607
    %v1376 = vor.u32 %v1375, 8388608
    %v1377 = vsub.s32 0, %v1376
    %v1378 = vadd.s32 %v1373, 1
    %vm1379 = vcmp.gt.s32.totalorder %v1378, 0
    %v1380 = vsel %vm1379, %v1378, 0
    %v1381 = vshrl.u32 %v1380, 5
    %v1382 = vand.u32 %v1380, 31
    %v1383 = vsub.s32 32, %v1382
    %v1384 = vshrl.u32 683565275, %v1383
    %v1385 = vshll.u32 683565275, %v1382
    %v1386 = vshrl.u32 2475754826, %v1383
    %v1387 = vor.u32 %v1385, %v1386
    %v1388 = vshll.u32 2475754826, %v1382
    %v1389 = vshrl.u32 2131351028, %v1383
    %v1390 = vor.u32 %v1388, %v1389
    %v1391 = vshll.u32 2131351028, %v1382
    %v1392 = vshrl.u32 2102212464, %v1383
    %v1393 = vor.u32 %v1391, %v1392
    %v1394 = vshll.u32 2102212464, %v1382
    %v1395 = vshrl.u32 920167782, %v1383
    %v1396 = vor.u32 %v1394, %v1395
    %v1397 = vshll.u32 920167782, %v1382
    %v1398 = vshrl.u32 1326507024, %v1383
    %v1399 = vor.u32 %v1397, %v1398
    %vm1400 = vcmp.lt.s32.totalorder %v1381, 1
    %vm1401 = vcmp.lt.s32.totalorder %v1381, 2
    %vm1402 = vcmp.lt.s32.totalorder %v1381, 3
    %vm1403 = vcmp.lt.s32.totalorder %v1381, 4
    %v1404 = vsel %vm1400, %v1384, %v1387
    %v1405 = vsel %vm1403, %v1393, 2102212464
    %v1406 = vsel %vm1402, %v1390, %v1405
    %v1407 = vsel %vm1401, %v1404, %v1406
    %v1408 = vsel %vm1400, %v1387, %v1390
    %v1409 = vsel %vm1403, %v1396, 920167782
    %v1410 = vsel %vm1402, %v1393, %v1409
    %v1411 = vsel %vm1401, %v1408, %v1410
    %v1412 = vsel %vm1400, %v1390, %v1393
    %v1413 = vsel %vm1403, %v1399, 1326507024
    %v1414 = vsel %vm1402, %v1396, %v1413
    %v1415 = vsel %vm1401, %v1412, %v1414
    %v1416 = vshll.u32 %v1376, 8
    %v1417 = vmul.u32.u64.compose %v1416, %v1415
    %v1418 = vextract.low.u32 %v1417
    %v1419 = vextract.high.u32 %v1417
    %v1420 = vmul.u32.u64.compose %v1416, %v1411
    %v1421 = vextract.low.u32 %v1420
    %v1422 = vextract.high.u32 %v1420
    %v1423 = vmul.u32 %v1416, %v1407
    %v1424 = vadd.s32 %v1419, %v1421
    %vm1425 = vc.u32 %v1419, %v1421
    %v1426 = vadd.s32 %v1422, 1
    %v1427 = vsel %vm1425, %v1426, %v1422
    %v1428 = vadd.s32 %v1423, %v1427
    %v1429 = vadd.s32 %v1428, 536870912
    %v1430 = vshrl.u32 %v1429, 30
    %v1431 = vshll.u32 %v1430, 30
    %v1432 = vsub.s32 %v1428, %v1431
    %vm1433 = vcmp.lt.s32.totalorder %v1432, 0
    %v1434 = vsub.s32 0, %v1432
    %v1435 = vsel %vm1433, %v1434, %v1432
    %v1436 = vclz %v1435
    %v1437 = vsub.s32 %v1436, 2
    %vm1438 = vcmp.gt.s32.totalorder 0, %v1437
    %v1439 = vsel %vm1438, 0, %v1437
    %v1440 = vsub.s32 32, %v1439
    %v1441 = vshll.u32 %v1432, %v1439
    %v1442 = vshrl.u32 %v1424, %v1440
    %v1443 = vor.u32 %v1441, %v1442
    %v1444 = vsub.s32 4294967266, %v1439
    %v1445 = vadd.s32 %v1444, 127
    %v1446 = vshll.u32 %v1445, 23
    %v1447 = vor.u32 4788187, %v1446
    %v1448 = vand.u32 2147483647, %v1447
    %v1450 = vcvt.s32.f32 %v1443
    %v1451 = vmul.f32 %v1450, %v1448
    %v1452 = vxor.u32 %v1451, 2147483648
    %v1453 = vsel %vm1370, %v1452, %v1451
    %v1454 = vsub.s32 4, %v1430
    %v1455 = vsel %vm1370, %v1454, %v1430
    %v1456 = vsel %vm1369, %v306, %v1453
    %v1457 = vsel %vm1369, 0, %v1455
    %v1458 = vcosq.f32.pop %v1456
    %v1459 = vsinq.f32.pop %v1456
    %vm1460 = vweird.f32 %v306
    %v1461 = vadd.s32 %v1457, 3
    %v1462 = vand.u32 %v1461, 3
    %vm1463 = vcmp.lt.s32.totalorder %v1462, 2
    %vm1464 = vcmp.eq.s32.totalorder %v1462, 0
    %v1465 = vxor.u32 %v1459, 2147483648
    %v1466 = vsel %vm1464, %v1458, %v1465
    %vm1467 = vcmp.eq.s32.totalorder %v1462, 2
    %v1468 = vxor.u32 %v1458, 2147483648
    %v1469 = vsel %vm1467, %v1468, %v1459
    %v1470 = vsel %vm1463, %v1466, %v1469
    %v1471 = vsel %vm1460, nan, %v1470
    %v1472 = vand.u32 2147483647, %v307
    %vm1473 = vcmp.le.f32.partialorder %v1472, 0.7853982
    %vm1474 = vcmp.lt.s32.totalorder %v307, 0
    %v1475 = vand.u32 %v307, 2139095040
    %v1476 = vshrl.u32 %v1475, 23
    %v1477 = vsub.s32 %v1476, 127
    %v1478 = vand.u32 2147483647, %v307
    %v1479 = vand.u32 %v1478, 8388607
    %v1480 = vor.u32 %v1479, 8388608
    %v1481 = vsub.s32 0, %v1480
    %v1482 = vadd.s32 %v1477, 1
    %vm1483 = vcmp.gt.s32.totalorder %v1482, 0
    %v1484 = vsel %vm1483, %v1482, 0
    %v1485 = vshrl.u32 %v1484, 5
    %v1486 = vand.u32 %v1484, 31
    %v1487 = vsub.s32 32, %v1486
    %v1488 = vshrl.u32 683565275, %v1487
    %v1489 = vshll.u32 683565275, %v1486
    %v1490 = vshrl.u32 2475754826, %v1487
    %v1491 = vor.u32 %v1489, %v1490
    %v1492 = vshll.u32 2475754826, %v1486
    %v1493 = vshrl.u32 2131351028, %v1487
    %v1494 = vor.u32 %v1492, %v1493
    %v1495 = vshll.u32 2131351028, %v1486
    %v1496 = vshrl.u32 2102212464, %v1487
    %v1497 = vor.u32 %v1495, %v1496
    %v1498 = vshll.u32 2102212464, %v1486
    %v1499 = vshrl.u32 920167782, %v1487
    %v1500 = vor.u32 %v1498, %v1499
    %v1501 = vshll.u32 920167782, %v1486
    %v1502 = vshrl.u32 1326507024, %v1487
    %v1503 = vor.u32 %v1501, %v1502
    %vm1504 = vcmp.lt.s32.totalorder %v1485, 1
    %vm1505 = vcmp.lt.s32.totalorder %v1485, 2
    %vm1506 = vcmp.lt.s32.totalorder %v1485, 3
    %vm1507 = vcmp.lt.s32.totalorder %v1485, 4
    %v1508 = vsel %vm1504, %v1488, %v1491
    %v1509 = vsel %vm1507, %v1497, 2102212464
    %v1510 = vsel %vm1506, %v1494, %v1509
    %v1511 = vsel %vm1505, %v1508, %v1510
    %v1512 = vsel %vm1504, %v1491, %v1494
    %v1513 = vsel %vm1507, %v1500, 920167782
    %v1514 = vsel %vm1506, %v1497, %v1513
    %v1515 = vsel %vm1505, %v1512, %v1514
    %v1516 = vsel %vm1504, %v1494, %v1497
    %v1517 = vsel %vm1507, %v1503, 1326507024
    %v1518 = vsel %vm1506, %v1500, %v1517
    %v1519 = vsel %vm1505, %v1516, %v1518
    %v1520 = vshll.u32 %v1480, 8
    %v1521 = vmul.u32.u64.compose %v1520, %v1519
    %v1522 = vextract.low.u32 %v1521
    %v1523 = vextract.high.u32 %v1521
    %v1524 = vmul.u32.u64.compose %v1520, %v1515
    %v1525 = vextract.low.u32 %v1524
    %v1526 = vextract.high.u32 %v1524
    %v1527 = vmul.u32 %v1520, %v1511
    %v1528 = vadd.s32 %v1523, %v1525
    %vm1529 = vc.u32 %v1523, %v1525
    %v1530 = vadd.s32 %v1526, 1
    %v1531 = vsel %vm1529, %v1530, %v1526
    %v1532 = vadd.s32 %v1527, %v1531
    %v1533 = vadd.s32 %v1532, 536870912
    %v1534 = vshrl.u32 %v1533, 30
    %v1535 = vshll.u32 %v1534, 30
    %v1536 = vsub.s32 %v1532, %v1535
    %vm1537 = vcmp.lt.s32.totalorder %v1536, 0
    %v1538 = vsub.s32 0, %v1536
    %v1539 = vsel %vm1537, %v1538, %v1536
    %v1540 = vclz %v1539
    %v1541 = vsub.s32 %v1540, 2
    %vm1542 = vcmp.gt.s32.totalorder 0, %v1541
    %v1543 = vsel %vm1542, 0, %v1541
    %v1544 = vsub.s32 32, %v1543
    %v1545 = vshll.u32 %v1536, %v1543
    %v1546 = vshrl.u32 %v1528, %v1544
    %v1547 = vor.u32 %v1545, %v1546
    %v1548 = vsub.s32 4294967266, %v1543
    %v1549 = vadd.s32 %v1548, 127
    %v1550 = vshll.u32 %v1549, 23
    %v1551 = vor.u32 4788187, %v1550
    %v1552 = vand.u32 2147483647, %v1551
    %v1554 = vcvt.s32.f32 %v1547
    %v1555 = vmul.f32 %v1554, %v1552
    %v1556 = vxor.u32 %v1555, 2147483648
    %v1557 = vsel %vm1474, %v1556, %v1555
    %v1558 = vsub.s32 4, %v1534
    %v1559 = vsel %vm1474, %v1558, %v1534
    %v1560 = vsel %vm1473, %v307, %v1557
    %v1561 = vsel %vm1473, 0, %v1559
    %v1562 = vcosq.f32.pop %v1560
    %v1563 = vsinq.f32.pop %v1560
    %vm1564 = vweird.f32 %v307
    %v1565 = vadd.s32 %v1561, 3
    %v1566 = vand.u32 %v1565, 3
    %vm1567 = vcmp.lt.s32.totalorder %v1566, 2
    %vm1568 = vcmp.eq.s32.totalorder %v1566, 0
    %v1569 = vxor.u32 %v1563, 2147483648
    %v1570 = vsel %vm1568, %v1562, %v1569
    %vm1571 = vcmp.eq.s32.totalorder %v1566, 2
    %v1572 = vxor.u32 %v1562, 2147483648
    %v1573 = vsel %vm1571, %v1572, %v1563
    %v1574 = vsel %vm1567, %v1570, %v1573
    %v1575 = vsel %vm1564, nan, %v1574
    %v1576 = vand.u32 2147483647, %v308
    %vm1577 = vcmp.le.f32.partialorder %v1576, 0.7853982
    %vm1578 = vcmp.lt.s32.totalorder %v308, 0
    %v1579 = vand.u32 %v308, 2139095040
    %v1580 = vshrl.u32 %v1579, 23
    %v1581 = vsub.s32 %v1580, 127
    %v1582 = vand.u32 2147483647, %v308
    %v1583 = vand.u32 %v1582, 8388607
    %v1584 = vor.u32 %v1583, 8388608
    %v1585 = vsub.s32 0, %v1584
    %v1586 = vadd.s32 %v1581, 1
    %vm1587 = vcmp.gt.s32.totalorder %v1586, 0
    %v1588 = vsel %vm1587, %v1586, 0
    %v1589 = vshrl.u32 %v1588, 5
    %v1590 = vand.u32 %v1588, 31
    %v1591 = vsub.s32 32, %v1590
    %v1592 = vshrl.u32 683565275, %v1591
    %v1593 = vshll.u32 683565275, %v1590
    %v1594 = vshrl.u32 2475754826, %v1591
    %v1595 = vor.u32 %v1593, %v1594
    %v1596 = vshll.u32 2475754826, %v1590
    %v1597 = vshrl.u32 2131351028, %v1591
    %v1598 = vor.u32 %v1596, %v1597
    %v1599 = vshll.u32 2131351028, %v1590
    %v1600 = vshrl.u32 2102212464, %v1591
    %v1601 = vor.u32 %v1599, %v1600
    %v1602 = vshll.u32 2102212464, %v1590
    %v1603 = vshrl.u32 920167782, %v1591
    %v1604 = vor.u32 %v1602, %v1603
    %v1605 = vshll.u32 920167782, %v1590
    %v1606 = vshrl.u32 1326507024, %v1591
    %v1607 = vor.u32 %v1605, %v1606
    %vm1608 = vcmp.lt.s32.totalorder %v1589, 1
    %vm1609 = vcmp.lt.s32.totalorder %v1589, 2
    %vm1610 = vcmp.lt.s32.totalorder %v1589, 3
    %vm1611 = vcmp.lt.s32.totalorder %v1589, 4
    %v1612 = vsel %vm1608, %v1592, %v1595
    %v1613 = vsel %vm1611, %v1601, 2102212464
    %v1614 = vsel %vm1610, %v1598, %v1613
    %v1615 = vsel %vm1609, %v1612, %v1614
    %v1616 = vsel %vm1608, %v1595, %v1598
    %v1617 = vsel %vm1611, %v1604, 920167782
    %v1618 = vsel %vm1610, %v1601, %v1617
    %v1619 = vsel %vm1609, %v1616, %v1618
    %v1620 = vsel %vm1608, %v1598, %v1601
    %v1621 = vsel %vm1611, %v1607, 1326507024
    %v1622 = vsel %vm1610, %v1604, %v1621
    %v1623 = vsel %vm1609, %v1620, %v1622
    %v1624 = vshll.u32 %v1584, 8
    %v1625 = vmul.u32.u64.compose %v1624, %v1623
    %v1626 = vextract.low.u32 %v1625
    %v1627 = vextract.high.u32 %v1625
    %v1628 = vmul.u32.u64.compose %v1624, %v1619
    %v1629 = vextract.low.u32 %v1628
    %v1630 = vextract.high.u32 %v1628
    %v1631 = vmul.u32 %v1624, %v1615
    %v1632 = vadd.s32 %v1627, %v1629
    %vm1633 = vc.u32 %v1627, %v1629
    %v1634 = vadd.s32 %v1630, 1
    %v1635 = vsel %vm1633, %v1634, %v1630
    %v1636 = vadd.s32 %v1631, %v1635
    %v1637 = vadd.s32 %v1636, 536870912
    %v1638 = vshrl.u32 %v1637, 30
    %v1639 = vshll.u32 %v1638, 30
    %v1640 = vsub.s32 %v1636, %v1639
    %vm1641 = vcmp.lt.s32.totalorder %v1640, 0
    %v1642 = vsub.s32 0, %v1640
    %v1643 = vsel %vm1641, %v1642, %v1640
    %v1644 = vclz %v1643
    %v1645 = vsub.s32 %v1644, 2
    %vm1646 = vcmp.gt.s32.totalorder 0, %v1645
    %v1647 = vsel %vm1646, 0, %v1645
    %v1648 = vsub.s32 32, %v1647
    %v1649 = vshll.u32 %v1640, %v1647
    %v1650 = vshrl.u32 %v1632, %v1648
    %v1651 = vor.u32 %v1649, %v1650
    %v1652 = vsub.s32 4294967266, %v1647
    %v1653 = vadd.s32 %v1652, 127
    %v1654 = vshll.u32 %v1653, 23
    %v1655 = vor.u32 4788187, %v1654
    %v1656 = vand.u32 2147483647, %v1655
    %v1658 = vcvt.s32.f32 %v1651
    %v1659 = vmul.f32 %v1658, %v1656
    %v1660 = vxor.u32 %v1659, 2147483648
    %v1661 = vsel %vm1578, %v1660, %v1659
    %v1662 = vsub.s32 4, %v1638
    %v1663 = vsel %vm1578, %v1662, %v1638
    %v1664 = vsel %vm1577, %v308, %v1661
    %v1665 = vsel %vm1577, 0, %v1663
    %v1666 = vcosq.f32.pop %v1664
    %v1667 = vsinq.f32.pop %v1664
    %vm1668 = vweird.f32 %v308
    %v1669 = vadd.s32 %v1665, 3
    %v1670 = vand.u32 %v1669, 3
    %vm1671 = vcmp.lt.s32.totalorder %v1670, 2
    %vm1672 = vcmp.eq.s32.totalorder %v1670, 0
    %v1673 = vxor.u32 %v1667, 2147483648
    %v1674 = vsel %vm1672, %v1666, %v1673
    %vm1675 = vcmp.eq.s32.totalorder %v1670, 2
    %v1676 = vxor.u32 %v1666, 2147483648
    %v1677 = vsel %vm1675, %v1676, %v1667
    %v1678 = vsel %vm1671, %v1674, %v1677
    %v1679 = vsel %vm1668, nan, %v1678
    %v1680 = vand.u32 2147483647, %v309
    %vm1681 = vcmp.le.f32.partialorder %v1680, 0.7853982
    %vm1682 = vcmp.lt.s32.totalorder %v309, 0
    %v1683 = vand.u32 %v309, 2139095040
    %v1684 = vshrl.u32 %v1683, 23
    %v1685 = vsub.s32 %v1684, 127
    %v1686 = vand.u32 2147483647, %v309
    %v1687 = vand.u32 %v1686, 8388607
    %v1688 = vor.u32 %v1687, 8388608
    %v1689 = vsub.s32 0, %v1688
    %v1690 = vadd.s32 %v1685, 1
    %vm1691 = vcmp.gt.s32.totalorder %v1690, 0
    %v1692 = vsel %vm1691, %v1690, 0
    %v1693 = vshrl.u32 %v1692, 5
    %v1694 = vand.u32 %v1692, 31
    %v1695 = vsub.s32 32, %v1694
    %v1696 = vshrl.u32 683565275, %v1695
    %v1697 = vshll.u32 683565275, %v1694
    %v1698 = vshrl.u32 2475754826, %v1695
    %v1699 = vor.u32 %v1697, %v1698
    %v1700 = vshll.u32 2475754826, %v1694
    %v1701 = vshrl.u32 2131351028, %v1695
    %v1702 = vor.u32 %v1700, %v1701
    %v1703 = vshll.u32 2131351028, %v1694
    %v1704 = vshrl.u32 2102212464, %v1695
    %v1705 = vor.u32 %v1703, %v1704
    %v1706 = vshll.u32 2102212464, %v1694
    %v1707 = vshrl.u32 920167782, %v1695
    %v1708 = vor.u32 %v1706, %v1707
    %v1709 = vshll.u32 920167782, %v1694
    %v1710 = vshrl.u32 1326507024, %v1695
    %v1711 = vor.u32 %v1709, %v1710
    %vm1712 = vcmp.lt.s32.totalorder %v1693, 1
    %vm1713 = vcmp.lt.s32.totalorder %v1693, 2
    %vm1714 = vcmp.lt.s32.totalorder %v1693, 3
    %vm1715 = vcmp.lt.s32.totalorder %v1693, 4
    %v1716 = vsel %vm1712, %v1696, %v1699
    %v1717 = vsel %vm1715, %v1705, 2102212464
    %v1718 = vsel %vm1714, %v1702, %v1717
    %v1719 = vsel %vm1713, %v1716, %v1718
    %v1720 = vsel %vm1712, %v1699, %v1702
    %v1721 = vsel %vm1715, %v1708, 920167782
    %v1722 = vsel %vm1714, %v1705, %v1721
    %v1723 = vsel %vm1713, %v1720, %v1722
    %v1724 = vsel %vm1712, %v1702, %v1705
    %v1725 = vsel %vm1715, %v1711, 1326507024
    %v1726 = vsel %vm1714, %v1708, %v1725
    %v1727 = vsel %vm1713, %v1724, %v1726
    %v1728 = vshll.u32 %v1688, 8
    %v1729 = vmul.u32.u64.compose %v1728, %v1727
    %v1730 = vextract.low.u32 %v1729
    %v1731 = vextract.high.u32 %v1729
    %v1732 = vmul.u32.u64.compose %v1728, %v1723
    %v1733 = vextract.low.u32 %v1732
    %v1734 = vextract.high.u32 %v1732
    %v1735 = vmul.u32 %v1728, %v1719
    %v1736 = vadd.s32 %v1731, %v1733
    %vm1737 = vc.u32 %v1731, %v1733
    %v1738 = vadd.s32 %v1734, 1
    %v1739 = vsel %vm1737, %v1738, %v1734
    %v1740 = vadd.s32 %v1735, %v1739
    %v1741 = vadd.s32 %v1740, 536870912
    %v1742 = vshrl.u32 %v1741, 30
    %v1743 = vshll.u32 %v1742, 30
    %v1744 = vsub.s32 %v1740, %v1743
    %vm1745 = vcmp.lt.s32.totalorder %v1744, 0
    %v1746 = vsub.s32 0, %v1744
    %v1747 = vsel %vm1745, %v1746, %v1744
    %v1748 = vclz %v1747
    %v1749 = vsub.s32 %v1748, 2
    %vm1750 = vcmp.gt.s32.totalorder 0, %v1749
    %v1751 = vsel %vm1750, 0, %v1749
    %v1752 = vsub.s32 32, %v1751
    %v1753 = vshll.u32 %v1744, %v1751
    %v1754 = vshrl.u32 %v1736, %v1752
    %v1755 = vor.u32 %v1753, %v1754
    %v1756 = vsub.s32 4294967266, %v1751
    %v1757 = vadd.s32 %v1756, 127
    %v1758 = vshll.u32 %v1757, 23
    %v1759 = vor.u32 4788187, %v1758
    %v1760 = vand.u32 2147483647, %v1759
    %v1762 = vcvt.s32.f32 %v1755
    %v1763 = vmul.f32 %v1762, %v1760
    %v1764 = vxor.u32 %v1763, 2147483648
    %v1765 = vsel %vm1682, %v1764, %v1763
    %v1766 = vsub.s32 4, %v1742
    %v1767 = vsel %vm1682, %v1766, %v1742
    %v1768 = vsel %vm1681, %v309, %v1765
    %v1769 = vsel %vm1681, 0, %v1767
    %v1770 = vcosq.f32.pop %v1768
    %v1771 = vsinq.f32.pop %v1768
    %vm1772 = vweird.f32 %v309
    %v1773 = vadd.s32 %v1769, 3
    %v1774 = vand.u32 %v1773, 3
    %vm1775 = vcmp.lt.s32.totalorder %v1774, 2
    %vm1776 = vcmp.eq.s32.totalorder %v1774, 0
    %v1777 = vxor.u32 %v1771, 2147483648
    %v1778 = vsel %vm1776, %v1770, %v1777
    %vm1779 = vcmp.eq.s32.totalorder %v1774, 2
    %v1780 = vxor.u32 %v1770, 2147483648
    %v1781 = vsel %vm1779, %v1780, %v1771
    %v1782 = vsel %vm1775, %v1778, %v1781
    %v1783 = vsel %vm1772, nan, %v1782
    %v1784 = vand.u32 2147483647, %v310
    %vm1785 = vcmp.le.f32.partialorder %v1784, 0.7853982
    %vm1786 = vcmp.lt.s32.totalorder %v310, 0
    %v1787 = vand.u32 %v310, 2139095040
    %v1788 = vshrl.u32 %v1787, 23
    %v1789 = vsub.s32 %v1788, 127
    %v1790 = vand.u32 2147483647, %v310
    %v1791 = vand.u32 %v1790, 8388607
    %v1792 = vor.u32 %v1791, 8388608
    %v1793 = vsub.s32 0, %v1792
    %v1794 = vadd.s32 %v1789, 1
    %vm1795 = vcmp.gt.s32.totalorder %v1794, 0
    %v1796 = vsel %vm1795, %v1794, 0
    %v1797 = vshrl.u32 %v1796, 5
    %v1798 = vand.u32 %v1796, 31
    %v1799 = vsub.s32 32, %v1798
    %v1800 = vshrl.u32 683565275, %v1799
    %v1801 = vshll.u32 683565275, %v1798
    %v1802 = vshrl.u32 2475754826, %v1799
    %v1803 = vor.u32 %v1801, %v1802
    %v1804 = vshll.u32 2475754826, %v1798
    %v1805 = vshrl.u32 2131351028, %v1799
    %v1806 = vor.u32 %v1804, %v1805
    %v1807 = vshll.u32 2131351028, %v1798
    %v1808 = vshrl.u32 2102212464, %v1799
    %v1809 = vor.u32 %v1807, %v1808
    %v1810 = vshll.u32 2102212464, %v1798
    %v1811 = vshrl.u32 920167782, %v1799
    %v1812 = vor.u32 %v1810, %v1811
    %v1813 = vshll.u32 920167782, %v1798
    %v1814 = vshrl.u32 1326507024, %v1799
    %v1815 = vor.u32 %v1813, %v1814
    %vm1816 = vcmp.lt.s32.totalorder %v1797, 1
    %vm1817 = vcmp.lt.s32.totalorder %v1797, 2
    %vm1818 = vcmp.lt.s32.totalorder %v1797, 3
    %vm1819 = vcmp.lt.s32.totalorder %v1797, 4
    %v1820 = vsel %vm1816, %v1800, %v1803
    %v1821 = vsel %vm1819, %v1809, 2102212464
    %v1822 = vsel %vm1818, %v1806, %v1821
    %v1823 = vsel %vm1817, %v1820, %v1822
    %v1824 = vsel %vm1816, %v1803, %v1806
    %v1825 = vsel %vm1819, %v1812, 920167782
    %v1826 = vsel %vm1818, %v1809, %v1825
    %v1827 = vsel %vm1817, %v1824, %v1826
    %v1828 = vsel %vm1816, %v1806, %v1809
    %v1829 = vsel %vm1819, %v1815, 1326507024
    %v1830 = vsel %vm1818, %v1812, %v1829
    %v1831 = vsel %vm1817, %v1828, %v1830
    %v1832 = vshll.u32 %v1792, 8
    %v1833 = vmul.u32.u64.compose %v1832, %v1831
    %v1834 = vextract.low.u32 %v1833
    %v1835 = vextract.high.u32 %v1833
    %v1836 = vmul.u32.u64.compose %v1832, %v1827
    %v1837 = vextract.low.u32 %v1836
    %v1838 = vextract.high.u32 %v1836
    %v1839 = vmul.u32 %v1832, %v1823
    %v1840 = vadd.s32 %v1835, %v1837
    %vm1841 = vc.u32 %v1835, %v1837
    %v1842 = vadd.s32 %v1838, 1
    %v1843 = vsel %vm1841, %v1842, %v1838
    %v1844 = vadd.s32 %v1839, %v1843
    %v1845 = vadd.s32 %v1844, 536870912
    %v1846 = vshrl.u32 %v1845, 30
    %v1847 = vshll.u32 %v1846, 30
    %v1848 = vsub.s32 %v1844, %v1847
    %vm1849 = vcmp.lt.s32.totalorder %v1848, 0
    %v1850 = vsub.s32 0, %v1848
    %v1851 = vsel %vm1849, %v1850, %v1848
    %v1852 = vclz %v1851
    %v1853 = vsub.s32 %v1852, 2
    %vm1854 = vcmp.gt.s32.totalorder 0, %v1853
    %v1855 = vsel %vm1854, 0, %v1853
    %v1856 = vsub.s32 32, %v1855
    %v1857 = vshll.u32 %v1848, %v1855
    %v1858 = vshrl.u32 %v1840, %v1856
    %v1859 = vor.u32 %v1857, %v1858
    %v1860 = vsub.s32 4294967266, %v1855
    %v1861 = vadd.s32 %v1860, 127
    %v1862 = vshll.u32 %v1861, 23
    %v1863 = vor.u32 4788187, %v1862
    %v1864 = vand.u32 2147483647, %v1863
    %v1866 = vcvt.s32.f32 %v1859
    %v1867 = vmul.f32 %v1866, %v1864
    %v1868 = vxor.u32 %v1867, 2147483648
    %v1869 = vsel %vm1786, %v1868, %v1867
    %v1870 = vsub.s32 4, %v1846
    %v1871 = vsel %vm1786, %v1870, %v1846
    %v1872 = vsel %vm1785, %v310, %v1869
    %v1873 = vsel %vm1785, 0, %v1871
    %v1874 = vcosq.f32.pop %v1872
    %v1875 = vsinq.f32.pop %v1872
    %vm1876 = vweird.f32 %v310
    %v1877 = vadd.s32 %v1873, 3
    %v1878 = vand.u32 %v1877, 3
    %vm1879 = vcmp.lt.s32.totalorder %v1878, 2
    %vm1880 = vcmp.eq.s32.totalorder %v1878, 0
    %v1881 = vxor.u32 %v1875, 2147483648
    %v1882 = vsel %vm1880, %v1874, %v1881
    %vm1883 = vcmp.eq.s32.totalorder %v1878, 2
    %v1884 = vxor.u32 %v1874, 2147483648
    %v1885 = vsel %vm1883, %v1884, %v1875
    %v1886 = vsel %vm1879, %v1882, %v1885
    %v1887 = vsel %vm1876, nan, %v1886
    %v1888 = vand.u32 2147483647, %v311
    %vm1889 = vcmp.le.f32.partialorder %v1888, 0.7853982
    %vm1890 = vcmp.lt.s32.totalorder %v311, 0
    %v1891 = vand.u32 %v311, 2139095040
    %v1892 = vshrl.u32 %v1891, 23
    %v1893 = vsub.s32 %v1892, 127
    %v1894 = vand.u32 2147483647, %v311
    %v1895 = vand.u32 %v1894, 8388607
    %v1896 = vor.u32 %v1895, 8388608
    %v1897 = vsub.s32 0, %v1896
    %v1898 = vadd.s32 %v1893, 1
    %vm1899 = vcmp.gt.s32.totalorder %v1898, 0
    %v1900 = vsel %vm1899, %v1898, 0
    %v1901 = vshrl.u32 %v1900, 5
    %v1902 = vand.u32 %v1900, 31
    %v1903 = vsub.s32 32, %v1902
    %v1904 = vshrl.u32 683565275, %v1903
    %v1905 = vshll.u32 683565275, %v1902
    %v1906 = vshrl.u32 2475754826, %v1903
    %v1907 = vor.u32 %v1905, %v1906
    %v1908 = vshll.u32 2475754826, %v1902
    %v1909 = vshrl.u32 2131351028, %v1903
    %v1910 = vor.u32 %v1908, %v1909
    %v1911 = vshll.u32 2131351028, %v1902
    %v1912 = vshrl.u32 2102212464, %v1903
    %v1913 = vor.u32 %v1911, %v1912
    %v1914 = vshll.u32 2102212464, %v1902
    %v1915 = vshrl.u32 920167782, %v1903
    %v1916 = vor.u32 %v1914, %v1915
    %v1917 = vshll.u32 920167782, %v1902
    %v1918 = vshrl.u32 1326507024, %v1903
    %v1919 = vor.u32 %v1917, %v1918
    %vm1920 = vcmp.lt.s32.totalorder %v1901, 1
    %vm1921 = vcmp.lt.s32.totalorder %v1901, 2
    %vm1922 = vcmp.lt.s32.totalorder %v1901, 3
    %vm1923 = vcmp.lt.s32.totalorder %v1901, 4
    %v1924 = vsel %vm1920, %v1904, %v1907
    %v1925 = vsel %vm1923, %v1913, 2102212464
    %v1926 = vsel %vm1922, %v1910, %v1925
    %v1927 = vsel %vm1921, %v1924, %v1926
    %v1928 = vsel %vm1920, %v1907, %v1910
    %v1929 = vsel %vm1923, %v1916, 920167782
    %v1930 = vsel %vm1922, %v1913, %v1929
    %v1931 = vsel %vm1921, %v1928, %v1930
    %v1932 = vsel %vm1920, %v1910, %v1913
    %v1933 = vsel %vm1923, %v1919, 1326507024
    %v1934 = vsel %vm1922, %v1916, %v1933
    %v1935 = vsel %vm1921, %v1932, %v1934
    %v1936 = vshll.u32 %v1896, 8
    %v1937 = vmul.u32.u64.compose %v1936, %v1935
    %v1938 = vextract.low.u32 %v1937
    %v1939 = vextract.high.u32 %v1937
    %v1940 = vmul.u32.u64.compose %v1936, %v1931
    %v1941 = vextract.low.u32 %v1940
    %v1942 = vextract.high.u32 %v1940
    %v1943 = vmul.u32 %v1936, %v1927
    %v1944 = vadd.s32 %v1939, %v1941
    %vm1945 = vc.u32 %v1939, %v1941
    %v1946 = vadd.s32 %v1942, 1
    %v1947 = vsel %vm1945, %v1946, %v1942
    %v1948 = vadd.s32 %v1943, %v1947
    %v1949 = vadd.s32 %v1948, 536870912
    %v1950 = vshrl.u32 %v1949, 30
    %v1951 = vshll.u32 %v1950, 30
    %v1952 = vsub.s32 %v1948, %v1951
    %vm1953 = vcmp.lt.s32.totalorder %v1952, 0
    %v1954 = vsub.s32 0, %v1952
    %v1955 = vsel %vm1953, %v1954, %v1952
    %v1956 = vclz %v1955
    %v1957 = vsub.s32 %v1956, 2
    %vm1958 = vcmp.gt.s32.totalorder 0, %v1957
    %v1959 = vsel %vm1958, 0, %v1957
    %v1960 = vsub.s32 32, %v1959
    %v1961 = vshll.u32 %v1952, %v1959
    %v1962 = vshrl.u32 %v1944, %v1960
    %v1963 = vor.u32 %v1961, %v1962
    %v1964 = vsub.s32 4294967266, %v1959
    %v1965 = vadd.s32 %v1964, 127
    %v1966 = vshll.u32 %v1965, 23
    %v1967 = vor.u32 4788187, %v1966
    %v1968 = vand.u32 2147483647, %v1967
    %v1970 = vcvt.s32.f32 %v1963
    %v1971 = vmul.f32 %v1970, %v1968
    %v1972 = vxor.u32 %v1971, 2147483648
    %v1973 = vsel %vm1890, %v1972, %v1971
    %v1974 = vsub.s32 4, %v1950
    %v1975 = vsel %vm1890, %v1974, %v1950
    %v1976 = vsel %vm1889, %v311, %v1973
    %v1977 = vsel %vm1889, 0, %v1975
    %v1978 = vcosq.f32.pop %v1976
    %v1979 = vsinq.f32.pop %v1976
    %vm1980 = vweird.f32 %v311
    %v1981 = vadd.s32 %v1977, 3
    %v1982 = vand.u32 %v1981, 3
    %vm1983 = vcmp.lt.s32.totalorder %v1982, 2
    %vm1984 = vcmp.eq.s32.totalorder %v1982, 0
    %v1985 = vxor.u32 %v1979, 2147483648
    %v1986 = vsel %vm1984, %v1978, %v1985
    %vm1987 = vcmp.eq.s32.totalorder %v1982, 2
    %v1988 = vxor.u32 %v1978, 2147483648
    %v1989 = vsel %vm1987, %v1988, %v1979
    %v1990 = vsel %vm1983, %v1986, %v1989
    %v1991 = vsel %vm1980, nan, %v1990
    %v1992 = vmul.f32 %v1152, %v1263
    %v1993 = vmul.f32 %v1153, %v1367
    %v1994 = vmul.f32 %v1154, %v1471
    %v1995 = vmul.f32 %v1155, %v1575
    %v1996 = vmul.f32 %v1156, %v1679
    %v1997 = vmul.f32 %v1157, %v1783
    %v1998 = vmul.f32 %v1158, %v1887
    %v1999 = vmul.f32 %v1159, %v1991
    %v2000 = vadd.f32 %v1144, %v1992
    %v2001 = vadd.f32 %v1145, %v1993
    %v2002 = vadd.f32 %v1146, %v1994
    %v2003 = vadd.f32 %v1147, %v1995
    %v2004 = vadd.f32 %v1148, %v1996
    %v2005 = vadd.f32 %v1149, %v1997
    %v2006 = vadd.f32 %v1150, %v1998
    %v2007 = vadd.f32 %v1151, %v1999
    %v2008 = vld [vmem:[%s2] sm:$0xff]
    %v2009 = vld [vmem:[%s2 + $0x8] sm:$0xff]
    %v2010 = vld [vmem:[%s2 + $0x10] sm:$0xff]
    %v2011 = vld [vmem:[%s2 + $0x18] sm:$0xff]
    %v2012 = vld [vmem:[%s2 + $0x20] sm:$0xff]
    %v2013 = vld [vmem:[%s2 + $0x28] sm:$0xff]
    %v2014 = vld [vmem:[%s2 + $0x30] sm:$0xff]
    %v2015 = vld [vmem:[%s2 + $0x38] sm:$0xff]
    %2017 = vset.pattern.permute.xlu0 0
    %2018 = vperm.xlu0 %2017, %v2008
    %v2019 = vpop.permute.xlu0 %2018
    %2022 = vset.pattern.permute.xlu0 0
    %2023 = vperm.xlu0 %2022, %v2009
    %v2024 = vpop.permute.xlu0 %2023
    %2027 = vset.pattern.permute.xlu0 0
    %2028 = vperm.xlu0 %2027, %v2010
    %v2029 = vpop.permute.xlu0 %2028
    %2032 = vset.pattern.permute.xlu0 0
    %2033 = vperm.xlu0 %2032, %v2011
    %v2034 = vpop.permute.xlu0 %2033
    %2037 = vset.pattern.permute.xlu0 0
    %2038 = vperm.xlu0 %2037, %v2012
    %v2039 = vpop.permute.xlu0 %2038
    %2042 = vset.pattern.permute.xlu0 0
    %2043 = vperm.xlu0 %2042, %v2013
    %v2044 = vpop.permute.xlu0 %2043
    %2047 = vset.pattern.permute.xlu0 0
    %2048 = vperm.xlu0 %2047, %v2014
    %v2049 = vpop.permute.xlu0 %2048
    %2052 = vset.pattern.permute.xlu0 0
    %2053 = vperm.xlu0 %2052, %v2015
    %v2054 = vpop.permute.xlu0 %2053
    %v2056 = vmul.f32 %v2000, %v2019
    %v2057 = vmul.f32 %v2001, %v2024
    %v2058 = vmul.f32 %v2002, %v2029
    %v2059 = vmul.f32 %v2003, %v2034
    %v2060 = vmul.f32 %v2004, %v2039
    %v2061 = vmul.f32 %v2005, %v2044
    %v2062 = vmul.f32 %v2006, %v2049
    %v2063 = vmul.f32 %v2007, %v2054
    %2064 = vst [vmem:[%s5] sm:$0xff] %v2056
    %2065 = vst [vmem:[%s5 + $0x8] sm:$0xff] %v2057
    %2066 = vst [vmem:[%s5 + $0x10] sm:$0xff] %v2058
    %2067 = vst [vmem:[%s5 + $0x18] sm:$0xff] %v2059
    %2068 = vst [vmem:[%s5 + $0x20] sm:$0xff] %v2060
    %2069 = vst [vmem:[%s5 + $0x28] sm:$0xff] %v2061
    %2070 = vst [vmem:[%s5 + $0x30] sm:$0xff] %v2062
    %2071 = vst [vmem:[%s5 + $0x38] sm:$0xff] %v2063
    // Predicated region
    $region98: #{_device.3} parent=1 // pred_check
      _
    $region99: #{_device.3} parent=1 // pred_check_branch
      %2073 = sbr.rel (0) target = $region101
    $region100: #{_device.3} parent=1 // pred_region
      _
    $region101: #{_device.3} parent=1 // pred_fallthru
      _
    // Predicated region
    $region102: #{_device.3} parent=1 // pred_check
      _
    $region103: #{_device.3} parent=1 // pred_check_branch
      %2075 = sbr.rel (0) target = $region105
    $region104: #{_device.3} parent=1 // pred_region
      _
    $region105: #{_device.3} parent=1 // pred_fallthru
      _

</llo_original>
